<compile_context>
chip_gen: v7x
topology: tpu7x:2x2x1
jax: 0.10.0
libtpu: 0.0.40
codegen_flags: <defaults>
</compile_context>

<pallas_src>
import math

import jax
import jax.numpy as jnp
from jax.experimental import pallas as pl
from jax.experimental.pallas import tpu as pltpu

EPS = 1e-5                # torch.nn.LayerNorm default
FREQ_EMB_SIZE = 256       # TimestepEmbedder default frequency_embedding_size
_HP = jax.lax.Precision.HIGHEST   # used only in host-side XLA ops / reference


# ----------------------------- shared math helpers -----------------------------
def _silu(v):
    return v * jax.nn.sigmoid(v)


def _gelu(v):
    # tanh-approximate GELU (see TODO above); used in BOTH the kernel and the reference.
    c = math.sqrt(2.0 / math.pi)
    return 0.5 * v * (1.0 + jnp.tanh(c * (v + 0.044715 * v * v * v)))


def _layernorm(v, gamma=None, beta=None):
    mu = jnp.mean(v, axis=-1, keepdims=True)
    var = jnp.mean((v - mu) ** 2, axis=-1, keepdims=True)
    v = (v - mu) * jax.lax.rsqrt(var + EPS)
    if gamma is not None:
        v = v * gamma + beta
    return v


# ------------------------------- fused Pallas kernel ----------------------------
def fused_forward_kernel(
    x_ref, mb_ref, cw_ref, cb_ref, temb_ref, pemb_ref,
    wqkv_ref, bqkv_ref, woh_ref, bo_ref,
    w1_ref, b1_ref, w2_ref, b2_ref, w3_ref, b3_ref, ln2_ref,
    oln_ref, ow_ref, ob_ref,
    o_ref,
):
    # One grid step == one batch row; all weights resident in VMEM, static block loop.
    D = cw_ref.shape[1]
    n_block = pemb_ref.shape[0]
    n_head = woh_ref.shape[1]
    hd = woh_ref.shape[2]

    # continuous-input embedding: (L, Din) @ (Din, D)
    x = jnp.dot(x_ref[...], cw_ref[...], preferred_element_type=jnp.float32) + cb_ref[...]
    mbias = mb_ref[...]                       # (1, L) additive key-mask bias (0 / -1e30)

    for blk in range(n_block):                # static unroll over transformer blocks
        # precomputed time / positional embeddings
        x = x + temb_ref[blk:blk + 1, :] + pemb_ref[blk]

        # fused Q|K|V projection; 1/sqrt(hd) already folded into the Q columns/bias
        qkv = (jnp.dot(x, wqkv_ref[blk], preferred_element_type=jnp.float32)
               + bqkv_ref[blk])                                        # (L, 3D)

        attn = None
        for h in range(n_head):               # static unroll over heads
            lo = h * hd
            qh = qkv[:, lo:lo + hd]
            kh = qkv[:, D + lo:D + lo + hd]
            vh = qkv[:, 2 * D + lo:2 * D + lo + hd]
            s = jax.lax.dot_general(qh, kh, (((1,), (1,)), ((), ())),
                                    preferred_element_type=jnp.float32)  # (L, L)
            s = s + mbias
            s = s - jnp.max(s, axis=-1, keepdims=True)
            e = jnp.exp(s)
            p = e * pl.reciprocal(jnp.sum(e, axis=-1, keepdims=True), approx=True)
            oh = jnp.dot(p, vh, preferred_element_type=jnp.float32)      # (L, hd)
            c = jnp.dot(oh, woh_ref[blk, h], preferred_element_type=jnp.float32)
            attn = c if attn is None else attn + c
        a = attn + bo_ref[blk]

        # residual + ln1 (no affine)
        x = _layernorm(x + a)

        # MLP: Linear(D,4D) -> GELU -> Linear(4D,2D) -> GELU -> Linear(2D,D)
        h1 = _gelu(jnp.dot(x, w1_ref[blk], preferred_element_type=jnp.float32) + b1_ref[blk])
        h2 = _gelu(jnp.dot(h1, w2_ref[blk], preferred_element_type=jnp.float32) + b2_ref[blk])
        h3 = jnp.dot(h2, w3_ref[blk], preferred_element_type=jnp.float32) + b3_ref[blk]

        # residual + ln2 (affine)
        gb = ln2_ref[blk]
        x = _layernorm(x + h3, gb[0:1, :], gb[1:2, :])

    # final LayerNorm + output projection
    oln = oln_ref[...]
    xn = _layernorm(x, oln[0:1, :], oln[1:2, :])
    o_ref[...] = (jnp.dot(xn, ow_ref[...], preferred_element_type=jnp.float32)
                  + ob_ref[...])


# ---------------------------- host-side embeddings -----------------------------
def timestep_frequency_embedding(t, dim=FREQ_EMB_SIZE, max_period=10000.0):
    half = dim // 2
    freqs = jnp.exp(-math.log(max_period) * jnp.arange(half, dtype=jnp.float32) / half)
    args = t[:, None].astype(jnp.float32) * freqs[None, :]
    return jnp.concatenate([jnp.cos(args), jnp.sin(args)], axis=-1)  # (B, dim)


def sinusoidal_pos_emb(L, dim, n_seq_max, rescale_steps=4000.0):
    pos = jnp.arange(L, dtype=jnp.float32) / float(n_seq_max) * rescale_steps
    half = dim // 2
    scale = math.log(10000.0) / (half - 1)
    freqs = jnp.exp(jnp.arange(half, dtype=jnp.float32) * -scale)
    args = pos[:, None] * freqs[None, :]
    return jnp.concatenate([jnp.sin(args), jnp.cos(args)], axis=-1)  # (L, dim)


# ------------------------------ parameter init ----------------------------------
def init_params(key, input_dim, output_dim, n_emb, n_block):
    def dense(k, din, dout):
        kw, kb = jax.random.split(k)
        w = 0.02 * jax.random.normal(kw, (din, dout), jnp.float32)
        b = 0.01 * jax.random.normal(kb, (1, dout), jnp.float32)
        return w, b

    keys = jax.random.split(key, n_block + 2)
    params = {}
    params["cont_w"], params["cont_b"] = dense(keys[0], input_dim, n_emb)

    blocks = []
    for bi in range(n_block):
        bks = jax.random.split(keys[1 + bi], 12)
        bp = {}
        bp["wm1"], bp["bm1"] = dense(bks[0], FREQ_EMB_SIZE, n_emb)
        bp["wm2"], bp["bm2"] = dense(bks[1], n_emb, n_emb)
        bp["wt"], bp["bt"] = dense(bks[2], n_emb, n_emb)
        bp["wp"], bp["bp"] = dense(bks[3], n_emb, n_emb)
        bp["wq"], bp["bq"] = dense(bks[4], n_emb, n_emb)
        bp["wk"], bp["bk"] = dense(bks[5], n_emb, n_emb)
        bp["wv"], bp["bv"] = dense(bks[6], n_emb, n_emb)
        bp["wo"], bp["bo"] = dense(bks[7], n_emb, n_emb)
        bp["w1"], bp["b1"] = dense(bks[8], n_emb, 4 * n_emb)
        bp["w2"], bp["b2"] = dense(bks[9], 4 * n_emb, 2 * n_emb)
        bp["w3"], bp["b3"] = dense(bks[10], 2 * n_emb, n_emb)
        bp["g2"] = 1.0 + 0.01 * jax.random.normal(bks[11], (1, n_emb), jnp.float32)
        bp["be2"] = jnp.zeros((1, n_emb), jnp.float32)
        blocks.append(bp)
    params["blocks"] = blocks

    params["out_g"] = jnp.ones((1, n_emb), jnp.float32)
    params["out_be"] = jnp.zeros((1, n_emb), jnp.float32)
    params["out_w"], params["out_b"] = dense(keys[-1], n_emb, output_dim)
    return params


# ----------------------- host-side prep of fused kernel inputs -------------------
def prepare_fused_inputs(params, time_step, L, n_head, n_seq_max):
    """Tiny per-block time/pos MLPs + weight packing (host-side XLA ops)."""
    blocks = params["blocks"]
    n_block = len(blocks)
    D = params["cont_w"].shape[1]
    hd = D // n_head
    scale = 1.0 / math.sqrt(hd)

    tfreq = timestep_frequency_embedding(time_step)        # (B, 256)
    possin = sinusoidal_pos_emb(L, D, n_seq_max)            # (L, D)

    temb_list, pemb_list = [], []
    for p in blocks:
        hmid = _silu(jnp.dot(tfreq, p["wm1"], precision=_HP) + p["bm1"])
        te = jnp.dot(hmid, p["wm2"], precision=_HP) + p["bm2"]
        temb_list.append(_silu(jnp.dot(te, p["wt"], precision=_HP) + p["bt"]))      # (B, D)
        pemb_list.append(_silu(jnp.dot(possin, p["wp"], precision=_HP) + p["bp"]))  # (L, D)

    def stack(key):
        return jnp.stack([p[key] for p in blocks], axis=0)

    wq = stack("wq") * scale                                 # fold 1/sqrt(hd) into Q
    bq = stack("bq") * scale
    return {
        "temb": jnp.stack(temb_list, axis=1),                # (B, n_block, D)
        "pemb": jnp.stack(pemb_list, axis=0),                 # (n_block, L, D)
        "wqkv": jnp.concatenate([wq, stack("wk"), stack("wv")], axis=-1),   # (n_block, D, 3D)
        "bqkv": jnp.concatenate([bq, stack("bk"), stack("bv")], axis=-1),   # (n_block, 1, 3D)
        "woh": stack("wo").reshape(n_block, n_head, hd, D),    # per-head output projection
        "bo": stack("bo"),
        "w1": stack("w1"), "b1": stack("b1"),
        "w2": stack("w2"), "b2": stack("b2"),
        "w3": stack("w3"), "b3": stack("b3"),
        "ln2": jnp.concatenate([stack("g2"), stack("be2")], axis=1),        # (n_block, 2, D)
        "out_ln": jnp.concatenate([params["out_g"], params["out_be"]], axis=0),  # (2, D)
    }


# --------------------------------- forward --------------------------------------
def _const_spec(shape):
    dims = tuple(int(d) for d in shape)
    n = len(dims)
    return pl.BlockSpec(dims, lambda b, _n=n: (0,) * _n)


def _batch_spec(shape):
    rest = tuple(int(d) for d in shape[1:])
    n = len(rest)
    return pl.BlockSpec((None,) + rest, lambda b, _n=n: (b,) + (0,) * _n)


def seq_transformer_forward(params, x, time_step, mask, n_head, n_seq_max):
    B, L, _ = x.shape
    out_dim = params["out_w"].shape[1]

    fp = prepare_fused_inputs(params, time_step, L, n_head, n_seq_max)
    # additive key-mask bias: 0 for valid keys, -1e30 for masked keys
    mask_bias = ((mask - 1.0) * 1e30).astype(jnp.float32).reshape(B, 1, L)

    inputs = [
        (x,                 _batch_spec(x.shape)),
        (mask_bias,         _batch_spec(mask_bias.shape)),
        (params["cont_w"],  _const_spec(params["cont_w"].shape)),
        (params["cont_b"],  _const_spec(params["cont_b"].shape)),
        (fp["temb"],        _batch_spec(fp["temb"].shape)),
        (fp["pemb"],        _const_spec(fp["pemb"].shape)),
        (fp["wqkv"],        _const_spec(fp["wqkv"].shape)),
        (fp["bqkv"],        _const_spec(fp["bqkv"].shape)),
        (fp["woh"],         _const_spec(fp["woh"].shape)),
        (fp["bo"],          _const_spec(fp["bo"].shape)),
        (fp["w1"],          _const_spec(fp["w1"].shape)),
        (fp["b1"],          _const_spec(fp["b1"].shape)),
        (fp["w2"],          _const_spec(fp["w2"].shape)),
        (fp["b2"],          _const_spec(fp["b2"].shape)),
        (fp["w3"],          _const_spec(fp["w3"].shape)),
        (fp["b3"],          _const_spec(fp["b3"].shape)),
        (fp["ln2"],         _const_spec(fp["ln2"].shape)),
        (fp["out_ln"],      _const_spec(fp["out_ln"].shape)),
        (params["out_w"],   _const_spec(params["out_w"].shape)),
        (params["out_b"],   _const_spec(params["out_b"].shape)),
    ]
    args = [a for a, _ in inputs]
    in_specs = [s for _, s in inputs]

    grid_spec = pltpu.PrefetchScalarGridSpec(
        num_scalar_prefetch=0,
        grid=(B,),                            # batch rows are independent
        in_specs=in_specs,
        out_specs=pl.BlockSpec((None, L, out_dim), lambda b: (b, 0, 0)),
    )
    return pl.pallas_call(
        fused_forward_kernel,
        out_shape=jax.ShapeDtypeStruct((B, L, out_dim), jnp.float32),
        grid_spec=grid_spec,
        compiler_params=pltpu.CompilerParams(
            dimension_semantics=("parallel",),   # 2-TC sharding on v7x; no-op on v5e/v6e
            vmem_limit_bytes=32 * 1024 * 1024,
        ),
    )(*args)


# ------------------------------ pure-JAX reference --------------------------------
def seq_transformer_reference(params, x, time_step, mask, n_head, n_seq_max):
    B, L, Din = x.shape
    D = params["cont_w"].shape[1]
    hd = D // n_head
    scale = 1.0 / math.sqrt(hd)
    tfreq = timestep_frequency_embedding(time_step)
    possin = sinusoidal_pos_emb(L, D, n_seq_max)
    mask_bias = (mask - 1.0) * 1e30                       # (B, L)

    x_emb = (jnp.dot(x.reshape(B * L, Din), params["cont_w"], precision=_HP)
             + params["cont_b"]).reshape(B, L, D)

    for p in params["blocks"]:
        hmid = _silu(jnp.dot(tfreq, p["wm1"], precision=_HP) + p["bm1"])
        te = jnp.dot(hmid, p["wm2"], precision=_HP) + p["bm2"]
        temb = _silu(jnp.dot(te, p["wt"], precision=_HP) + p["bt"])
        pemb = _silu(jnp.dot(possin, p["wp"], precision=_HP) + p["bp"])
        x_emb = x_emb + temb[:, None, :] + pemb[None, :, :]

        x2 = x_emb.reshape(B * L, D)
        q = (jnp.dot(x2, p["wq"], precision=_HP) + p["bq"]).reshape(B, L, D)
        k = (jnp.dot(x2, p["wk"], precision=_HP) + p["bk"]).reshape(B, L, D)
        v = (jnp.dot(x2, p["wv"], precision=_HP) + p["bv"]).reshape(B, L, D)

        heads = []
        for hh in range(n_head):
            sl = slice(hh * hd, (hh + 1) * hd)
            s = jnp.einsum("bld,bmd->blm", q[..., sl], k[..., sl], precision=_HP) * scale
            s = s + mask_bias[:, None, :]
            s = s - jnp.max(s, axis=-1, keepdims=True)
            e = jnp.exp(s)
            att = e / jnp.sum(e, axis=-1, keepdims=True)
            heads.append(jnp.einsum("blm,bmd->bld", att, v[..., sl], precision=_HP))
        a = jnp.concatenate(heads, axis=-1)
        a = (jnp.dot(a.reshape(B * L, D), p["wo"], precision=_HP) + p["bo"]).reshape(B, L, D)

        x_emb = _layernorm(x_emb + a)
        x2 = x_emb.reshape(B * L, D)
        h1 = _gelu(jnp.dot(x2, p["w1"], precision=_HP) + p["b1"])
        h2 = _gelu(jnp.dot(h1, p["w2"], precision=_HP) + p["b2"])
        h3 = (jnp.dot(h2, p["w3"], precision=_HP) + p["b3"]).reshape(B, L, D)
        x_emb = _layernorm(x_emb + h3, p["g2"], p["be2"])

    xn = _layernorm(x_emb, params["out_g"], params["out_be"])
    return (jnp.dot(xn.reshape(B * L, D), params["out_w"], precision=_HP)
            + params["out_b"]).reshape(B, L, params["out_w"].shape[1])


# ----------------------------------- main ----------------------------------------
if __name__ == "__main__":
    B, L, INPUT_DIM = 2, 8, 16
    N_EMB, N_HEAD, OUTPUT_DIM, N_BLOCK, N_SEQ_MAX = 32, 4, 16, 2, 50

    key = jax.random.PRNGKey(0)
    kx, kt, kp = jax.random.split(key, 3)
    x = jax.random.normal(kx, (B, L, INPUT_DIM), jnp.float32)
    time_step = jax.random.randint(kt, (B,), 0, 500)
    mask = jnp.ones((B, L), jnp.float32).at[1, 6:].set(0.0)  # 1 = valid, 0 = masked

    params = init_params(kp, INPUT_DIM, OUTPUT_DIM, N_EMB, N_BLOCK)

    fwd = jax.jit(seq_transformer_forward, static_argnames=("n_head", "n_seq_max"))
    out = jax.block_until_ready(
        fwd(params, x, time_step, mask, n_head=N_HEAD, n_seq_max=N_SEQ_MAX))

    ref = jax.block_until_ready(
        seq_transformer_reference(params, x, time_step, mask, N_HEAD, N_SEQ_MAX))

    assert out.shape == (B, L, OUTPUT_DIM)
    max_err = float(jnp.max(jnp.abs(out - ref)))
    # Tolerance covers approx-reciprocal softmax and possible f32-matmul multi-pass
    # precision differences between the MXU path and the XLA reference path; real
    # structural bugs produce errors orders of magnitude larger.
    assert bool(jnp.all(jnp.isfinite(out))) and max_err < 1e-2, f"max_err={max_err}"
    print("KERNEL_OK")
</pallas_src>

<mosaic_0001>
module attributes {stable_mosaic.version = 11 : i64} {
  func.func @fused_forward_kernel(%arg0: i32, %arg1: memref<1x8x16xf32, #tpu.memory_space<vmem>>, %arg2: memref<1x1x8xf32, #tpu.memory_space<vmem>>, %arg3: memref<16x32xf32, #tpu.memory_space<vmem>>, %arg4: memref<1x32xf32, #tpu.memory_space<vmem>>, %arg5: memref<1x2x32xf32, #tpu.memory_space<vmem>>, %arg6: memref<2x8x32xf32, #tpu.memory_space<vmem>>, %arg7: memref<2x32x96xf32, #tpu.memory_space<vmem>>, %arg8: memref<2x1x96xf32, #tpu.memory_space<vmem>>, %arg9: memref<2x4x8x32xf32, #tpu.memory_space<vmem>>, %arg10: memref<2x1x32xf32, #tpu.memory_space<vmem>>, %arg11: memref<2x32x128xf32, #tpu.memory_space<vmem>>, %arg12: memref<2x1x128xf32, #tpu.memory_space<vmem>>, %arg13: memref<2x128x64xf32, #tpu.memory_space<vmem>>, %arg14: memref<2x1x64xf32, #tpu.memory_space<vmem>>, %arg15: memref<2x64x32xf32, #tpu.memory_space<vmem>>, %arg16: memref<2x1x32xf32, #tpu.memory_space<vmem>>, %arg17: memref<2x2x32xf32, #tpu.memory_space<vmem>>, %arg18: memref<2x32xf32, #tpu.memory_space<vmem>>, %arg19: memref<32x16xf32, #tpu.memory_space<vmem>>, %arg20: memref<1x16xf32, #tpu.memory_space<vmem>>, %arg21: memref<1x8x16xf32, #tpu.memory_space<vmem>>) attributes {dimension_semantics = [#tpu.dimension_semantics<parallel>], iteration_bounds = array<i64: 2>, scalar_prefetch = 0 : i64, scratch_operands = 0 : i64, tpu.core_type = #tpu.core_type<tc>, window_params = [{transform_indices = @transform_0, window_bounds = array<i64: 1, 8, 16>}, {transform_indices = @transform_1, window_bounds = array<i64: 1, 1, 8>}, {pipeline_mode = #tpu.pipeline_mode<synchronous>, transform_indices = @transform_2, window_bounds = array<i64: 16, 32>}, {pipeline_mode = #tpu.pipeline_mode<synchronous>, transform_indices = @transform_3, window_bounds = array<i64: 1, 32>}, {transform_indices = @transform_4, window_bounds = array<i64: 1, 2, 32>}, {pipeline_mode = #tpu.pipeline_mode<synchronous>, transform_indices = @transform_5, window_bounds = array<i64: 2, 8, 32>}, {pipeline_mode = #tpu.pipeline_mode<synchronous>, transform_indices = @transform_6, window_bounds = array<i64: 2, 32, 96>}, {pipeline_mode = #tpu.pipeline_mode<synchronous>, transform_indices = @transform_7, window_bounds = array<i64: 2, 1, 96>}, {pipeline_mode = #tpu.pipeline_mode<synchronous>, transform_indices = @transform_8, window_bounds = array<i64: 2, 4, 8, 32>}, {pipeline_mode = #tpu.pipeline_mode<synchronous>, transform_indices = @transform_9, window_bounds = array<i64: 2, 1, 32>}, {pipeline_mode = #tpu.pipeline_mode<synchronous>, transform_indices = @transform_10, window_bounds = array<i64: 2, 32, 128>}, {pipeline_mode = #tpu.pipeline_mode<synchronous>, transform_indices = @transform_11, window_bounds = array<i64: 2, 1, 128>}, {pipeline_mode = #tpu.pipeline_mode<synchronous>, transform_indices = @transform_12, window_bounds = array<i64: 2, 128, 64>}, {pipeline_mode = #tpu.pipeline_mode<synchronous>, transform_indices = @transform_13, window_bounds = array<i64: 2, 1, 64>}, {pipeline_mode = #tpu.pipeline_mode<synchronous>, transform_indices = @transform_14, window_bounds = array<i64: 2, 64, 32>}, {pipeline_mode = #tpu.pipeline_mode<synchronous>, transform_indices = @transform_15, window_bounds = array<i64: 2, 1, 32>}, {pipeline_mode = #tpu.pipeline_mode<synchronous>, transform_indices = @transform_16, window_bounds = array<i64: 2, 2, 32>}, {pipeline_mode = #tpu.pipeline_mode<synchronous>, transform_indices = @transform_17, window_bounds = array<i64: 2, 32>}, {pipeline_mode = #tpu.pipeline_mode<synchronous>, transform_indices = @transform_18, window_bounds = array<i64: 32, 16>}, {pipeline_mode = #tpu.pipeline_mode<synchronous>, transform_indices = @transform_19, window_bounds = array<i64: 1, 16>}, {transform_indices = @transform_20, window_bounds = array<i64: 1, 8, 16>}]} {
    %c0 = arith.constant 0 : index
    %c0_0 = arith.constant 0 : index
    %c0_1 = arith.constant 0 : index
    %0 = vector.load %arg1[%c0, %c0_0, %c0_1] : memref<1x8x16xf32, #tpu.memory_space<vmem>>, vector<1x8x16xf32>
    %1 = vector.shape_cast %0 : vector<1x8x16xf32> to vector<8x16xf32>
    %c0_2 = arith.constant 0 : index
    %c0_3 = arith.constant 0 : index
    %2 = vector.load %arg3[%c0_2, %c0_3] : memref<16x32xf32, #tpu.memory_space<vmem>>, vector<16x32xf32>
    %cst = arith.constant dense<0.000000e+00> : vector<8x32xf32>
    %3 = tpu.matmul %1, %2, %cst {dimension_numbers = #tpu.dot_dimension_numbers<[1], [0], [0], [1], [0, 0, 1, 1], [], []>} : vector<8x16xf32>, vector<16x32xf32>, vector<8x32xf32> -> vector<8x32xf32>
    %c0_4 = arith.constant 0 : index
    %c0_5 = arith.constant 0 : index
    %4 = vector.load %arg4[%c0_4, %c0_5] : memref<1x32xf32, #tpu.memory_space<vmem>>, vector<1x32xf32>
    %5 = vector.broadcast %4 : vector<1x32xf32> to vector<8x32xf32>
    %6 = arith.addf %3, %5 : vector<8x32xf32>
    %c0_6 = arith.constant 0 : index
    %c0_7 = arith.constant 0 : index
    %c0_8 = arith.constant 0 : index
    %7 = vector.load %arg2[%c0_6, %c0_7, %c0_8] : memref<1x1x8xf32, #tpu.memory_space<vmem>>, vector<1x1x8xf32>
    %8 = vector.shape_cast %7 : vector<1x1x8xf32> to vector<1x8xf32>
    %c0_9 = arith.constant 0 : index
    %c0_10 = arith.constant 0 : index
    %c0_11 = arith.constant 0 : index
    %9 = vector.load %arg5[%c0_9, %c0_10, %c0_11] : memref<1x2x32xf32, #tpu.memory_space<vmem>>, vector<1x1x32xf32>
    %10 = vector.shape_cast %9 : vector<1x1x32xf32> to vector<1x32xf32>
    %11 = vector.broadcast %10 : vector<1x32xf32> to vector<8x32xf32>
    %12 = arith.addf %6, %11 : vector<8x32xf32>
    %c0_12 = arith.constant 0 : index
    %c0_13 = arith.constant 0 : index
    %c0_14 = arith.constant 0 : index
    %13 = vector.load %arg6[%c0_12, %c0_13, %c0_14] : memref<2x8x32xf32, #tpu.memory_space<vmem>>, vector<1x8x32xf32>
    %14 = vector.shape_cast %13 : vector<1x8x32xf32> to vector<8x32xf32>
    %15 = arith.addf %12, %14 : vector<8x32xf32>
    %c0_15 = arith.constant 0 : index
    %c0_16 = arith.constant 0 : index
    %c0_17 = arith.constant 0 : index
    %16 = vector.load %arg7[%c0_15, %c0_16, %c0_17] : memref<2x32x96xf32, #tpu.memory_space<vmem>>, vector<1x32x96xf32>
    %17 = vector.shape_cast %16 : vector<1x32x96xf32> to vector<32x96xf32>
    %cst_18 = arith.constant dense<0.000000e+00> : vector<8x96xf32>
    %18 = tpu.matmul %15, %17, %cst_18 {dimension_numbers = #tpu.dot_dimension_numbers<[1], [0], [0], [1], [0, 0, 1, 1], [], []>} : vector<8x32xf32>, vector<32x96xf32>, vector<8x96xf32> -> vector<8x96xf32>
    %c0_19 = arith.constant 0 : index
    %c0_20 = arith.constant 0 : index
    %c0_21 = arith.constant 0 : index
    %19 = vector.load %arg8[%c0_19, %c0_20, %c0_21] : memref<2x1x96xf32, #tpu.memory_space<vmem>>, vector<1x1x96xf32>
    %20 = vector.shape_cast %19 : vector<1x1x96xf32> to vector<1x96xf32>
    %21 = vector.broadcast %20 : vector<1x96xf32> to vector<8x96xf32>
    %22 = arith.addf %18, %21 : vector<8x96xf32>
    %23 = vector.extract_strided_slice %22 {offsets = [0, 0], sizes = [8, 8], strides = [1, 1]} : vector<8x96xf32> to vector<8x8xf32>
    %24 = vector.extract_strided_slice %22 {offsets = [0, 32], sizes = [8, 8], strides = [1, 1]} : vector<8x96xf32> to vector<8x8xf32>
    %25 = vector.extract_strided_slice %22 {offsets = [0, 64], sizes = [8, 8], strides = [1, 1]} : vector<8x96xf32> to vector<8x8xf32>
    %cst_22 = arith.constant dense<0.000000e+00> : vector<8x8xf32>
    %26 = tpu.matmul %23, %24, %cst_22 {dimension_numbers = #tpu.dot_dimension_numbers<[1], [1], [0], [0], [0, 0, 1, 0], [], []>} : vector<8x8xf32>, vector<8x8xf32>, vector<8x8xf32> -> vector<8x8xf32>
    %27 = vector.broadcast %8 : vector<1x8xf32> to vector<8x8xf32>
    %28 = arith.addf %26, %27 : vector<8x8xf32>
    %cst_23 = arith.constant dense<0xFF800000> : vector<8xf32>
    %29 = vector.multi_reduction <maximumf>, %28, %cst_23 [1] : vector<8x8xf32> to vector<8xf32>
    %30 = vector.shape_cast %29 : vector<8xf32> to vector<8x1xf32>
    %31 = vector.broadcast %30 : vector<8x1xf32> to vector<8x8xf32>
    %32 = arith.subf %28, %31 : vector<8x8xf32>
    %33 = math.exp %32 : vector<8x8xf32>
    %cst_24 = arith.constant dense<0.000000e+00> : vector<8xf32>
    %34 = vector.multi_reduction <add>, %33, %cst_24 [1] : vector<8x8xf32> to vector<8xf32>
    %35 = vector.shape_cast %34 : vector<8xf32> to vector<8x1xf32>
    %36 = tpu.reciprocal %35 {approx = true} : vector<8x1xf32> -> vector<8x1xf32>
    %37 = vector.broadcast %36 : vector<8x1xf32> to vector<8x8xf32>
    %38 = arith.mulf %33, %37 : vector<8x8xf32>
    %cst_25 = arith.constant dense<0.000000e+00> : vector<8x8xf32>
    %39 = tpu.matmul %38, %25, %cst_25 {dimension_numbers = #tpu.dot_dimension_numbers<[1], [0], [0], [1], [0, 0, 1, 1], [], []>} : vector<8x8xf32>, vector<8x8xf32>, vector<8x8xf32> -> vector<8x8xf32>
    %c0_26 = arith.constant 0 : index
    %c0_27 = arith.constant 0 : index
    %c0_28 = arith.constant 0 : index
    %c0_29 = arith.constant 0 : index
    %40 = vector.load %arg9[%c0_26, %c0_27, %c0_28, %c0_29] : memref<2x4x8x32xf32, #tpu.memory_space<vmem>>, vector<1x1x8x32xf32>
    %41 = vector.shape_cast %40 : vector<1x1x8x32xf32> to vector<8x32xf32>
    %cst_30 = arith.constant dense<0.000000e+00> : vector<8x32xf32>
    %42 = tpu.matmul %39, %41, %cst_30 {dimension_numbers = #tpu.dot_dimension_numbers<[1], [0], [0], [1], [0, 0, 1, 1], [], []>} : vector<8x8xf32>, vector<8x32xf32>, vector<8x32xf32> -> vector<8x32xf32>
    %43 = vector.extract_strided_slice %22 {offsets = [0, 8], sizes = [8, 8], strides = [1, 1]} : vector<8x96xf32> to vector<8x8xf32>
    %44 = vector.extract_strided_slice %22 {offsets = [0, 40], sizes = [8, 8], strides = [1, 1]} : vector<8x96xf32> to vector<8x8xf32>
    %45 = vector.extract_strided_slice %22 {offsets = [0, 72], sizes = [8, 8], strides = [1, 1]} : vector<8x96xf32> to vector<8x8xf32>
    %cst_31 = arith.constant dense<0.000000e+00> : vector<8x8xf32>
    %46 = tpu.matmul %43, %44, %cst_31 {dimension_numbers = #tpu.dot_dimension_numbers<[1], [1], [0], [0], [0, 0, 1, 0], [], []>} : vector<8x8xf32>, vector<8x8xf32>, vector<8x8xf32> -> vector<8x8xf32>
    %47 = vector.broadcast %8 : vector<1x8xf32> to vector<8x8xf32>
    %48 = arith.addf %46, %47 : vector<8x8xf32>
    %cst_32 = arith.constant dense<0xFF800000> : vector<8xf32>
    %49 = vector.multi_reduction <maximumf>, %48, %cst_32 [1] : vector<8x8xf32> to vector<8xf32>
    %50 = vector.shape_cast %49 : vector<8xf32> to vector<8x1xf32>
    %51 = vector.broadcast %50 : vector<8x1xf32> to vector<8x8xf32>
    %52 = arith.subf %48, %51 : vector<8x8xf32>
    %53 = math.exp %52 : vector<8x8xf32>
    %cst_33 = arith.constant dense<0.000000e+00> : vector<8xf32>
    %54 = vector.multi_reduction <add>, %53, %cst_33 [1] : vector<8x8xf32> to vector<8xf32>
    %55 = vector.shape_cast %54 : vector<8xf32> to vector<8x1xf32>
    %56 = tpu.reciprocal %55 {approx = true} : vector<8x1xf32> -> vector<8x1xf32>
    %57 = vector.broadcast %56 : vector<8x1xf32> to vector<8x8xf32>
    %58 = arith.mulf %53, %57 : vector<8x8xf32>
    %cst_34 = arith.constant dense<0.000000e+00> : vector<8x8xf32>
    %59 = tpu.matmul %58, %45, %cst_34 {dimension_numbers = #tpu.dot_dimension_numbers<[1], [0], [0], [1], [0, 0, 1, 1], [], []>} : vector<8x8xf32>, vector<8x8xf32>, vector<8x8xf32> -> vector<8x8xf32>
    %c0_35 = arith.constant 0 : index
    %c1 = arith.constant 1 : index
    %c0_36 = arith.constant 0 : index
    %c0_37 = arith.constant 0 : index
    %60 = vector.load %arg9[%c0_35, %c1, %c0_36, %c0_37] : memref<2x4x8x32xf32, #tpu.memory_space<vmem>>, vector<1x1x8x32xf32>
    %61 = vector.shape_cast %60 : vector<1x1x8x32xf32> to vector<8x32xf32>
    %cst_38 = arith.constant dense<0.000000e+00> : vector<8x32xf32>
    %62 = tpu.matmul %59, %61, %cst_38 {dimension_numbers = #tpu.dot_dimension_numbers<[1], [0], [0], [1], [0, 0, 1, 1], [], []>} : vector<8x8xf32>, vector<8x32xf32>, vector<8x32xf32> -> vector<8x32xf32>
    %63 = arith.addf %42, %62 : vector<8x32xf32>
    %64 = vector.extract_strided_slice %22 {offsets = [0, 16], sizes = [8, 8], strides = [1, 1]} : vector<8x96xf32> to vector<8x8xf32>
    %65 = vector.extract_strided_slice %22 {offsets = [0, 48], sizes = [8, 8], strides = [1, 1]} : vector<8x96xf32> to vector<8x8xf32>
    %66 = vector.extract_strided_slice %22 {offsets = [0, 80], sizes = [8, 8], strides = [1, 1]} : vector<8x96xf32> to vector<8x8xf32>
    %cst_39 = arith.constant dense<0.000000e+00> : vector<8x8xf32>
    %67 = tpu.matmul %64, %65, %cst_39 {dimension_numbers = #tpu.dot_dimension_numbers<[1], [1], [0], [0], [0, 0, 1, 0], [], []>} : vector<8x8xf32>, vector<8x8xf32>, vector<8x8xf32> -> vector<8x8xf32>
    %68 = vector.broadcast %8 : vector<1x8xf32> to vector<8x8xf32>
    %69 = arith.addf %67, %68 : vector<8x8xf32>
    %cst_40 = arith.constant dense<0xFF800000> : vector<8xf32>
    %70 = vector.multi_reduction <maximumf>, %69, %cst_40 [1] : vector<8x8xf32> to vector<8xf32>
    %71 = vector.shape_cast %70 : vector<8xf32> to vector<8x1xf32>
    %72 = vector.broadcast %71 : vector<8x1xf32> to vector<8x8xf32>
    %73 = arith.subf %69, %72 : vector<8x8xf32>
    %74 = math.exp %73 : vector<8x8xf32>
    %cst_41 = arith.constant dense<0.000000e+00> : vector<8xf32>
    %75 = vector.multi_reduction <add>, %74, %cst_41 [1] : vector<8x8xf32> to vector<8xf32>
    %76 = vector.shape_cast %75 : vector<8xf32> to vector<8x1xf32>
    %77 = tpu.reciprocal %76 {approx = true} : vector<8x1xf32> -> vector<8x1xf32>
    %78 = vector.broadcast %77 : vector<8x1xf32> to vector<8x8xf32>
    %79 = arith.mulf %74, %78 : vector<8x8xf32>
    %cst_42 = arith.constant dense<0.000000e+00> : vector<8x8xf32>
    %80 = tpu.matmul %79, %66, %cst_42 {dimension_numbers = #tpu.dot_dimension_numbers<[1], [0], [0], [1], [0, 0, 1, 1], [], []>} : vector<8x8xf32>, vector<8x8xf32>, vector<8x8xf32> -> vector<8x8xf32>
    %c0_43 = arith.constant 0 : index
    %c2 = arith.constant 2 : index
    %c0_44 = arith.constant 0 : index
    %c0_45 = arith.constant 0 : index
    %81 = vector.load %arg9[%c0_43, %c2, %c0_44, %c0_45] : memref<2x4x8x32xf32, #tpu.memory_space<vmem>>, vector<1x1x8x32xf32>
    %82 = vector.shape_cast %81 : vector<1x1x8x32xf32> to vector<8x32xf32>
    %cst_46 = arith.constant dense<0.000000e+00> : vector<8x32xf32>
    %83 = tpu.matmul %80, %82, %cst_46 {dimension_numbers = #tpu.dot_dimension_numbers<[1], [0], [0], [1], [0, 0, 1, 1], [], []>} : vector<8x8xf32>, vector<8x32xf32>, vector<8x32xf32> -> vector<8x32xf32>
    %84 = arith.addf %63, %83 : vector<8x32xf32>
    %85 = vector.extract_strided_slice %22 {offsets = [0, 24], sizes = [8, 8], strides = [1, 1]} : vector<8x96xf32> to vector<8x8xf32>
    %86 = vector.extract_strided_slice %22 {offsets = [0, 56], sizes = [8, 8], strides = [1, 1]} : vector<8x96xf32> to vector<8x8xf32>
    %87 = vector.extract_strided_slice %22 {offsets = [0, 88], sizes = [8, 8], strides = [1, 1]} : vector<8x96xf32> to vector<8x8xf32>
    %cst_47 = arith.constant dense<0.000000e+00> : vector<8x8xf32>
    %88 = tpu.matmul %85, %86, %cst_47 {dimension_numbers = #tpu.dot_dimension_numbers<[1], [1], [0], [0], [0, 0, 1, 0], [], []>} : vector<8x8xf32>, vector<8x8xf32>, vector<8x8xf32> -> vector<8x8xf32>
    %89 = vector.broadcast %8 : vector<1x8xf32> to vector<8x8xf32>
    %90 = arith.addf %88, %89 : vector<8x8xf32>
    %cst_48 = arith.constant dense<0xFF800000> : vector<8xf32>
    %91 = vector.multi_reduction <maximumf>, %90, %cst_48 [1] : vector<8x8xf32> to vector<8xf32>
    %92 = vector.shape_cast %91 : vector<8xf32> to vector<8x1xf32>
    %93 = vector.broadcast %92 : vector<8x1xf32> to vector<8x8xf32>
    %94 = arith.subf %90, %93 : vector<8x8xf32>
    %95 = math.exp %94 : vector<8x8xf32>
    %cst_49 = arith.constant dense<0.000000e+00> : vector<8xf32>
    %96 = vector.multi_reduction <add>, %95, %cst_49 [1] : vector<8x8xf32> to vector<8xf32>
    %97 = vector.shape_cast %96 : vector<8xf32> to vector<8x1xf32>
    %98 = tpu.reciprocal %97 {approx = true} : vector<8x1xf32> -> vector<8x1xf32>
    %99 = vector.broadcast %98 : vector<8x1xf32> to vector<8x8xf32>
    %100 = arith.mulf %95, %99 : vector<8x8xf32>
    %cst_50 = arith.constant dense<0.000000e+00> : vector<8x8xf32>
    %101 = tpu.matmul %100, %87, %cst_50 {dimension_numbers = #tpu.dot_dimension_numbers<[1], [0], [0], [1], [0, 0, 1, 1], [], []>} : vector<8x8xf32>, vector<8x8xf32>, vector<8x8xf32> -> vector<8x8xf32>
    %c0_51 = arith.constant 0 : index
    %c3 = arith.constant 3 : index
    %c0_52 = arith.constant 0 : index
    %c0_53 = arith.constant 0 : index
    %102 = vector.load %arg9[%c0_51, %c3, %c0_52, %c0_53] : memref<2x4x8x32xf32, #tpu.memory_space<vmem>>, vector<1x1x8x32xf32>
    %103 = vector.shape_cast %102 : vector<1x1x8x32xf32> to vector<8x32xf32>
    %cst_54 = arith.constant dense<0.000000e+00> : vector<8x32xf32>
    %104 = tpu.matmul %101, %103, %cst_54 {dimension_numbers = #tpu.dot_dimension_numbers<[1], [0], [0], [1], [0, 0, 1, 1], [], []>} : vector<8x8xf32>, vector<8x32xf32>, vector<8x32xf32> -> vector<8x32xf32>
    %105 = arith.addf %84, %104 : vector<8x32xf32>
    %c0_55 = arith.constant 0 : index
    %c0_56 = arith.constant 0 : index
    %c0_57 = arith.constant 0 : index
    %106 = vector.load %arg10[%c0_55, %c0_56, %c0_57] : memref<2x1x32xf32, #tpu.memory_space<vmem>>, vector<1x1x32xf32>
    %107 = vector.shape_cast %106 : vector<1x1x32xf32> to vector<1x32xf32>
    %108 = vector.broadcast %107 : vector<1x32xf32> to vector<8x32xf32>
    %109 = arith.addf %105, %108 : vector<8x32xf32>
    %110 = arith.addf %15, %109 : vector<8x32xf32>
    %cst_58 = arith.constant dense<0.000000e+00> : vector<8xf32>
    %111 = vector.multi_reduction <add>, %110, %cst_58 [1] : vector<8x32xf32> to vector<8xf32>
    %112 = vector.shape_cast %111 : vector<8xf32> to vector<8x1xf32>
    %cst_59 = arith.constant 3.200000e+01 : f32
    %113 = vector.broadcast %cst_59 : f32 to vector<8x1xf32>
    %114 = arith.divf %112, %113 : vector<8x1xf32>
    %115 = vector.broadcast %114 : vector<8x1xf32> to vector<8x32xf32>
    %116 = arith.subf %110, %115 : vector<8x32xf32>
    %117 = arith.mulf %116, %116 : vector<8x32xf32>
    %cst_60 = arith.constant dense<0.000000e+00> : vector<8xf32>
    %118 = vector.multi_reduction <add>, %117, %cst_60 [1] : vector<8x32xf32> to vector<8xf32>
    %119 = vector.shape_cast %118 : vector<8xf32> to vector<8x1xf32>
    %cst_61 = arith.constant 3.200000e+01 : f32
    %120 = vector.broadcast %cst_61 : f32 to vector<8x1xf32>
    %121 = arith.divf %119, %120 : vector<8x1xf32>
    %122 = vector.broadcast %114 : vector<8x1xf32> to vector<8x32xf32>
    %123 = arith.subf %110, %122 : vector<8x32xf32>
    %cst_62 = arith.constant 9.99999974E-6 : f32
    %124 = vector.broadcast %cst_62 : f32 to vector<8x1xf32>
    %125 = arith.addf %121, %124 : vector<8x1xf32>
    %126 = math.rsqrt %125 : vector<8x1xf32>
    %127 = vector.broadcast %126 : vector<8x1xf32> to vector<8x32xf32>
    %128 = arith.mulf %123, %127 : vector<8x32xf32>
    %c0_63 = arith.constant 0 : index
    %c0_64 = arith.constant 0 : index
    %c0_65 = arith.constant 0 : index
    %129 = vector.load %arg11[%c0_63, %c0_64, %c0_65] : memref<2x32x128xf32, #tpu.memory_space<vmem>>, vector<1x32x128xf32>
    %130 = vector.shape_cast %129 : vector<1x32x128xf32> to vector<32x128xf32>
    %cst_66 = arith.constant dense<0.000000e+00> : vector<8x128xf32>
    %131 = tpu.matmul %128, %130, %cst_66 {dimension_numbers = #tpu.dot_dimension_numbers<[1], [0], [0], [1], [0, 0, 1, 1], [], []>} : vector<8x32xf32>, vector<32x128xf32>, vector<8x128xf32> -> vector<8x128xf32>
    %c0_67 = arith.constant 0 : index
    %c0_68 = arith.constant 0 : index
    %c0_69 = arith.constant 0 : index
    %132 = vector.load %arg12[%c0_67, %c0_68, %c0_69] : memref<2x1x128xf32, #tpu.memory_space<vmem>>, vector<1x1x128xf32>
    %133 = vector.shape_cast %132 : vector<1x1x128xf32> to vector<1x128xf32>
    %134 = vector.broadcast %133 : vector<1x128xf32> to vector<8x128xf32>
    %135 = arith.addf %131, %134 : vector<8x128xf32>
    %cst_70 = arith.constant 5.000000e-01 : f32
    %136 = vector.broadcast %cst_70 : f32 to vector<8x128xf32>
    %137 = arith.mulf %136, %135 : vector<8x128xf32>
    %cst_71 = arith.constant 4.471500e-02 : f32
    %138 = vector.broadcast %cst_71 : f32 to vector<8x128xf32>
    %139 = arith.mulf %138, %135 : vector<8x128xf32>
    %140 = arith.mulf %139, %135 : vector<8x128xf32>
    %141 = arith.mulf %140, %135 : vector<8x128xf32>
    %142 = arith.addf %135, %141 : vector<8x128xf32>
    %cst_72 = arith.constant 0.797884583 : f32
    %143 = vector.broadcast %cst_72 : f32 to vector<8x128xf32>
    %144 = arith.mulf %143, %142 : vector<8x128xf32>
    %145 = math.tanh %144 : vector<8x128xf32>
    %cst_73 = arith.constant 1.000000e+00 : f32
    %146 = vector.broadcast %cst_73 : f32 to vector<8x128xf32>
    %147 = arith.addf %146, %145 : vector<8x128xf32>
    %148 = arith.mulf %137, %147 : vector<8x128xf32>
    %c0_74 = arith.constant 0 : index
    %c0_75 = arith.constant 0 : index
    %c0_76 = arith.constant 0 : index
    %149 = vector.load %arg13[%c0_74, %c0_75, %c0_76] : memref<2x128x64xf32, #tpu.memory_space<vmem>>, vector<1x128x64xf32>
    %150 = vector.shape_cast %149 : vector<1x128x64xf32> to vector<128x64xf32>
    %cst_77 = arith.constant dense<0.000000e+00> : vector<8x64xf32>
    %151 = tpu.matmul %148, %150, %cst_77 {dimension_numbers = #tpu.dot_dimension_numbers<[1], [0], [0], [1], [0, 0, 1, 1], [], []>} : vector<8x128xf32>, vector<128x64xf32>, vector<8x64xf32> -> vector<8x64xf32>
    %c0_78 = arith.constant 0 : index
    %c0_79 = arith.constant 0 : index
    %c0_80 = arith.constant 0 : index
    %152 = vector.load %arg14[%c0_78, %c0_79, %c0_80] : memref<2x1x64xf32, #tpu.memory_space<vmem>>, vector<1x1x64xf32>
    %153 = vector.shape_cast %152 : vector<1x1x64xf32> to vector<1x64xf32>
    %154 = vector.broadcast %153 : vector<1x64xf32> to vector<8x64xf32>
    %155 = arith.addf %151, %154 : vector<8x64xf32>
    %cst_81 = arith.constant 5.000000e-01 : f32
    %156 = vector.broadcast %cst_81 : f32 to vector<8x64xf32>
    %157 = arith.mulf %156, %155 : vector<8x64xf32>
    %cst_82 = arith.constant 4.471500e-02 : f32
    %158 = vector.broadcast %cst_82 : f32 to vector<8x64xf32>
    %159 = arith.mulf %158, %155 : vector<8x64xf32>
    %160 = arith.mulf %159, %155 : vector<8x64xf32>
    %161 = arith.mulf %160, %155 : vector<8x64xf32>
    %162 = arith.addf %155, %161 : vector<8x64xf32>
    %cst_83 = arith.constant 0.797884583 : f32
    %163 = vector.broadcast %cst_83 : f32 to vector<8x64xf32>
    %164 = arith.mulf %163, %162 : vector<8x64xf32>
    %165 = math.tanh %164 : vector<8x64xf32>
    %cst_84 = arith.constant 1.000000e+00 : f32
    %166 = vector.broadcast %cst_84 : f32 to vector<8x64xf32>
    %167 = arith.addf %166, %165 : vector<8x64xf32>
    %168 = arith.mulf %157, %167 : vector<8x64xf32>
    %c0_85 = arith.constant 0 : index
    %c0_86 = arith.constant 0 : index
    %c0_87 = arith.constant 0 : index
    %169 = vector.load %arg15[%c0_85, %c0_86, %c0_87] : memref<2x64x32xf32, #tpu.memory_space<vmem>>, vector<1x64x32xf32>
    %170 = vector.shape_cast %169 : vector<1x64x32xf32> to vector<64x32xf32>
    %cst_88 = arith.constant dense<0.000000e+00> : vector<8x32xf32>
    %171 = tpu.matmul %168, %170, %cst_88 {dimension_numbers = #tpu.dot_dimension_numbers<[1], [0], [0], [1], [0, 0, 1, 1], [], []>} : vector<8x64xf32>, vector<64x32xf32>, vector<8x32xf32> -> vector<8x32xf32>
    %c0_89 = arith.constant 0 : index
    %c0_90 = arith.constant 0 : index
    %c0_91 = arith.constant 0 : index
    %172 = vector.load %arg16[%c0_89, %c0_90, %c0_91] : memref<2x1x32xf32, #tpu.memory_space<vmem>>, vector<1x1x32xf32>
    %173 = vector.shape_cast %172 : vector<1x1x32xf32> to vector<1x32xf32>
    %174 = vector.broadcast %173 : vector<1x32xf32> to vector<8x32xf32>
    %175 = arith.addf %171, %174 : vector<8x32xf32>
    %c0_92 = arith.constant 0 : index
    %c0_93 = arith.constant 0 : index
    %c0_94 = arith.constant 0 : index
    %176 = vector.load %arg17[%c0_92, %c0_93, %c0_94] : memref<2x2x32xf32, #tpu.memory_space<vmem>>, vector<1x2x32xf32>
    %177 = vector.shape_cast %176 : vector<1x2x32xf32> to vector<2x32xf32>
    %178 = arith.addf %128, %175 : vector<8x32xf32>
    %179 = vector.extract_strided_slice %177 {offsets = [0, 0], sizes = [1, 32], strides = [1, 1]} : vector<2x32xf32> to vector<1x32xf32>
    %180 = vector.extract_strided_slice %177 {offsets = [1, 0], sizes = [1, 32], strides = [1, 1]} : vector<2x32xf32> to vector<1x32xf32>
    %cst_95 = arith.constant dense<0.000000e+00> : vector<8xf32>
    %181 = vector.multi_reduction <add>, %178, %cst_95 [1] : vector<8x32xf32> to vector<8xf32>
    %182 = vector.shape_cast %181 : vector<8xf32> to vector<8x1xf32>
    %cst_96 = arith.constant 3.200000e+01 : f32
    %183 = vector.broadcast %cst_96 : f32 to vector<8x1xf32>
    %184 = arith.divf %182, %183 : vector<8x1xf32>
    %185 = vector.broadcast %184 : vector<8x1xf32> to vector<8x32xf32>
    %186 = arith.subf %178, %185 : vector<8x32xf32>
    %187 = arith.mulf %186, %186 : vector<8x32xf32>
    %cst_97 = arith.constant dense<0.000000e+00> : vector<8xf32>
    %188 = vector.multi_reduction <add>, %187, %cst_97 [1] : vector<8x32xf32> to vector<8xf32>
    %189 = vector.shape_cast %188 : vector<8xf32> to vector<8x1xf32>
    %cst_98 = arith.constant 3.200000e+01 : f32
    %190 = vector.broadcast %cst_98 : f32 to vector<8x1xf32>
    %191 = arith.divf %189, %190 : vector<8x1xf32>
    %192 = vector.broadcast %184 : vector<8x1xf32> to vector<8x32xf32>
    %193 = arith.subf %178, %192 : vector<8x32xf32>
    %cst_99 = arith.constant 9.99999974E-6 : f32
    %194 = vector.broadcast %cst_99 : f32 to vector<8x1xf32>
    %195 = arith.addf %191, %194 : vector<8x1xf32>
    %196 = math.rsqrt %195 : vector<8x1xf32>
    %197 = vector.broadcast %196 : vector<8x1xf32> to vector<8x32xf32>
    %198 = arith.mulf %193, %197 : vector<8x32xf32>
    %199 = vector.broadcast %179 : vector<1x32xf32> to vector<8x32xf32>
    %200 = arith.mulf %198, %199 : vector<8x32xf32>
    %201 = vector.broadcast %180 : vector<1x32xf32> to vector<8x32xf32>
    %202 = arith.addf %200, %201 : vector<8x32xf32>
    %c0_100 = arith.constant 0 : index
    %c1_101 = arith.constant 1 : index
    %c0_102 = arith.constant 0 : index
    %203 = vector.load %arg5[%c0_100, %c1_101, %c0_102] : memref<1x2x32xf32, #tpu.memory_space<vmem>>, vector<1x1x32xf32>
    %204 = vector.shape_cast %203 : vector<1x1x32xf32> to vector<1x32xf32>
    %205 = vector.broadcast %204 : vector<1x32xf32> to vector<8x32xf32>
    %206 = arith.addf %202, %205 : vector<8x32xf32>
    %c1_103 = arith.constant 1 : index
    %c0_104 = arith.constant 0 : index
    %c0_105 = arith.constant 0 : index
    %207 = vector.load %arg6[%c1_103, %c0_104, %c0_105] : memref<2x8x32xf32, #tpu.memory_space<vmem>>, vector<1x8x32xf32>
    %208 = vector.shape_cast %207 : vector<1x8x32xf32> to vector<8x32xf32>
    %209 = arith.addf %206, %208 : vector<8x32xf32>
    %c1_106 = arith.constant 1 : index
    %c0_107 = arith.constant 0 : index
    %c0_108 = arith.constant 0 : index
    %210 = vector.load %arg7[%c1_106, %c0_107, %c0_108] : memref<2x32x96xf32, #tpu.memory_space<vmem>>, vector<1x32x96xf32>
    %211 = vector.shape_cast %210 : vector<1x32x96xf32> to vector<32x96xf32>
    %cst_109 = arith.constant dense<0.000000e+00> : vector<8x96xf32>
    %212 = tpu.matmul %209, %211, %cst_109 {dimension_numbers = #tpu.dot_dimension_numbers<[1], [0], [0], [1], [0, 0, 1, 1], [], []>} : vector<8x32xf32>, vector<32x96xf32>, vector<8x96xf32> -> vector<8x96xf32>
    %c1_110 = arith.constant 1 : index
    %c0_111 = arith.constant 0 : index
    %c0_112 = arith.constant 0 : index
    %213 = vector.load %arg8[%c1_110, %c0_111, %c0_112] : memref<2x1x96xf32, #tpu.memory_space<vmem>>, vector<1x1x96xf32>
    %214 = vector.shape_cast %213 : vector<1x1x96xf32> to vector<1x96xf32>
    %215 = vector.broadcast %214 : vector<1x96xf32> to vector<8x96xf32>
    %216 = arith.addf %212, %215 : vector<8x96xf32>
    %217 = vector.extract_strided_slice %216 {offsets = [0, 0], sizes = [8, 8], strides = [1, 1]} : vector<8x96xf32> to vector<8x8xf32>
    %218 = vector.extract_strided_slice %216 {offsets = [0, 32], sizes = [8, 8], strides = [1, 1]} : vector<8x96xf32> to vector<8x8xf32>
    %219 = vector.extract_strided_slice %216 {offsets = [0, 64], sizes = [8, 8], strides = [1, 1]} : vector<8x96xf32> to vector<8x8xf32>
    %cst_113 = arith.constant dense<0.000000e+00> : vector<8x8xf32>
    %220 = tpu.matmul %217, %218, %cst_113 {dimension_numbers = #tpu.dot_dimension_numbers<[1], [1], [0], [0], [0, 0, 1, 0], [], []>} : vector<8x8xf32>, vector<8x8xf32>, vector<8x8xf32> -> vector<8x8xf32>
    %221 = vector.broadcast %8 : vector<1x8xf32> to vector<8x8xf32>
    %222 = arith.addf %220, %221 : vector<8x8xf32>
    %cst_114 = arith.constant dense<0xFF800000> : vector<8xf32>
    %223 = vector.multi_reduction <maximumf>, %222, %cst_114 [1] : vector<8x8xf32> to vector<8xf32>
    %224 = vector.shape_cast %223 : vector<8xf32> to vector<8x1xf32>
    %225 = vector.broadcast %224 : vector<8x1xf32> to vector<8x8xf32>
    %226 = arith.subf %222, %225 : vector<8x8xf32>
    %227 = math.exp %226 : vector<8x8xf32>
    %cst_115 = arith.constant dense<0.000000e+00> : vector<8xf32>
    %228 = vector.multi_reduction <add>, %227, %cst_115 [1] : vector<8x8xf32> to vector<8xf32>
    %229 = vector.shape_cast %228 : vector<8xf32> to vector<8x1xf32>
    %230 = tpu.reciprocal %229 {approx = true} : vector<8x1xf32> -> vector<8x1xf32>
    %231 = vector.broadcast %230 : vector<8x1xf32> to vector<8x8xf32>
    %232 = arith.mulf %227, %231 : vector<8x8xf32>
    %cst_116 = arith.constant dense<0.000000e+00> : vector<8x8xf32>
    %233 = tpu.matmul %232, %219, %cst_116 {dimension_numbers = #tpu.dot_dimension_numbers<[1], [0], [0], [1], [0, 0, 1, 1], [], []>} : vector<8x8xf32>, vector<8x8xf32>, vector<8x8xf32> -> vector<8x8xf32>
    %c1_117 = arith.constant 1 : index
    %c0_118 = arith.constant 0 : index
    %c0_119 = arith.constant 0 : index
    %c0_120 = arith.constant 0 : index
    %234 = vector.load %arg9[%c1_117, %c0_118, %c0_119, %c0_120] : memref<2x4x8x32xf32, #tpu.memory_space<vmem>>, vector<1x1x8x32xf32>
    %235 = vector.shape_cast %234 : vector<1x1x8x32xf32> to vector<8x32xf32>
    %cst_121 = arith.constant dense<0.000000e+00> : vector<8x32xf32>
    %236 = tpu.matmul %233, %235, %cst_121 {dimension_numbers = #tpu.dot_dimension_numbers<[1], [0], [0], [1], [0, 0, 1, 1], [], []>} : vector<8x8xf32>, vector<8x32xf32>, vector<8x32xf32> -> vector<8x32xf32>
    %237 = vector.extract_strided_slice %216 {offsets = [0, 8], sizes = [8, 8], strides = [1, 1]} : vector<8x96xf32> to vector<8x8xf32>
    %238 = vector.extract_strided_slice %216 {offsets = [0, 40], sizes = [8, 8], strides = [1, 1]} : vector<8x96xf32> to vector<8x8xf32>
    %239 = vector.extract_strided_slice %216 {offsets = [0, 72], sizes = [8, 8], strides = [1, 1]} : vector<8x96xf32> to vector<8x8xf32>
    %cst_122 = arith.constant dense<0.000000e+00> : vector<8x8xf32>
    %240 = tpu.matmul %237, %238, %cst_122 {dimension_numbers = #tpu.dot_dimension_numbers<[1], [1], [0], [0], [0, 0, 1, 0], [], []>} : vector<8x8xf32>, vector<8x8xf32>, vector<8x8xf32> -> vector<8x8xf32>
    %241 = vector.broadcast %8 : vector<1x8xf32> to vector<8x8xf32>
    %242 = arith.addf %240, %241 : vector<8x8xf32>
    %cst_123 = arith.constant dense<0xFF800000> : vector<8xf32>
    %243 = vector.multi_reduction <maximumf>, %242, %cst_123 [1] : vector<8x8xf32> to vector<8xf32>
    %244 = vector.shape_cast %243 : vector<8xf32> to vector<8x1xf32>
    %245 = vector.broadcast %244 : vector<8x1xf32> to vector<8x8xf32>
    %246 = arith.subf %242, %245 : vector<8x8xf32>
    %247 = math.exp %246 : vector<8x8xf32>
    %cst_124 = arith.constant dense<0.000000e+00> : vector<8xf32>
    %248 = vector.multi_reduction <add>, %247, %cst_124 [1] : vector<8x8xf32> to vector<8xf32>
    %249 = vector.shape_cast %248 : vector<8xf32> to vector<8x1xf32>
    %250 = tpu.reciprocal %249 {approx = true} : vector<8x1xf32> -> vector<8x1xf32>
    %251 = vector.broadcast %250 : vector<8x1xf32> to vector<8x8xf32>
    %252 = arith.mulf %247, %251 : vector<8x8xf32>
    %cst_125 = arith.constant dense<0.000000e+00> : vector<8x8xf32>
    %253 = tpu.matmul %252, %239, %cst_125 {dimension_numbers = #tpu.dot_dimension_numbers<[1], [0], [0], [1], [0, 0, 1, 1], [], []>} : vector<8x8xf32>, vector<8x8xf32>, vector<8x8xf32> -> vector<8x8xf32>
    %c1_126 = arith.constant 1 : index
    %c1_127 = arith.constant 1 : index
    %c0_128 = arith.constant 0 : index
    %c0_129 = arith.constant 0 : index
    %254 = vector.load %arg9[%c1_126, %c1_127, %c0_128, %c0_129] : memref<2x4x8x32xf32, #tpu.memory_space<vmem>>, vector<1x1x8x32xf32>
    %255 = vector.shape_cast %254 : vector<1x1x8x32xf32> to vector<8x32xf32>
    %cst_130 = arith.constant dense<0.000000e+00> : vector<8x32xf32>
    %256 = tpu.matmul %253, %255, %cst_130 {dimension_numbers = #tpu.dot_dimension_numbers<[1], [0], [0], [1], [0, 0, 1, 1], [], []>} : vector<8x8xf32>, vector<8x32xf32>, vector<8x32xf32> -> vector<8x32xf32>
    %257 = arith.addf %236, %256 : vector<8x32xf32>
    %258 = vector.extract_strided_slice %216 {offsets = [0, 16], sizes = [8, 8], strides = [1, 1]} : vector<8x96xf32> to vector<8x8xf32>
    %259 = vector.extract_strided_slice %216 {offsets = [0, 48], sizes = [8, 8], strides = [1, 1]} : vector<8x96xf32> to vector<8x8xf32>
    %260 = vector.extract_strided_slice %216 {offsets = [0, 80], sizes = [8, 8], strides = [1, 1]} : vector<8x96xf32> to vector<8x8xf32>
    %cst_131 = arith.constant dense<0.000000e+00> : vector<8x8xf32>
    %261 = tpu.matmul %258, %259, %cst_131 {dimension_numbers = #tpu.dot_dimension_numbers<[1], [1], [0], [0], [0, 0, 1, 0], [], []>} : vector<8x8xf32>, vector<8x8xf32>, vector<8x8xf32> -> vector<8x8xf32>
    %262 = vector.broadcast %8 : vector<1x8xf32> to vector<8x8xf32>
    %263 = arith.addf %261, %262 : vector<8x8xf32>
    %cst_132 = arith.constant dense<0xFF800000> : vector<8xf32>
    %264 = vector.multi_reduction <maximumf>, %263, %cst_132 [1] : vector<8x8xf32> to vector<8xf32>
    %265 = vector.shape_cast %264 : vector<8xf32> to vector<8x1xf32>
    %266 = vector.broadcast %265 : vector<8x1xf32> to vector<8x8xf32>
    %267 = arith.subf %263, %266 : vector<8x8xf32>
    %268 = math.exp %267 : vector<8x8xf32>
    %cst_133 = arith.constant dense<0.000000e+00> : vector<8xf32>
    %269 = vector.multi_reduction <add>, %268, %cst_133 [1] : vector<8x8xf32> to vector<8xf32>
    %270 = vector.shape_cast %269 : vector<8xf32> to vector<8x1xf32>
    %271 = tpu.reciprocal %270 {approx = true} : vector<8x1xf32> -> vector<8x1xf32>
    %272 = vector.broadcast %271 : vector<8x1xf32> to vector<8x8xf32>
    %273 = arith.mulf %268, %272 : vector<8x8xf32>
    %cst_134 = arith.constant dense<0.000000e+00> : vector<8x8xf32>
    %274 = tpu.matmul %273, %260, %cst_134 {dimension_numbers = #tpu.dot_dimension_numbers<[1], [0], [0], [1], [0, 0, 1, 1], [], []>} : vector<8x8xf32>, vector<8x8xf32>, vector<8x8xf32> -> vector<8x8xf32>
    %c1_135 = arith.constant 1 : index
    %c2_136 = arith.constant 2 : index
    %c0_137 = arith.constant 0 : index
    %c0_138 = arith.constant 0 : index
    %275 = vector.load %arg9[%c1_135, %c2_136, %c0_137, %c0_138] : memref<2x4x8x32xf32, #tpu.memory_space<vmem>>, vector<1x1x8x32xf32>
    %276 = vector.shape_cast %275 : vector<1x1x8x32xf32> to vector<8x32xf32>
    %cst_139 = arith.constant dense<0.000000e+00> : vector<8x32xf32>
    %277 = tpu.matmul %274, %276, %cst_139 {dimension_numbers = #tpu.dot_dimension_numbers<[1], [0], [0], [1], [0, 0, 1, 1], [], []>} : vector<8x8xf32>, vector<8x32xf32>, vector<8x32xf32> -> vector<8x32xf32>
    %278 = arith.addf %257, %277 : vector<8x32xf32>
    %279 = vector.extract_strided_slice %216 {offsets = [0, 24], sizes = [8, 8], strides = [1, 1]} : vector<8x96xf32> to vector<8x8xf32>
    %280 = vector.extract_strided_slice %216 {offsets = [0, 56], sizes = [8, 8], strides = [1, 1]} : vector<8x96xf32> to vector<8x8xf32>
    %281 = vector.extract_strided_slice %216 {offsets = [0, 88], sizes = [8, 8], strides = [1, 1]} : vector<8x96xf32> to vector<8x8xf32>
    %cst_140 = arith.constant dense<0.000000e+00> : vector<8x8xf32>
    %282 = tpu.matmul %279, %280, %cst_140 {dimension_numbers = #tpu.dot_dimension_numbers<[1], [1], [0], [0], [0, 0, 1, 0], [], []>} : vector<8x8xf32>, vector<8x8xf32>, vector<8x8xf32> -> vector<8x8xf32>
    %283 = vector.broadcast %8 : vector<1x8xf32> to vector<8x8xf32>
    %284 = arith.addf %282, %283 : vector<8x8xf32>
    %cst_141 = arith.constant dense<0xFF800000> : vector<8xf32>
    %285 = vector.multi_reduction <maximumf>, %284, %cst_141 [1] : vector<8x8xf32> to vector<8xf32>
    %286 = vector.shape_cast %285 : vector<8xf32> to vector<8x1xf32>
    %287 = vector.broadcast %286 : vector<8x1xf32> to vector<8x8xf32>
    %288 = arith.subf %284, %287 : vector<8x8xf32>
    %289 = math.exp %288 : vector<8x8xf32>
    %cst_142 = arith.constant dense<0.000000e+00> : vector<8xf32>
    %290 = vector.multi_reduction <add>, %289, %cst_142 [1] : vector<8x8xf32> to vector<8xf32>
    %291 = vector.shape_cast %290 : vector<8xf32> to vector<8x1xf32>
    %292 = tpu.reciprocal %291 {approx = true} : vector<8x1xf32> -> vector<8x1xf32>
    %293 = vector.broadcast %292 : vector<8x1xf32> to vector<8x8xf32>
    %294 = arith.mulf %289, %293 : vector<8x8xf32>
    %cst_143 = arith.constant dense<0.000000e+00> : vector<8x8xf32>
    %295 = tpu.matmul %294, %281, %cst_143 {dimension_numbers = #tpu.dot_dimension_numbers<[1], [0], [0], [1], [0, 0, 1, 1], [], []>} : vector<8x8xf32>, vector<8x8xf32>, vector<8x8xf32> -> vector<8x8xf32>
    %c1_144 = arith.constant 1 : index
    %c3_145 = arith.constant 3 : index
    %c0_146 = arith.constant 0 : index
    %c0_147 = arith.constant 0 : index
    %296 = vector.load %arg9[%c1_144, %c3_145, %c0_146, %c0_147] : memref<2x4x8x32xf32, #tpu.memory_space<vmem>>, vector<1x1x8x32xf32>
    %297 = vector.shape_cast %296 : vector<1x1x8x32xf32> to vector<8x32xf32>
    %cst_148 = arith.constant dense<0.000000e+00> : vector<8x32xf32>
    %298 = tpu.matmul %295, %297, %cst_148 {dimension_numbers = #tpu.dot_dimension_numbers<[1], [0], [0], [1], [0, 0, 1, 1], [], []>} : vector<8x8xf32>, vector<8x32xf32>, vector<8x32xf32> -> vector<8x32xf32>
    %299 = arith.addf %278, %298 : vector<8x32xf32>
    %c1_149 = arith.constant 1 : index
    %c0_150 = arith.constant 0 : index
    %c0_151 = arith.constant 0 : index
    %300 = vector.load %arg10[%c1_149, %c0_150, %c0_151] : memref<2x1x32xf32, #tpu.memory_space<vmem>>, vector<1x1x32xf32>
    %301 = vector.shape_cast %300 : vector<1x1x32xf32> to vector<1x32xf32>
    %302 = vector.broadcast %301 : vector<1x32xf32> to vector<8x32xf32>
    %303 = arith.addf %299, %302 : vector<8x32xf32>
    %304 = arith.addf %209, %303 : vector<8x32xf32>
    %cst_152 = arith.constant dense<0.000000e+00> : vector<8xf32>
    %305 = vector.multi_reduction <add>, %304, %cst_152 [1] : vector<8x32xf32> to vector<8xf32>
    %306 = vector.shape_cast %305 : vector<8xf32> to vector<8x1xf32>
    %cst_153 = arith.constant 3.200000e+01 : f32
    %307 = vector.broadcast %cst_153 : f32 to vector<8x1xf32>
    %308 = arith.divf %306, %307 : vector<8x1xf32>
    %309 = vector.broadcast %308 : vector<8x1xf32> to vector<8x32xf32>
    %310 = arith.subf %304, %309 : vector<8x32xf32>
    %311 = arith.mulf %310, %310 : vector<8x32xf32>
    %cst_154 = arith.constant dense<0.000000e+00> : vector<8xf32>
    %312 = vector.multi_reduction <add>, %311, %cst_154 [1] : vector<8x32xf32> to vector<8xf32>
    %313 = vector.shape_cast %312 : vector<8xf32> to vector<8x1xf32>
    %cst_155 = arith.constant 3.200000e+01 : f32
    %314 = vector.broadcast %cst_155 : f32 to vector<8x1xf32>
    %315 = arith.divf %313, %314 : vector<8x1xf32>
    %316 = vector.broadcast %308 : vector<8x1xf32> to vector<8x32xf32>
    %317 = arith.subf %304, %316 : vector<8x32xf32>
    %cst_156 = arith.constant 9.99999974E-6 : f32
    %318 = vector.broadcast %cst_156 : f32 to vector<8x1xf32>
    %319 = arith.addf %315, %318 : vector<8x1xf32>
    %320 = math.rsqrt %319 : vector<8x1xf32>
    %321 = vector.broadcast %320 : vector<8x1xf32> to vector<8x32xf32>
    %322 = arith.mulf %317, %321 : vector<8x32xf32>
    %c1_157 = arith.constant 1 : index
    %c0_158 = arith.constant 0 : index
    %c0_159 = arith.constant 0 : index
    %323 = vector.load %arg11[%c1_157, %c0_158, %c0_159] : memref<2x32x128xf32, #tpu.memory_space<vmem>>, vector<1x32x128xf32>
    %324 = vector.shape_cast %323 : vector<1x32x128xf32> to vector<32x128xf32>
    %cst_160 = arith.constant dense<0.000000e+00> : vector<8x128xf32>
    %325 = tpu.matmul %322, %324, %cst_160 {dimension_numbers = #tpu.dot_dimension_numbers<[1], [0], [0], [1], [0, 0, 1, 1], [], []>} : vector<8x32xf32>, vector<32x128xf32>, vector<8x128xf32> -> vector<8x128xf32>
    %c1_161 = arith.constant 1 : index
    %c0_162 = arith.constant 0 : index
    %c0_163 = arith.constant 0 : index
    %326 = vector.load %arg12[%c1_161, %c0_162, %c0_163] : memref<2x1x128xf32, #tpu.memory_space<vmem>>, vector<1x1x128xf32>
    %327 = vector.shape_cast %326 : vector<1x1x128xf32> to vector<1x128xf32>
    %328 = vector.broadcast %327 : vector<1x128xf32> to vector<8x128xf32>
    %329 = arith.addf %325, %328 : vector<8x128xf32>
    %cst_164 = arith.constant 5.000000e-01 : f32
    %330 = vector.broadcast %cst_164 : f32 to vector<8x128xf32>
    %331 = arith.mulf %330, %329 : vector<8x128xf32>
    %cst_165 = arith.constant 4.471500e-02 : f32
    %332 = vector.broadcast %cst_165 : f32 to vector<8x128xf32>
    %333 = arith.mulf %332, %329 : vector<8x128xf32>
    %334 = arith.mulf %333, %329 : vector<8x128xf32>
    %335 = arith.mulf %334, %329 : vector<8x128xf32>
    %336 = arith.addf %329, %335 : vector<8x128xf32>
    %cst_166 = arith.constant 0.797884583 : f32
    %337 = vector.broadcast %cst_166 : f32 to vector<8x128xf32>
    %338 = arith.mulf %337, %336 : vector<8x128xf32>
    %339 = math.tanh %338 : vector<8x128xf32>
    %cst_167 = arith.constant 1.000000e+00 : f32
    %340 = vector.broadcast %cst_167 : f32 to vector<8x128xf32>
    %341 = arith.addf %340, %339 : vector<8x128xf32>
    %342 = arith.mulf %331, %341 : vector<8x128xf32>
    %c1_168 = arith.constant 1 : index
    %c0_169 = arith.constant 0 : index
    %c0_170 = arith.constant 0 : index
    %343 = vector.load %arg13[%c1_168, %c0_169, %c0_170] : memref<2x128x64xf32, #tpu.memory_space<vmem>>, vector<1x128x64xf32>
    %344 = vector.shape_cast %343 : vector<1x128x64xf32> to vector<128x64xf32>
    %cst_171 = arith.constant dense<0.000000e+00> : vector<8x64xf32>
    %345 = tpu.matmul %342, %344, %cst_171 {dimension_numbers = #tpu.dot_dimension_numbers<[1], [0], [0], [1], [0, 0, 1, 1], [], []>} : vector<8x128xf32>, vector<128x64xf32>, vector<8x64xf32> -> vector<8x64xf32>
    %c1_172 = arith.constant 1 : index
    %c0_173 = arith.constant 0 : index
    %c0_174 = arith.constant 0 : index
    %346 = vector.load %arg14[%c1_172, %c0_173, %c0_174] : memref<2x1x64xf32, #tpu.memory_space<vmem>>, vector<1x1x64xf32>
    %347 = vector.shape_cast %346 : vector<1x1x64xf32> to vector<1x64xf32>
    %348 = vector.broadcast %347 : vector<1x64xf32> to vector<8x64xf32>
    %349 = arith.addf %345, %348 : vector<8x64xf32>
    %cst_175 = arith.constant 5.000000e-01 : f32
    %350 = vector.broadcast %cst_175 : f32 to vector<8x64xf32>
    %351 = arith.mulf %350, %349 : vector<8x64xf32>
    %cst_176 = arith.constant 4.471500e-02 : f32
    %352 = vector.broadcast %cst_176 : f32 to vector<8x64xf32>
    %353 = arith.mulf %352, %349 : vector<8x64xf32>
    %354 = arith.mulf %353, %349 : vector<8x64xf32>
    %355 = arith.mulf %354, %349 : vector<8x64xf32>
    %356 = arith.addf %349, %355 : vector<8x64xf32>
    %cst_177 = arith.constant 0.797884583 : f32
    %357 = vector.broadcast %cst_177 : f32 to vector<8x64xf32>
    %358 = arith.mulf %357, %356 : vector<8x64xf32>
    %359 = math.tanh %358 : vector<8x64xf32>
    %cst_178 = arith.constant 1.000000e+00 : f32
    %360 = vector.broadcast %cst_178 : f32 to vector<8x64xf32>
    %361 = arith.addf %360, %359 : vector<8x64xf32>
    %362 = arith.mulf %351, %361 : vector<8x64xf32>
    %c1_179 = arith.constant 1 : index
    %c0_180 = arith.constant 0 : index
    %c0_181 = arith.constant 0 : index
    %363 = vector.load %arg15[%c1_179, %c0_180, %c0_181] : memref<2x64x32xf32, #tpu.memory_space<vmem>>, vector<1x64x32xf32>
    %364 = vector.shape_cast %363 : vector<1x64x32xf32> to vector<64x32xf32>
    %cst_182 = arith.constant dense<0.000000e+00> : vector<8x32xf32>
    %365 = tpu.matmul %362, %364, %cst_182 {dimension_numbers = #tpu.dot_dimension_numbers<[1], [0], [0], [1], [0, 0, 1, 1], [], []>} : vector<8x64xf32>, vector<64x32xf32>, vector<8x32xf32> -> vector<8x32xf32>
    %c1_183 = arith.constant 1 : index
    %c0_184 = arith.constant 0 : index
    %c0_185 = arith.constant 0 : index
    %366 = vector.load %arg16[%c1_183, %c0_184, %c0_185] : memref<2x1x32xf32, #tpu.memory_space<vmem>>, vector<1x1x32xf32>
    %367 = vector.shape_cast %366 : vector<1x1x32xf32> to vector<1x32xf32>
    %368 = vector.broadcast %367 : vector<1x32xf32> to vector<8x32xf32>
    %369 = arith.addf %365, %368 : vector<8x32xf32>
    %c1_186 = arith.constant 1 : index
    %c0_187 = arith.constant 0 : index
    %c0_188 = arith.constant 0 : index
    %370 = vector.load %arg17[%c1_186, %c0_187, %c0_188] : memref<2x2x32xf32, #tpu.memory_space<vmem>>, vector<1x2x32xf32>
    %371 = vector.shape_cast %370 : vector<1x2x32xf32> to vector<2x32xf32>
    %372 = arith.addf %322, %369 : vector<8x32xf32>
    %373 = vector.extract_strided_slice %371 {offsets = [0, 0], sizes = [1, 32], strides = [1, 1]} : vector<2x32xf32> to vector<1x32xf32>
    %374 = vector.extract_strided_slice %371 {offsets = [1, 0], sizes = [1, 32], strides = [1, 1]} : vector<2x32xf32> to vector<1x32xf32>
    %cst_189 = arith.constant dense<0.000000e+00> : vector<8xf32>
    %375 = vector.multi_reduction <add>, %372, %cst_189 [1] : vector<8x32xf32> to vector<8xf32>
    %376 = vector.shape_cast %375 : vector<8xf32> to vector<8x1xf32>
    %cst_190 = arith.constant 3.200000e+01 : f32
    %377 = vector.broadcast %cst_190 : f32 to vector<8x1xf32>
    %378 = arith.divf %376, %377 : vector<8x1xf32>
    %379 = vector.broadcast %378 : vector<8x1xf32> to vector<8x32xf32>
    %380 = arith.subf %372, %379 : vector<8x32xf32>
    %381 = arith.mulf %380, %380 : vector<8x32xf32>
    %cst_191 = arith.constant dense<0.000000e+00> : vector<8xf32>
    %382 = vector.multi_reduction <add>, %381, %cst_191 [1] : vector<8x32xf32> to vector<8xf32>
    %383 = vector.shape_cast %382 : vector<8xf32> to vector<8x1xf32>
    %cst_192 = arith.constant 3.200000e+01 : f32
    %384 = vector.broadcast %cst_192 : f32 to vector<8x1xf32>
    %385 = arith.divf %383, %384 : vector<8x1xf32>
    %386 = vector.broadcast %378 : vector<8x1xf32> to vector<8x32xf32>
    %387 = arith.subf %372, %386 : vector<8x32xf32>
    %cst_193 = arith.constant 9.99999974E-6 : f32
    %388 = vector.broadcast %cst_193 : f32 to vector<8x1xf32>
    %389 = arith.addf %385, %388 : vector<8x1xf32>
    %390 = math.rsqrt %389 : vector<8x1xf32>
    %391 = vector.broadcast %390 : vector<8x1xf32> to vector<8x32xf32>
    %392 = arith.mulf %387, %391 : vector<8x32xf32>
    %393 = vector.broadcast %373 : vector<1x32xf32> to vector<8x32xf32>
    %394 = arith.mulf %392, %393 : vector<8x32xf32>
    %395 = vector.broadcast %374 : vector<1x32xf32> to vector<8x32xf32>
    %396 = arith.addf %394, %395 : vector<8x32xf32>
    %c0_194 = arith.constant 0 : index
    %c0_195 = arith.constant 0 : index
    %397 = vector.load %arg18[%c0_194, %c0_195] : memref<2x32xf32, #tpu.memory_space<vmem>>, vector<2x32xf32>
    %398 = vector.extract_strided_slice %397 {offsets = [0, 0], sizes = [1, 32], strides = [1, 1]} : vector<2x32xf32> to vector<1x32xf32>
    %399 = vector.extract_strided_slice %397 {offsets = [1, 0], sizes = [1, 32], strides = [1, 1]} : vector<2x32xf32> to vector<1x32xf32>
    %cst_196 = arith.constant dense<0.000000e+00> : vector<8xf32>
    %400 = vector.multi_reduction <add>, %396, %cst_196 [1] : vector<8x32xf32> to vector<8xf32>
    %401 = vector.shape_cast %400 : vector<8xf32> to vector<8x1xf32>
    %cst_197 = arith.constant 3.200000e+01 : f32
    %402 = vector.broadcast %cst_197 : f32 to vector<8x1xf32>
    %403 = arith.divf %401, %402 : vector<8x1xf32>
    %404 = vector.broadcast %403 : vector<8x1xf32> to vector<8x32xf32>
    %405 = arith.subf %396, %404 : vector<8x32xf32>
    %406 = arith.mulf %405, %405 : vector<8x32xf32>
    %cst_198 = arith.constant dense<0.000000e+00> : vector<8xf32>
    %407 = vector.multi_reduction <add>, %406, %cst_198 [1] : vector<8x32xf32> to vector<8xf32>
    %408 = vector.shape_cast %407 : vector<8xf32> to vector<8x1xf32>
    %cst_199 = arith.constant 3.200000e+01 : f32
    %409 = vector.broadcast %cst_199 : f32 to vector<8x1xf32>
    %410 = arith.divf %408, %409 : vector<8x1xf32>
    %411 = vector.broadcast %403 : vector<8x1xf32> to vector<8x32xf32>
    %412 = arith.subf %396, %411 : vector<8x32xf32>
    %cst_200 = arith.constant 9.99999974E-6 : f32
    %413 = vector.broadcast %cst_200 : f32 to vector<8x1xf32>
    %414 = arith.addf %410, %413 : vector<8x1xf32>
    %415 = math.rsqrt %414 : vector<8x1xf32>
    %416 = vector.broadcast %415 : vector<8x1xf32> to vector<8x32xf32>
    %417 = arith.mulf %412, %416 : vector<8x32xf32>
    %418 = vector.broadcast %398 : vector<1x32xf32> to vector<8x32xf32>
    %419 = arith.mulf %417, %418 : vector<8x32xf32>
    %420 = vector.broadcast %399 : vector<1x32xf32> to vector<8x32xf32>
    %421 = arith.addf %419, %420 : vector<8x32xf32>
    %c0_201 = arith.constant 0 : index
    %c0_202 = arith.constant 0 : index
    %422 = vector.load %arg19[%c0_201, %c0_202] : memref<32x16xf32, #tpu.memory_space<vmem>>, vector<32x16xf32>
    %cst_203 = arith.constant dense<0.000000e+00> : vector<8x16xf32>
    %423 = tpu.matmul %421, %422, %cst_203 {dimension_numbers = #tpu.dot_dimension_numbers<[1], [0], [0], [1], [0, 0, 1, 1], [], []>} : vector<8x32xf32>, vector<32x16xf32>, vector<8x16xf32> -> vector<8x16xf32>
    %c0_204 = arith.constant 0 : index
    %c0_205 = arith.constant 0 : index
    %424 = vector.load %arg20[%c0_204, %c0_205] : memref<1x16xf32, #tpu.memory_space<vmem>>, vector<1x16xf32>
    %425 = vector.broadcast %424 : vector<1x16xf32> to vector<8x16xf32>
    %426 = arith.addf %423, %425 : vector<8x16xf32>
    %c0_206 = arith.constant 0 : index
    %c0_207 = arith.constant 0 : index
    %c0_208 = arith.constant 0 : index
    %427 = vector.load %arg21[%c0_206, %c0_207, %c0_208] : memref<1x8x16xf32, #tpu.memory_space<vmem>>, vector<1x8x16xf32>
    %428 = vector.shape_cast %427 : vector<1x8x16xf32> to vector<8x16xf32>
    %429 = vector.shape_cast %426 : vector<8x16xf32> to vector<1x8x16xf32>
    tpu.vector_store %arg21[%c0_206, %c0_207, %c0_208], %429 {strides = array<i32>} : memref<1x8x16xf32, #tpu.memory_space<vmem>>, vector<1x8x16xf32>,
    return
  }
  func.func @transform_0(%arg0: i32) -> (i32, i32, i32) {
    %c0_i32 = arith.constant 0 : i32
    %c0_i32_0 = arith.constant 0 : i32
    %c0_i32_1 = arith.constant 0 : i32
    return %arg0, %c0_i32, %c0_i32_0 : i32, i32, i32
  }
  func.func @transform_1(%arg0: i32) -> (i32, i32, i32) {
    %c0_i32 = arith.constant 0 : i32
    %c0_i32_0 = arith.constant 0 : i32
    %c0_i32_1 = arith.constant 0 : i32
    return %arg0, %c0_i32, %c0_i32_0 : i32, i32, i32
  }
  func.func @transform_2(%arg0: i32) -> (i32, i32) {
    %c0_i32 = arith.constant 0 : i32
    %c0_i32_0 = arith.constant 0 : i32
    %c0_i32_1 = arith.constant 0 : i32
    return %c0_i32, %c0_i32_0 : i32, i32
  }
  func.func @transform_3(%arg0: i32) -> (i32, i32) {
    %c0_i32 = arith.constant 0 : i32
    %c0_i32_0 = arith.constant 0 : i32
    %c0_i32_1 = arith.constant 0 : i32
    return %c0_i32, %c0_i32_0 : i32, i32
  }
  func.func @transform_4(%arg0: i32) -> (i32, i32, i32) {
    %c0_i32 = arith.constant 0 : i32
    %c0_i32_0 = arith.constant 0 : i32
    %c0_i32_1 = arith.constant 0 : i32
    return %arg0, %c0_i32, %c0_i32_0 : i32, i32, i32
  }
  func.func @transform_5(%arg0: i32) -> (i32, i32, i32) {
    %c0_i32 = arith.constant 0 : i32
    %c0_i32_0 = arith.constant 0 : i32
    %c0_i32_1 = arith.constant 0 : i32
    %c0_i32_2 = arith.constant 0 : i32
    return %c0_i32, %c0_i32_0, %c0_i32_1 : i32, i32, i32
  }
  func.func @transform_6(%arg0: i32) -> (i32, i32, i32) {
    %c0_i32 = arith.constant 0 : i32
    %c0_i32_0 = arith.constant 0 : i32
    %c0_i32_1 = arith.constant 0 : i32
    %c0_i32_2 = arith.constant 0 : i32
    return %c0_i32, %c0_i32_0, %c0_i32_1 : i32, i32, i32
  }
  func.func @transform_7(%arg0: i32) -> (i32, i32, i32) {
    %c0_i32 = arith.constant 0 : i32
    %c0_i32_0 = arith.constant 0 : i32
    %c0_i32_1 = arith.constant 0 : i32
    %c0_i32_2 = arith.constant 0 : i32
    return %c0_i32, %c0_i32_0, %c0_i32_1 : i32, i32, i32
  }
  func.func @transform_8(%arg0: i32) -> (i32, i32, i32, i32) {
    %c0_i32 = arith.constant 0 : i32
    %c0_i32_0 = arith.constant 0 : i32
    %c0_i32_1 = arith.constant 0 : i32
    %c0_i32_2 = arith.constant 0 : i32
    %c0_i32_3 = arith.constant 0 : i32
    return %c0_i32, %c0_i32_0, %c0_i32_1, %c0_i32_2 : i32, i32, i32, i32
  }
  func.func @transform_9(%arg0: i32) -> (i32, i32, i32) {
    %c0_i32 = arith.constant 0 : i32
    %c0_i32_0 = arith.constant 0 : i32
    %c0_i32_1 = arith.constant 0 : i32
    %c0_i32_2 = arith.constant 0 : i32
    return %c0_i32, %c0_i32_0, %c0_i32_1 : i32, i32, i32
  }
  func.func @transform_10(%arg0: i32) -> (i32, i32, i32) {
    %c0_i32 = arith.constant 0 : i32
    %c0_i32_0 = arith.constant 0 : i32
    %c0_i32_1 = arith.constant 0 : i32
    %c0_i32_2 = arith.constant 0 : i32
    return %c0_i32, %c0_i32_0, %c0_i32_1 : i32, i32, i32
  }
  func.func @transform_11(%arg0: i32) -> (i32, i32, i32) {
    %c0_i32 = arith.constant 0 : i32
    %c0_i32_0 = arith.constant 0 : i32
    %c0_i32_1 = arith.constant 0 : i32
    %c0_i32_2 = arith.constant 0 : i32
    return %c0_i32, %c0_i32_0, %c0_i32_1 : i32, i32, i32
  }
  func.func @transform_12(%arg0: i32) -> (i32, i32, i32) {
    %c0_i32 = arith.constant 0 : i32
    %c0_i32_0 = arith.constant 0 : i32
    %c0_i32_1 = arith.constant 0 : i32
    %c0_i32_2 = arith.constant 0 : i32
    return %c0_i32, %c0_i32_0, %c0_i32_1 : i32, i32, i32
  }
  func.func @transform_13(%arg0: i32) -> (i32, i32, i32) {
    %c0_i32 = arith.constant 0 : i32
    %c0_i32_0 = arith.constant 0 : i32
    %c0_i32_1 = arith.constant 0 : i32
    %c0_i32_2 = arith.constant 0 : i32
    return %c0_i32, %c0_i32_0, %c0_i32_1 : i32, i32, i32
  }
  func.func @transform_14(%arg0: i32) -> (i32, i32, i32) {
    %c0_i32 = arith.constant 0 : i32
    %c0_i32_0 = arith.constant 0 : i32
    %c0_i32_1 = arith.constant 0 : i32
    %c0_i32_2 = arith.constant 0 : i32
    return %c0_i32, %c0_i32_0, %c0_i32_1 : i32, i32, i32
  }
  func.func @transform_15(%arg0: i32) -> (i32, i32, i32) {
    %c0_i32 = arith.constant 0 : i32
    %c0_i32_0 = arith.constant 0 : i32
    %c0_i32_1 = arith.constant 0 : i32
    %c0_i32_2 = arith.constant 0 : i32
    return %c0_i32, %c0_i32_0, %c0_i32_1 : i32, i32, i32
  }
  func.func @transform_16(%arg0: i32) -> (i32, i32, i32) {
    %c0_i32 = arith.constant 0 : i32
    %c0_i32_0 = arith.constant 0 : i32
    %c0_i32_1 = arith.constant 0 : i32
    %c0_i32_2 = arith.constant 0 : i32
    return %c0_i32, %c0_i32_0, %c0_i32_1 : i32, i32, i32
  }
  func.func @transform_17(%arg0: i32) -> (i32, i32) {
    %c0_i32 = arith.constant 0 : i32
    %c0_i32_0 = arith.constant 0 : i32
    %c0_i32_1 = arith.constant 0 : i32
    return %c0_i32, %c0_i32_0 : i32, i32
  }
  func.func @transform_18(%arg0: i32) -> (i32, i32) {
    %c0_i32 = arith.constant 0 : i32
    %c0_i32_0 = arith.constant 0 : i32
    %c0_i32_1 = arith.constant 0 : i32
    return %c0_i32, %c0_i32_0 : i32, i32
  }
  func.func @transform_19(%arg0: i32) -> (i32, i32) {
    %c0_i32 = arith.constant 0 : i32
    %c0_i32_0 = arith.constant 0 : i32
    %c0_i32_1 = arith.constant 0 : i32
    return %c0_i32, %c0_i32_0 : i32, i32
  }
  func.func @transform_20(%arg0: i32) -> (i32, i32, i32) {
    %c0_i32 = arith.constant 0 : i32
    %c0_i32_0 = arith.constant 0 : i32
    %c0_i32_1 = arith.constant 0 : i32
    return %arg0, %c0_i32, %c0_i32_0 : i32, i32, i32
  }
}

</mosaic_0001>

<llo_original>
// kernel: seq_transformer_forward.1
$region0: #{seq_transformer_forward.1}
  #allocation0 [shape = 'u32[]', space=smem, size = 0x4, offset = 0x4, fixed_abs, tag = 'smem constant byte address 0x4 - core index']
  #allocation1 [shape = 'u32[144,128]{1,0:T(1,128)}', space=vmem, size = 0x12000, scoped, tag = 'internal scratch']
  %s0 = inlined_call_operand.vmem [shape: f32[2,8,16], index: 0, kind: input, shape index: {}]
  %s1 = inlined_call_operand.vmem [shape: f32[2,1,8], index: 1, kind: input, shape index: {}]
  %s2 = inlined_call_operand.vmem [shape: f32[16,32], index: 2, kind: input, shape index: {}]
  %s3 = inlined_call_operand.vmem [shape: f32[1,32], index: 3, kind: input, shape index: {}]
  %s4 = inlined_call_operand.vmem [shape: f32[2,2,32], index: 4, kind: input, shape index: {}]
  %s5 = inlined_call_operand.vmem [shape: f32[2,8,32], index: 5, kind: input, shape index: {}]
  %s6 = inlined_call_operand.vmem [shape: f32[2,32,96], index: 6, kind: input, shape index: {}]
  %s7 = inlined_call_operand.vmem [shape: f32[2,1,96], index: 7, kind: input, shape index: {}]
  %s8 = inlined_call_operand.vmem [shape: f32[2,4,8,32], index: 8, kind: input, shape index: {}]
  %s9 = inlined_call_operand.vmem [shape: f32[2,1,32], index: 9, kind: input, shape index: {}]
  %s10 = inlined_call_operand.vmem [shape: f32[2,32,128], index: 10, kind: input, shape index: {}]
  %s11 = inlined_call_operand.vmem [shape: f32[2,1,128], index: 11, kind: input, shape index: {}]
  %s12 = inlined_call_operand.vmem [shape: f32[2,128,64], index: 12, kind: input, shape index: {}]
  %s13 = inlined_call_operand.vmem [shape: f32[2,1,64], index: 13, kind: input, shape index: {}]
  %s14 = inlined_call_operand.vmem [shape: f32[2,64,32], index: 14, kind: input, shape index: {}]
  %s15 = inlined_call_operand.vmem [shape: f32[2,1,32], index: 15, kind: input, shape index: {}]
  %s16 = inlined_call_operand.vmem [shape: f32[2,2,32], index: 16, kind: input, shape index: {}]
  %s17 = inlined_call_operand.vmem [shape: f32[2,32], index: 17, kind: input, shape index: {}]
  %s18 = inlined_call_operand.vmem [shape: f32[32,16], index: 18, kind: input, shape index: {}]
  %s19 = inlined_call_operand.vmem [shape: f32[1,16], index: 19, kind: input, shape index: {}]
  %s20 = inlined_call_operand.hbm [shape: f32[2,8,16], index: 20, kind: output, shape index: {}]
  %s21 = sld [smem:[#allocation0]]
  $region113: #{seq_transformer_forward.1} parent=0
    _
  %s23 = ssub.s32 1, %s21
  %s24 = scalar_select 0, %s23, %s21
  $region1: #{seq_transformer_forward.1} parent=0
    #allocation2 [shape = 'u8[8192]{0}', space=vmem, size = 0x2000, scoped, tag = 'output window, operand 0']
    #allocation3 [shape = 's32[2]{0}', space=sflag, size = 0x8, scoped, tag = 'scoped memory for seq_transformer_forward.1']
    %25 = vsyncpa [#allocation3], 0
    %s26 = scalar_lea.sflag [#allocation3], 1
    %27 = vsyncpa %s26, 0
    loop: start=0, step=1, limit=4
    $region2: #{seq_transformer_forward.1} parent=1 // loop_pre_header
      _
    $region3: #{seq_transformer_forward.1} parent=1 // loop_header
      %s29 = sphi 0, %s33
      %p30 = scmp.ge.s32.totalorder %s29, 4
      %s39 = sphi 0, %s41
      %s42 = sphi 0, %s39
      %s43 = sphi 0, %s42
      %s59 = sphi 0, %s43
      %s65 = sphi 0, %s67
      %s68 = sphi 0, %s65
      %s69 = sphi 0, %s68
      %s85 = sphi 0, %s69
      %s89 = sphi 0, %s89
      %s91 = sphi 0, %s89
      %s92 = sphi 0, %s91
      %s106 = sphi 0, %s92
      %s110 = sphi 0, %s110
      %s112 = sphi 0, %s110
      %s113 = sphi 0, %s112
      %s127 = sphi 0, %s113
      %s133 = sphi 0, %s135
      %s136 = sphi 0, %s133
      %s137 = sphi 0, %s136
      %s153 = sphi 0, %s137
      %s157 = sphi 0, %s157
      %s159 = sphi 0, %s157
      %s160 = sphi 0, %s159
      %s174 = sphi 0, %s160
      %s178 = sphi 0, %s178
      %s180 = sphi 0, %s178
      %s181 = sphi 0, %s180
      %s195 = sphi 0, %s181
      %s199 = sphi 0, %s199
      %s201 = sphi 0, %s199
      %s202 = sphi 0, %s201
      %s216 = sphi 0, %s202
      %s220 = sphi 0, %s220
      %s222 = sphi 0, %s220
      %s223 = sphi 0, %s222
      %s237 = sphi 0, %s223
      %s241 = sphi 0, %s241
      %s243 = sphi 0, %s241
      %s244 = sphi 0, %s243
      %s258 = sphi 0, %s244
      %s262 = sphi 0, %s262
      %s264 = sphi 0, %s262
      %s265 = sphi 0, %s264
      %s279 = sphi 0, %s265
      %s283 = sphi 0, %s283
      %s285 = sphi 0, %s283
      %s286 = sphi 0, %s285
      %s300 = sphi 0, %s286
      %s304 = sphi 0, %s304
      %s306 = sphi 0, %s304
      %s307 = sphi 0, %s306
      %s321 = sphi 0, %s307
      %s325 = sphi 0, %s325
      %s327 = sphi 0, %s325
      %s328 = sphi 0, %s327
      %s342 = sphi 0, %s328
      %s346 = sphi 0, %s346
      %s348 = sphi 0, %s346
      %s349 = sphi 0, %s348
      %s363 = sphi 0, %s349
      %s367 = sphi 0, %s367
      %s369 = sphi 0, %s367
      %s370 = sphi 0, %s369
      %s384 = sphi 0, %s370
      %s388 = sphi 0, %s388
      %s390 = sphi 0, %s388
      %s391 = sphi 0, %s390
      %s405 = sphi 0, %s391
      %s409 = sphi 0, %s409
      %s411 = sphi 0, %s409
      %s412 = sphi 0, %s411
      %s426 = sphi 0, %s412
      %s430 = sphi 0, %s430
      %s432 = sphi 0, %s430
      %s433 = sphi 0, %s432
      %s447 = sphi 0, %s433
      %s451 = sphi 0, %s451
      %s453 = sphi 0, %s451
      %s454 = sphi 0, %s453
      %s468 = sphi 0, %s454
      %s474 = sphi 0, %s476
      %s477 = sphi 0, %s474
      %s478 = sphi 0, %s477
      %s494 = sphi 0, %s478
    $region4: #{seq_transformer_forward.1} parent=1 // loop_header_branch
      %32 = sbr.rel (%p30) target = $region8
    $region5: #{seq_transformer_forward.1} parent=1 // loop_body
      %s34 = ssub.s32 %s29, 1
      %s35 = ssub.s32 %s29, 2
      %s36 = sadd.s32 %s29, 1
      %s37 = ssub.s32 %s29, %s36
      %p38 = scmp.eq.s32.totalorder %s37, 0
      %s40 = sadd.s32 %s39, 1
      %s41 = scalar_select %p38, %s39, %s40
      %p44 = pneg %p38
      %p45 = scmp.eq.s32.totalorder %s29, 1
      %p46 = por %p44, %p45
      %p47 = scmp.ne.s32.totalorder %s39, %s42
      %p48 = scmp.eq.s32.totalorder %s29, 0
      %p49 = por %p47, %p48
      %p50 = scmp.ne.s32.totalorder %s39, %s42
      %p51 = scmp.eq.s32.totalorder %s34, 1
      %p52 = por %p50, %p51
      %p53 = scmp.ne.s32.totalorder %s42, %s43
      %p54 = scmp.eq.s32.totalorder %s34, 0
      %p55 = por %p53, %p54
      %p56 = scmp.ne.s32.totalorder %s42, %s43
      %p57 = scmp.eq.s32.totalorder %s35, 1
      %p58 = por %p56, %p57
      %p60 = scmp.ne.s32.totalorder %s43, %s59
      %p61 = scmp.eq.s32.totalorder %s35, 0
      %p62 = por %p60, %p61
      %s63 = ssub.s32 %s29, %s36
      %p64 = scmp.eq.s32.totalorder %s63, 0
      %s66 = sadd.s32 %s65, 1
      %s67 = scalar_select %p64, %s65, %s66
      %p70 = pneg %p64
      %p71 = scmp.eq.s32.totalorder %s29, 1
      %p72 = por %p70, %p71
      %p73 = scmp.ne.s32.totalorder %s65, %s68
      %p74 = scmp.eq.s32.totalorder %s29, 0
      %p75 = por %p73, %p74
      %p76 = scmp.ne.s32.totalorder %s65, %s68
      %p77 = scmp.eq.s32.totalorder %s34, 1
      %p78 = por %p76, %p77
      %p79 = scmp.ne.s32.totalorder %s68, %s69
      %p80 = scmp.eq.s32.totalorder %s34, 0
      %p81 = por %p79, %p80
      %p82 = scmp.ne.s32.totalorder %s68, %s69
      %p83 = scmp.eq.s32.totalorder %s35, 1
      %p84 = por %p82, %p83
      %p86 = scmp.ne.s32.totalorder %s69, %s85
      %p87 = scmp.eq.s32.totalorder %s35, 0
      %p88 = por %p86, %p87
      %s90 = sadd.s32 %s89, 1
      %p93 = scmp.eq.s32.totalorder %s29, 1
      %p94 = scmp.ne.s32.totalorder %s89, %s91
      %p95 = scmp.eq.s32.totalorder %s29, 0
      %p96 = por %p94, %p95
      %p97 = scmp.ne.s32.totalorder %s89, %s91
      %p98 = scmp.eq.s32.totalorder %s34, 1
      %p99 = por %p97, %p98
      %p100 = scmp.ne.s32.totalorder %s91, %s92
      %p101 = scmp.eq.s32.totalorder %s34, 0
      %p102 = por %p100, %p101
      %p103 = scmp.ne.s32.totalorder %s91, %s92
      %p104 = scmp.eq.s32.totalorder %s35, 1
      %p105 = por %p103, %p104
      %p107 = scmp.ne.s32.totalorder %s92, %s106
      %p108 = scmp.eq.s32.totalorder %s35, 0
      %p109 = por %p107, %p108
      %s111 = sadd.s32 %s110, 1
      %p114 = scmp.eq.s32.totalorder %s29, 1
      %p115 = scmp.ne.s32.totalorder %s110, %s112
      %p116 = scmp.eq.s32.totalorder %s29, 0
      %p117 = por %p115, %p116
      %p118 = scmp.ne.s32.totalorder %s110, %s112
      %p119 = scmp.eq.s32.totalorder %s34, 1
      %p120 = por %p118, %p119
      %p121 = scmp.ne.s32.totalorder %s112, %s113
      %p122 = scmp.eq.s32.totalorder %s34, 0
      %p123 = por %p121, %p122
      %p124 = scmp.ne.s32.totalorder %s112, %s113
      %p125 = scmp.eq.s32.totalorder %s35, 1
      %p126 = por %p124, %p125
      %p128 = scmp.ne.s32.totalorder %s113, %s127
      %p129 = scmp.eq.s32.totalorder %s35, 0
      %p130 = por %p128, %p129
      %s131 = ssub.s32 %s29, %s36
      %p132 = scmp.eq.s32.totalorder %s131, 0
      %s134 = sadd.s32 %s133, 1
      %s135 = scalar_select %p132, %s133, %s134
      %p138 = pneg %p132
      %p139 = scmp.eq.s32.totalorder %s29, 1
      %p140 = por %p138, %p139
      %p141 = scmp.ne.s32.totalorder %s133, %s136
      %p142 = scmp.eq.s32.totalorder %s29, 0
      %p143 = por %p141, %p142
      %p144 = scmp.ne.s32.totalorder %s133, %s136
      %p145 = scmp.eq.s32.totalorder %s34, 1
      %p146 = por %p144, %p145
      %p147 = scmp.ne.s32.totalorder %s136, %s137
      %p148 = scmp.eq.s32.totalorder %s34, 0
      %p149 = por %p147, %p148
      %p150 = scmp.ne.s32.totalorder %s136, %s137
      %p151 = scmp.eq.s32.totalorder %s35, 1
      %p152 = por %p150, %p151
      %p154 = scmp.ne.s32.totalorder %s137, %s153
      %p155 = scmp.eq.s32.totalorder %s35, 0
      %p156 = por %p154, %p155
      %s158 = sadd.s32 %s157, 1
      %p161 = scmp.eq.s32.totalorder %s29, 1
      %p162 = scmp.ne.s32.totalorder %s157, %s159
      %p163 = scmp.eq.s32.totalorder %s29, 0
      %p164 = por %p162, %p163
      %p165 = scmp.ne.s32.totalorder %s157, %s159
      %p166 = scmp.eq.s32.totalorder %s34, 1
      %p167 = por %p165, %p166
      %p168 = scmp.ne.s32.totalorder %s159, %s160
      %p169 = scmp.eq.s32.totalorder %s34, 0
      %p170 = por %p168, %p169
      %p171 = scmp.ne.s32.totalorder %s159, %s160
      %p172 = scmp.eq.s32.totalorder %s35, 1
      %p173 = por %p171, %p172
      %p175 = scmp.ne.s32.totalorder %s160, %s174
      %p176 = scmp.eq.s32.totalorder %s35, 0
      %p177 = por %p175, %p176
      %s179 = sadd.s32 %s178, 1
      %p182 = scmp.eq.s32.totalorder %s29, 1
      %p183 = scmp.ne.s32.totalorder %s178, %s180
      %p184 = scmp.eq.s32.totalorder %s29, 0
      %p185 = por %p183, %p184
      %p186 = scmp.ne.s32.totalorder %s178, %s180
      %p187 = scmp.eq.s32.totalorder %s34, 1
      %p188 = por %p186, %p187
      %p189 = scmp.ne.s32.totalorder %s180, %s181
      %p190 = scmp.eq.s32.totalorder %s34, 0
      %p191 = por %p189, %p190
      %p192 = scmp.ne.s32.totalorder %s180, %s181
      %p193 = scmp.eq.s32.totalorder %s35, 1
      %p194 = por %p192, %p193
      %p196 = scmp.ne.s32.totalorder %s181, %s195
      %p197 = scmp.eq.s32.totalorder %s35, 0
      %p198 = por %p196, %p197
      %s200 = sadd.s32 %s199, 1
      %p203 = scmp.eq.s32.totalorder %s29, 1
      %p204 = scmp.ne.s32.totalorder %s199, %s201
      %p205 = scmp.eq.s32.totalorder %s29, 0
      %p206 = por %p204, %p205
      %p207 = scmp.ne.s32.totalorder %s199, %s201
      %p208 = scmp.eq.s32.totalorder %s34, 1
      %p209 = por %p207, %p208
      %p210 = scmp.ne.s32.totalorder %s201, %s202
      %p211 = scmp.eq.s32.totalorder %s34, 0
      %p212 = por %p210, %p211
      %p213 = scmp.ne.s32.totalorder %s201, %s202
      %p214 = scmp.eq.s32.totalorder %s35, 1
      %p215 = por %p213, %p214
      %p217 = scmp.ne.s32.totalorder %s202, %s216
      %p218 = scmp.eq.s32.totalorder %s35, 0
      %p219 = por %p217, %p218
      %s221 = sadd.s32 %s220, 1
      %p224 = scmp.eq.s32.totalorder %s29, 1
      %p225 = scmp.ne.s32.totalorder %s220, %s222
      %p226 = scmp.eq.s32.totalorder %s29, 0
      %p227 = por %p225, %p226
      %p228 = scmp.ne.s32.totalorder %s220, %s222
      %p229 = scmp.eq.s32.totalorder %s34, 1
      %p230 = por %p228, %p229
      %p231 = scmp.ne.s32.totalorder %s222, %s223
      %p232 = scmp.eq.s32.totalorder %s34, 0
      %p233 = por %p231, %p232
      %p234 = scmp.ne.s32.totalorder %s222, %s223
      %p235 = scmp.eq.s32.totalorder %s35, 1
      %p236 = por %p234, %p235
      %p238 = scmp.ne.s32.totalorder %s223, %s237
      %p239 = scmp.eq.s32.totalorder %s35, 0
      %p240 = por %p238, %p239
      %s242 = sadd.s32 %s241, 1
      %p245 = scmp.eq.s32.totalorder %s29, 1
      %p246 = scmp.ne.s32.totalorder %s241, %s243
      %p247 = scmp.eq.s32.totalorder %s29, 0
      %p248 = por %p246, %p247
      %p249 = scmp.ne.s32.totalorder %s241, %s243
      %p250 = scmp.eq.s32.totalorder %s34, 1
      %p251 = por %p249, %p250
      %p252 = scmp.ne.s32.totalorder %s243, %s244
      %p253 = scmp.eq.s32.totalorder %s34, 0
      %p254 = por %p252, %p253
      %p255 = scmp.ne.s32.totalorder %s243, %s244
      %p256 = scmp.eq.s32.totalorder %s35, 1
      %p257 = por %p255, %p256
      %p259 = scmp.ne.s32.totalorder %s244, %s258
      %p260 = scmp.eq.s32.totalorder %s35, 0
      %p261 = por %p259, %p260
      %s263 = sadd.s32 %s262, 1
      %p266 = scmp.eq.s32.totalorder %s29, 1
      %p267 = scmp.ne.s32.totalorder %s262, %s264
      %p268 = scmp.eq.s32.totalorder %s29, 0
      %p269 = por %p267, %p268
      %p270 = scmp.ne.s32.totalorder %s262, %s264
      %p271 = scmp.eq.s32.totalorder %s34, 1
      %p272 = por %p270, %p271
      %p273 = scmp.ne.s32.totalorder %s264, %s265
      %p274 = scmp.eq.s32.totalorder %s34, 0
      %p275 = por %p273, %p274
      %p276 = scmp.ne.s32.totalorder %s264, %s265
      %p277 = scmp.eq.s32.totalorder %s35, 1
      %p278 = por %p276, %p277
      %p280 = scmp.ne.s32.totalorder %s265, %s279
      %p281 = scmp.eq.s32.totalorder %s35, 0
      %p282 = por %p280, %p281
      %s284 = sadd.s32 %s283, 1
      %p287 = scmp.eq.s32.totalorder %s29, 1
      %p288 = scmp.ne.s32.totalorder %s283, %s285
      %p289 = scmp.eq.s32.totalorder %s29, 0
      %p290 = por %p288, %p289
      %p291 = scmp.ne.s32.totalorder %s283, %s285
      %p292 = scmp.eq.s32.totalorder %s34, 1
      %p293 = por %p291, %p292
      %p294 = scmp.ne.s32.totalorder %s285, %s286
      %p295 = scmp.eq.s32.totalorder %s34, 0
      %p296 = por %p294, %p295
      %p297 = scmp.ne.s32.totalorder %s285, %s286
      %p298 = scmp.eq.s32.totalorder %s35, 1
      %p299 = por %p297, %p298
      %p301 = scmp.ne.s32.totalorder %s286, %s300
      %p302 = scmp.eq.s32.totalorder %s35, 0
      %p303 = por %p301, %p302
      %s305 = sadd.s32 %s304, 1
      %p308 = scmp.eq.s32.totalorder %s29, 1
      %p309 = scmp.ne.s32.totalorder %s304, %s306
      %p310 = scmp.eq.s32.totalorder %s29, 0
      %p311 = por %p309, %p310
      %p312 = scmp.ne.s32.totalorder %s304, %s306
      %p313 = scmp.eq.s32.totalorder %s34, 1
      %p314 = por %p312, %p313
      %p315 = scmp.ne.s32.totalorder %s306, %s307
      %p316 = scmp.eq.s32.totalorder %s34, 0
      %p317 = por %p315, %p316
      %p318 = scmp.ne.s32.totalorder %s306, %s307
      %p319 = scmp.eq.s32.totalorder %s35, 1
      %p320 = por %p318, %p319
      %p322 = scmp.ne.s32.totalorder %s307, %s321
      %p323 = scmp.eq.s32.totalorder %s35, 0
      %p324 = por %p322, %p323
      %s326 = sadd.s32 %s325, 1
      %p329 = scmp.eq.s32.totalorder %s29, 1
      %p330 = scmp.ne.s32.totalorder %s325, %s327
      %p331 = scmp.eq.s32.totalorder %s29, 0
      %p332 = por %p330, %p331
      %p333 = scmp.ne.s32.totalorder %s325, %s327
      %p334 = scmp.eq.s32.totalorder %s34, 1
      %p335 = por %p333, %p334
      %p336 = scmp.ne.s32.totalorder %s327, %s328
      %p337 = scmp.eq.s32.totalorder %s34, 0
      %p338 = por %p336, %p337
      %p339 = scmp.ne.s32.totalorder %s327, %s328
      %p340 = scmp.eq.s32.totalorder %s35, 1
      %p341 = por %p339, %p340
      %p343 = scmp.ne.s32.totalorder %s328, %s342
      %p344 = scmp.eq.s32.totalorder %s35, 0
      %p345 = por %p343, %p344
      %s347 = sadd.s32 %s346, 1
      %p350 = scmp.eq.s32.totalorder %s29, 1
      %p351 = scmp.ne.s32.totalorder %s346, %s348
      %p352 = scmp.eq.s32.totalorder %s29, 0
      %p353 = por %p351, %p352
      %p354 = scmp.ne.s32.totalorder %s346, %s348
      %p355 = scmp.eq.s32.totalorder %s34, 1
      %p356 = por %p354, %p355
      %p357 = scmp.ne.s32.totalorder %s348, %s349
      %p358 = scmp.eq.s32.totalorder %s34, 0
      %p359 = por %p357, %p358
      %p360 = scmp.ne.s32.totalorder %s348, %s349
      %p361 = scmp.eq.s32.totalorder %s35, 1
      %p362 = por %p360, %p361
      %p364 = scmp.ne.s32.totalorder %s349, %s363
      %p365 = scmp.eq.s32.totalorder %s35, 0
      %p366 = por %p364, %p365
      %s368 = sadd.s32 %s367, 1
      %p371 = scmp.eq.s32.totalorder %s29, 1
      %p372 = scmp.ne.s32.totalorder %s367, %s369
      %p373 = scmp.eq.s32.totalorder %s29, 0
      %p374 = por %p372, %p373
      %p375 = scmp.ne.s32.totalorder %s367, %s369
      %p376 = scmp.eq.s32.totalorder %s34, 1
      %p377 = por %p375, %p376
      %p378 = scmp.ne.s32.totalorder %s369, %s370
      %p379 = scmp.eq.s32.totalorder %s34, 0
      %p380 = por %p378, %p379
      %p381 = scmp.ne.s32.totalorder %s369, %s370
      %p382 = scmp.eq.s32.totalorder %s35, 1
      %p383 = por %p381, %p382
      %p385 = scmp.ne.s32.totalorder %s370, %s384
      %p386 = scmp.eq.s32.totalorder %s35, 0
      %p387 = por %p385, %p386
      %s389 = sadd.s32 %s388, 1
      %p392 = scmp.eq.s32.totalorder %s29, 1
      %p393 = scmp.ne.s32.totalorder %s388, %s390
      %p394 = scmp.eq.s32.totalorder %s29, 0
      %p395 = por %p393, %p394
      %p396 = scmp.ne.s32.totalorder %s388, %s390
      %p397 = scmp.eq.s32.totalorder %s34, 1
      %p398 = por %p396, %p397
      %p399 = scmp.ne.s32.totalorder %s390, %s391
      %p400 = scmp.eq.s32.totalorder %s34, 0
      %p401 = por %p399, %p400
      %p402 = scmp.ne.s32.totalorder %s390, %s391
      %p403 = scmp.eq.s32.totalorder %s35, 1
      %p404 = por %p402, %p403
      %p406 = scmp.ne.s32.totalorder %s391, %s405
      %p407 = scmp.eq.s32.totalorder %s35, 0
      %p408 = por %p406, %p407
      %s410 = sadd.s32 %s409, 1
      %p413 = scmp.eq.s32.totalorder %s29, 1
      %p414 = scmp.ne.s32.totalorder %s409, %s411
      %p415 = scmp.eq.s32.totalorder %s29, 0
      %p416 = por %p414, %p415
      %p417 = scmp.ne.s32.totalorder %s409, %s411
      %p418 = scmp.eq.s32.totalorder %s34, 1
      %p419 = por %p417, %p418
      %p420 = scmp.ne.s32.totalorder %s411, %s412
      %p421 = scmp.eq.s32.totalorder %s34, 0
      %p422 = por %p420, %p421
      %p423 = scmp.ne.s32.totalorder %s411, %s412
      %p424 = scmp.eq.s32.totalorder %s35, 1
      %p425 = por %p423, %p424
      %p427 = scmp.ne.s32.totalorder %s412, %s426
      %p428 = scmp.eq.s32.totalorder %s35, 0
      %p429 = por %p427, %p428
      %s431 = sadd.s32 %s430, 1
      %p434 = scmp.eq.s32.totalorder %s29, 1
      %p435 = scmp.ne.s32.totalorder %s430, %s432
      %p436 = scmp.eq.s32.totalorder %s29, 0
      %p437 = por %p435, %p436
      %p438 = scmp.ne.s32.totalorder %s430, %s432
      %p439 = scmp.eq.s32.totalorder %s34, 1
      %p440 = por %p438, %p439
      %p441 = scmp.ne.s32.totalorder %s432, %s433
      %p442 = scmp.eq.s32.totalorder %s34, 0
      %p443 = por %p441, %p442
      %p444 = scmp.ne.s32.totalorder %s432, %s433
      %p445 = scmp.eq.s32.totalorder %s35, 1
      %p446 = por %p444, %p445
      %p448 = scmp.ne.s32.totalorder %s433, %s447
      %p449 = scmp.eq.s32.totalorder %s35, 0
      %p450 = por %p448, %p449
      %s452 = sadd.s32 %s451, 1
      %p455 = scmp.eq.s32.totalorder %s29, 1
      %p456 = scmp.ne.s32.totalorder %s451, %s453
      %p457 = scmp.eq.s32.totalorder %s29, 0
      %p458 = por %p456, %p457
      %p459 = scmp.ne.s32.totalorder %s451, %s453
      %p460 = scmp.eq.s32.totalorder %s34, 1
      %p461 = por %p459, %p460
      %p462 = scmp.ne.s32.totalorder %s453, %s454
      %p463 = scmp.eq.s32.totalorder %s34, 0
      %p464 = por %p462, %p463
      %p465 = scmp.ne.s32.totalorder %s453, %s454
      %p466 = scmp.eq.s32.totalorder %s35, 1
      %p467 = por %p465, %p466
      %p469 = scmp.ne.s32.totalorder %s454, %s468
      %p470 = scmp.eq.s32.totalorder %s35, 0
      %p471 = por %p469, %p470
      %s472 = ssub.s32 %s29, %s36
      %p473 = scmp.eq.s32.totalorder %s472, 0
      %s475 = sadd.s32 %s474, 1
      %s476 = scalar_select %p473, %s474, %s475
      %p479 = pneg %p473
      %p480 = scmp.eq.s32.totalorder %s29, 1
      %p481 = por %p479, %p480
      %p482 = scmp.ne.s32.totalorder %s474, %s477
      %p483 = scmp.eq.s32.totalorder %s29, 0
      %p484 = por %p482, %p483
      %p485 = scmp.ne.s32.totalorder %s474, %s477
      %p486 = scmp.eq.s32.totalorder %s34, 1
      %p487 = por %p485, %p486
      %p488 = scmp.ne.s32.totalorder %s477, %s478
      %p489 = scmp.eq.s32.totalorder %s34, 0
      %p490 = por %p488, %p489
      %p491 = scmp.ne.s32.totalorder %s477, %s478
      %p492 = scmp.eq.s32.totalorder %s35, 1
      %p493 = por %p491, %p492
      %p495 = scmp.ne.s32.totalorder %s478, %s494
      %p496 = scmp.eq.s32.totalorder %s35, 0
      %p497 = por %p495, %p496
      %p498 = scmp.le.s32.totalorder 1, %s29
      %p499 = scmp.lt.s32.totalorder %s29, 3
      %p500 = pnand %p498, %p499
      %p501 = pneg %p500
      // Predicated region
      $region9: #{seq_transformer_forward.1} parent=5 // pred_check
        _
      $region10: #{seq_transformer_forward.1} parent=5 // pred_check_branch
        %503 = sbr.rel (%p500) target = $region12
      $region11: #{seq_transformer_forward.1} parent=5 // pred_region
        %s504 = ssub.s32 %s29, 1
        // Predicated region
        $region13: #{seq_transformer_forward.1} parent=11 // pred_check
          %p505 = pneg %p102
        $region14: #{seq_transformer_forward.1} parent=11 // pred_check_branch
          %507 = sbr.rel (%p505) target = $region16
        $region15: #{seq_transformer_forward.1} parent=11 // pred_region
          _
        $region16: #{seq_transformer_forward.1} parent=11 // pred_fallthru
          _
        // Predicated region
        $region17: #{seq_transformer_forward.1} parent=11 // pred_check
          %p508 = pneg %p123
        $region18: #{seq_transformer_forward.1} parent=11 // pred_check_branch
          %510 = sbr.rel (%p508) target = $region20
        $region19: #{seq_transformer_forward.1} parent=11 // pred_region
          _
        $region20: #{seq_transformer_forward.1} parent=11 // pred_fallthru
          _
        // Predicated region
        $region21: #{seq_transformer_forward.1} parent=11 // pred_check
          %p511 = pneg %p170
        $region22: #{seq_transformer_forward.1} parent=11 // pred_check_branch
          %513 = sbr.rel (%p511) target = $region24
        $region23: #{seq_transformer_forward.1} parent=11 // pred_region
          _
        $region24: #{seq_transformer_forward.1} parent=11 // pred_fallthru
          _
        // Predicated region
        $region25: #{seq_transformer_forward.1} parent=11 // pred_check
          %p514 = pneg %p191
        $region26: #{seq_transformer_forward.1} parent=11 // pred_check_branch
          %516 = sbr.rel (%p514) target = $region28
        $region27: #{seq_transformer_forward.1} parent=11 // pred_region
          _
        $region28: #{seq_transformer_forward.1} parent=11 // pred_fallthru
          _
        // Predicated region
        $region29: #{seq_transformer_forward.1} parent=11 // pred_check
          %p517 = pneg %p212
        $region30: #{seq_transformer_forward.1} parent=11 // pred_check_branch
          %519 = sbr.rel (%p517) target = $region32
        $region31: #{seq_transformer_forward.1} parent=11 // pred_region
          _
        $region32: #{seq_transformer_forward.1} parent=11 // pred_fallthru
          _
        // Predicated region
        $region33: #{seq_transformer_forward.1} parent=11 // pred_check
          %p520 = pneg %p233
        $region34: #{seq_transformer_forward.1} parent=11 // pred_check_branch
          %522 = sbr.rel (%p520) target = $region36
        $region35: #{seq_transformer_forward.1} parent=11 // pred_region
          _
        $region36: #{seq_transformer_forward.1} parent=11 // pred_fallthru
          _
        // Predicated region
        $region37: #{seq_transformer_forward.1} parent=11 // pred_check
          %p523 = pneg %p254
        $region38: #{seq_transformer_forward.1} parent=11 // pred_check_branch
          %525 = sbr.rel (%p523) target = $region40
        $region39: #{seq_transformer_forward.1} parent=11 // pred_region
          _
        $region40: #{seq_transformer_forward.1} parent=11 // pred_fallthru
          _
        // Predicated region
        $region41: #{seq_transformer_forward.1} parent=11 // pred_check
          %p526 = pneg %p275
        $region42: #{seq_transformer_forward.1} parent=11 // pred_check_branch
          %528 = sbr.rel (%p526) target = $region44
        $region43: #{seq_transformer_forward.1} parent=11 // pred_region
          _
        $region44: #{seq_transformer_forward.1} parent=11 // pred_fallthru
          _
        // Predicated region
        $region45: #{seq_transformer_forward.1} parent=11 // pred_check
          %p529 = pneg %p296
        $region46: #{seq_transformer_forward.1} parent=11 // pred_check_branch
          %531 = sbr.rel (%p529) target = $region48
        $region47: #{seq_transformer_forward.1} parent=11 // pred_region
          _
        $region48: #{seq_transformer_forward.1} parent=11 // pred_fallthru
          _
        // Predicated region
        $region49: #{seq_transformer_forward.1} parent=11 // pred_check
          %p532 = pneg %p317
        $region50: #{seq_transformer_forward.1} parent=11 // pred_check_branch
          %534 = sbr.rel (%p532) target = $region52
        $region51: #{seq_transformer_forward.1} parent=11 // pred_region
          _
        $region52: #{seq_transformer_forward.1} parent=11 // pred_fallthru
          _
        // Predicated region
        $region53: #{seq_transformer_forward.1} parent=11 // pred_check
          %p535 = pneg %p338
        $region54: #{seq_transformer_forward.1} parent=11 // pred_check_branch
          %537 = sbr.rel (%p535) target = $region56
        $region55: #{seq_transformer_forward.1} parent=11 // pred_region
          _
        $region56: #{seq_transformer_forward.1} parent=11 // pred_fallthru
          _
        // Predicated region
        $region57: #{seq_transformer_forward.1} parent=11 // pred_check
          %p538 = pneg %p359
        $region58: #{seq_transformer_forward.1} parent=11 // pred_check_branch
          %540 = sbr.rel (%p538) target = $region60
        $region59: #{seq_transformer_forward.1} parent=11 // pred_region
          _
        $region60: #{seq_transformer_forward.1} parent=11 // pred_fallthru
          _
        // Predicated region
        $region61: #{seq_transformer_forward.1} parent=11 // pred_check
          %p541 = pneg %p380
        $region62: #{seq_transformer_forward.1} parent=11 // pred_check_branch
          %543 = sbr.rel (%p541) target = $region64
        $region63: #{seq_transformer_forward.1} parent=11 // pred_region
          _
        $region64: #{seq_transformer_forward.1} parent=11 // pred_fallthru
          _
        // Predicated region
        $region65: #{seq_transformer_forward.1} parent=11 // pred_check
          %p544 = pneg %p401
        $region66: #{seq_transformer_forward.1} parent=11 // pred_check_branch
          %546 = sbr.rel (%p544) target = $region68
        $region67: #{seq_transformer_forward.1} parent=11 // pred_region
          _
        $region68: #{seq_transformer_forward.1} parent=11 // pred_fallthru
          _
        // Predicated region
        $region69: #{seq_transformer_forward.1} parent=11 // pred_check
          %p547 = pneg %p422
        $region70: #{seq_transformer_forward.1} parent=11 // pred_check_branch
          %549 = sbr.rel (%p547) target = $region72
        $region71: #{seq_transformer_forward.1} parent=11 // pred_region
          _
        $region72: #{seq_transformer_forward.1} parent=11 // pred_fallthru
          _
        // Predicated region
        $region73: #{seq_transformer_forward.1} parent=11 // pred_check
          %p550 = pneg %p443
        $region74: #{seq_transformer_forward.1} parent=11 // pred_check_branch
          %552 = sbr.rel (%p550) target = $region76
        $region75: #{seq_transformer_forward.1} parent=11 // pred_region
          _
        $region76: #{seq_transformer_forward.1} parent=11 // pred_fallthru
          _
        // Predicated region
        $region77: #{seq_transformer_forward.1} parent=11 // pred_check
          %p553 = pneg %p464
        $region78: #{seq_transformer_forward.1} parent=11 // pred_check_branch
          %555 = sbr.rel (%p553) target = $region80
        $region79: #{seq_transformer_forward.1} parent=11 // pred_region
          _
        $region80: #{seq_transformer_forward.1} parent=11 // pred_fallthru
          _
      $region12: #{seq_transformer_forward.1} parent=5 // pred_fallthru
        _
      %p556 = scmp.lt.s32.totalorder %s29, 2
      // Predicated region
      $region81: #{seq_transformer_forward.1} parent=5 // pred_check
        %p557 = pneg %p556
      $region82: #{seq_transformer_forward.1} parent=5 // pred_check_branch
        %559 = sbr.rel (%p557) target = $region84
      $region83: #{seq_transformer_forward.1} parent=5 // pred_region
        // Predicated region
        $region85: #{seq_transformer_forward.1} parent=83 // pred_check
          %p560 = pneg %p49
        $region86: #{seq_transformer_forward.1} parent=83 // pred_check_branch
          %562 = sbr.rel (%p560) target = $region88
        $region87: #{seq_transformer_forward.1} parent=83 // pred_region
          %p563 = scmp.lt.s32.totalorder %s29, 1
          %s564 = scalar_select %p563, %s29, 1
          %s565 = smul.addr %s564, 8
          %s566 = scalar_lea.vmem %s0, %s565
        $region88: #{seq_transformer_forward.1} parent=83 // pred_fallthru
          _
        // Predicated region
        $region89: #{seq_transformer_forward.1} parent=83 // pred_check
          %p567 = pneg %p75
        $region90: #{seq_transformer_forward.1} parent=83 // pred_check_branch
          %569 = sbr.rel (%p567) target = $region92
        $region91: #{seq_transformer_forward.1} parent=83 // pred_region
          %p570 = scmp.lt.s32.totalorder %s29, 1
          %s571 = scalar_select %p570, %s29, 1
          %s572 = scalar_lea.vmem %s1, %s571
        $region92: #{seq_transformer_forward.1} parent=83 // pred_fallthru
          _
        // Predicated region
        $region93: #{seq_transformer_forward.1} parent=83 // pred_check
          %p573 = pneg %p143
        $region94: #{seq_transformer_forward.1} parent=83 // pred_check_branch
          %575 = sbr.rel (%p573) target = $region96
        $region95: #{seq_transformer_forward.1} parent=83 // pred_region
          %p576 = scmp.lt.s32.totalorder %s29, 1
          %s577 = scalar_select %p576, %s29, 1
          %s578 = smul.addr %s577, 2
          %s579 = scalar_lea.vmem %s4, %s578
        $region96: #{seq_transformer_forward.1} parent=83 // pred_fallthru
          _
      $region84: #{seq_transformer_forward.1} parent=5 // pred_fallthru
        _
      %p580 = scmp.le.s32.totalorder 1, %s29
      %p581 = scmp.lt.s32.totalorder %s29, 3
      %p582 = pnand %p580, %p581
      %p583 = pneg %p582
      // Predicated region
      $region97: #{seq_transformer_forward.1} parent=5 // pred_check
        _
      $region98: #{seq_transformer_forward.1} parent=5 // pred_check_branch
        %585 = sbr.rel (%p582) target = $region100
      $region99: #{seq_transformer_forward.1} parent=5 // pred_region
        %s586 = ssub.s32 %s29, 1
        %p587 = scmp.lt.s32.totalorder %s34, 1
        %s588 = scalar_select %p587, %s34, 1
        %s589 = smul.addr %s588, 8
        %s590 = scalar_lea.vmem %s0, %s589
        %p591 = pneg %p55
        %p592 = pneg %p52
        %p593 = scmp.lt.s32.totalorder %s34, 1
        %s594 = scalar_select %p593, %s34, 1
        %s595 = scalar_lea.vmem %s1, %s594
        %p596 = pneg %p81
        %p597 = pneg %p78
        %p598 = pneg %p102
        %p599 = pneg %p99
        %p600 = pneg %p123
        %p601 = pneg %p120
        %p602 = scmp.lt.s32.totalorder %s34, 1
        %s603 = scalar_select %p602, %s34, 1
        %s604 = smul.addr %s603, 2
        %s605 = scalar_lea.vmem %s4, %s604
        %p606 = pneg %p149
        %p607 = pneg %p146
        %p608 = pneg %p170
        %p609 = pneg %p167
        %p610 = pneg %p191
        %p611 = pneg %p188
        %p612 = pneg %p212
        %p613 = pneg %p209
        %p614 = pneg %p233
        %p615 = pneg %p230
        %p616 = pneg %p254
        %p617 = pneg %p251
        %p618 = pneg %p275
        %p619 = pneg %p272
        %p620 = pneg %p296
        %p621 = pneg %p293
        %p622 = pneg %p317
        %p623 = pneg %p314
        %p624 = pneg %p338
        %p625 = pneg %p335
        %p626 = pneg %p359
        %p627 = pneg %p356
        %p628 = pneg %p380
        %p629 = pneg %p377
        %p630 = pneg %p401
        %p631 = pneg %p398
        %p632 = pneg %p422
        %p633 = pneg %p419
        %p634 = pneg %p443
        %p635 = pneg %p440
        %p636 = pneg %p464
        %p637 = pneg %p461
        %p638 = pneg %p490
        %p639 = pneg %p487
        %s640 = sand.u32 %s477, 1
        %s641 = scalar_lea.sflag [#allocation3], %s640
        %s642 = sand.u32 %s477, 1
        %s643 = smul.addr %s642, 8
        %s644 = scalar_lea.vmem [#allocation2], %s643
        %p645 = scmp.lt.s32.totalorder %s34, 1
        %s646 = scalar_select %p645, %s34, 1
        %s647 = smul.addr %s646, 8
        %s648 = scalar_lea.vmem %s0, %s647
        %p649 = scmp.lt.s32.totalorder %s34, 1
        %s650 = scalar_select %p649, %s34, 1
        %s651 = scalar_lea.vmem %s1, %s650
        %p652 = scmp.lt.s32.totalorder %s34, 1
        %s653 = scalar_select %p652, %s34, 1
        %s654 = smul.addr %s653, 2
        %s655 = scalar_lea.vmem %s4, %s654
        %v656 = vld [vmem:[%s648] sm:$0xff]
        %v657 = vld [vmem:[%s2] sm:$0xff]
        %v658 = vld [vmem:[%s2 + $0x8] sm:$0xff]
        %v659 = vld [vmem:[%s3] sm:$0x1]
        %v661 = vlaneseq
        %v662 = vshrl.u32 %v661, 7
        %v663 = vsub.s32 0, %v662
        %v664 = vrot.slane %v659, %v663
        %vm666 = vcmask 130048
        %v668 = vsel %vm666, %v656, 0
        %670 = vmatprep.subr.mxu0 0.0
        %671 = vmatpush1.msra.mxu0 %v657
        %672 = vmatprep.subr.mxu0 0.0
        %673 = vmatpush1.msra.mxu0 %v658
        %674 = vmatprep.subr.mxu0 0.0
        %675 = vmatpush1.msra.mxu0 0.0
        %676 = vmatprep.subr.mxu0 0.0
        %677 = vmatpush1.msra.mxu0 0.0
        %678 = vmatprep.subr.mxu0 0.0
        %679 = vmatpush1.msra.mxu0 0.0
        %680 = vmatprep.subr.mxu0 0.0
        %681 = vmatpush1.msra.mxu0 0.0
        %682 = vmatprep.subr.mxu0 0.0
        %683 = vmatpush1.msra.mxu0 0.0
        %684 = vmatprep.subr.mxu0 0.0
        %685 = vmatpush1.msra.mxu0 0.0
        %686 = vmatprep.subr.mxu0 0.0
        %687 = vmatpush1.msra.mxu0 0.0
        %688 = vmatprep.subr.mxu0 0.0
        %689 = vmatpush1.msra.mxu0 0.0
        %690 = vmatprep.subr.mxu0 0.0
        %691 = vmatpush1.msra.mxu0 0.0
        %692 = vmatprep.subr.mxu0 0.0
        %693 = vmatpush1.msra.mxu0 0.0
        %694 = vmatprep.subr.mxu0 0.0
        %695 = vmatpush1.msra.mxu0 0.0
        %696 = vmatprep.subr.mxu0 0.0
        %697 = vmatpush1.msra.mxu0 0.0
        %698 = vmatprep.subr.mxu0 0.0
        %699 = vmatpush1.msra.mxu0 0.0
        %700 = vmatprep.subr.mxu0 0.0
        %701 = vmatpush1.msra.mxu0 0.0
        %702 = vmatprep.subr.mxu0 0.0
        %703 = vmatpush1.msra.mxu0 0.0
        %704 = vmatprep.subr.mxu0 0.0
        %705 = vmatpush1.msra.mxu0 0.0
        %706 = vmatprep.subr.mxu0 0.0
        %707 = vmatpush1.msra.mxu0 0.0
        %708 = vmatprep.subr.mxu0 0.0
        %709 = vmatpush1.msra.mxu0 0.0
        %710 = vmatprep.subr.mxu0 0.0
        %711 = vmatpush1.msra.mxu0 0.0
        %712 = vmatprep.subr.mxu0 0.0
        %713 = vmatpush1.msra.mxu0 0.0
        %714 = vmatprep.subr.mxu0 0.0
        %715 = vmatpush1.msra.mxu0 0.0
        %716 = vmatprep.subr.mxu0 0.0
        %717 = vmatpush1.msra.mxu0 0.0
        %718 = vmatprep.subr.mxu0 0.0
        %719 = vmatpush1.msra.mxu0 0.0
        %720 = vmatprep.subr.mxu0 0.0
        %721 = vmatpush1.msra.mxu0 0.0
        %722 = vmatprep.subr.mxu0 0.0
        %723 = vmatpush1.msra.mxu0 0.0
        %724 = vmatprep.subr.mxu0 0.0
        %725 = vmatpush1.msra.mxu0 0.0
        %726 = vmatprep.subr.mxu0 0.0
        %727 = vmatpush1.msra.mxu0 0.0
        %728 = vmatprep.subr.mxu0 0.0
        %729 = vmatpush1.msra.mxu0 0.0
        %730 = vmatprep.subr.mxu0 0.0
        %731 = vmatpush1.msra.mxu0 0.0
        %732 = vmatprep.subr.mxu0 0.0
        %733 = vmatpush1.msra.mxu0 0.0
        %734 = vmatprep.mubr.f32.mxu0 0.0
        %735 = vmatmul.mubr.f32.gmra.mrb[0].mxu0 %v668
        %v736 = vpop.f32.mrb[0].mxu0
        %v737 = vadd.f32 %v664, %v736
        %v738 = vpop.f32.mrb[0].mxu0
        %739 = vdwg.mxu0
        %v740 = vld [vmem:[%s651] sm:$0x1]
        %v741 = vld [vmem:[%s655] sm:$0x1]
        %v742 = vlaneseq
        %v743 = vshrl.u32 %v742, 7
        %v744 = vsub.s32 0, %v743
        %v745 = vrot.slane %v741, %v744
        %v746 = vadd.f32 %v737, %v745
        %v747 = vld [vmem:[%s5] sm:$0xff]
        %v748 = vadd.f32 %v746, %v747
        %v749 = vld [vmem:[%s6] sm:$0xff]
        %v750 = vld [vmem:[%s6 + $0x8] sm:$0xff]
        %v751 = vld [vmem:[%s6 + $0x10] sm:$0xff]
        %v752 = vld [vmem:[%s6 + $0x18] sm:$0xff]
        %v753 = vld [vmem:[%s7] sm:$0x1]
        %v755 = vlaneseq
        %v756 = vshrl.u32 %v755, 7
        %v757 = vsub.s32 0, %v756
        %v758 = vrot.slane %v753, %v757
        %vm760 = vcmask 261120
        %v762 = vsel %vm760, %v748, 0
        %764 = vmatprep.subr.mxu0 0.0
        %765 = vmatpush1.msra.mxu0 %v749
        %766 = vmatprep.subr.mxu0 0.0
        %767 = vmatpush1.msra.mxu0 %v750
        %768 = vmatprep.subr.mxu0 0.0
        %769 = vmatpush1.msra.mxu0 %v751
        %770 = vmatprep.subr.mxu0 0.0
        %771 = vmatpush1.msra.mxu0 %v752
        %772 = vmatprep.subr.mxu0 0.0
        %773 = vmatpush1.msra.mxu0 0.0
        %774 = vmatprep.subr.mxu0 0.0
        %775 = vmatpush1.msra.mxu0 0.0
        %776 = vmatprep.subr.mxu0 0.0
        %777 = vmatpush1.msra.mxu0 0.0
        %778 = vmatprep.subr.mxu0 0.0
        %779 = vmatpush1.msra.mxu0 0.0
        %780 = vmatprep.subr.mxu0 0.0
        %781 = vmatpush1.msra.mxu0 0.0
        %782 = vmatprep.subr.mxu0 0.0
        %783 = vmatpush1.msra.mxu0 0.0
        %784 = vmatprep.subr.mxu0 0.0
        %785 = vmatpush1.msra.mxu0 0.0
        %786 = vmatprep.subr.mxu0 0.0
        %787 = vmatpush1.msra.mxu0 0.0
        %788 = vmatprep.subr.mxu0 0.0
        %789 = vmatpush1.msra.mxu0 0.0
        %790 = vmatprep.subr.mxu0 0.0
        %791 = vmatpush1.msra.mxu0 0.0
        %792 = vmatprep.subr.mxu0 0.0
        %793 = vmatpush1.msra.mxu0 0.0
        %794 = vmatprep.subr.mxu0 0.0
        %795 = vmatpush1.msra.mxu0 0.0
        %796 = vmatprep.subr.mxu0 0.0
        %797 = vmatpush1.msra.mxu0 0.0
        %798 = vmatprep.subr.mxu0 0.0
        %799 = vmatpush1.msra.mxu0 0.0
        %800 = vmatprep.subr.mxu0 0.0
        %801 = vmatpush1.msra.mxu0 0.0
        %802 = vmatprep.subr.mxu0 0.0
        %803 = vmatpush1.msra.mxu0 0.0
        %804 = vmatprep.subr.mxu0 0.0
        %805 = vmatpush1.msra.mxu0 0.0
        %806 = vmatprep.subr.mxu0 0.0
        %807 = vmatpush1.msra.mxu0 0.0
        %808 = vmatprep.subr.mxu0 0.0
        %809 = vmatpush1.msra.mxu0 0.0
        %810 = vmatprep.subr.mxu0 0.0
        %811 = vmatpush1.msra.mxu0 0.0
        %812 = vmatprep.subr.mxu0 0.0
        %813 = vmatpush1.msra.mxu0 0.0
        %814 = vmatprep.subr.mxu0 0.0
        %815 = vmatpush1.msra.mxu0 0.0
        %816 = vmatprep.subr.mxu0 0.0
        %817 = vmatpush1.msra.mxu0 0.0
        %818 = vmatprep.subr.mxu0 0.0
        %819 = vmatpush1.msra.mxu0 0.0
        %820 = vmatprep.subr.mxu0 0.0
        %821 = vmatpush1.msra.mxu0 0.0
        %822 = vmatprep.subr.mxu0 0.0
        %823 = vmatpush1.msra.mxu0 0.0
        %824 = vmatprep.subr.mxu0 0.0
        %825 = vmatpush1.msra.mxu0 0.0
        %826 = vmatprep.subr.mxu0 0.0
        %827 = vmatpush1.msra.mxu0 0.0
        %828 = vmatprep.mubr.f32.mxu0 0.0
        %829 = vmatmul.mubr.f32.gmra.mrb[0].mxu0 %v762
        %v830 = vpop.f32.mrb[0].mxu0
        %v831 = vadd.f32 %v758, %v830
        %v832 = vpop.f32.mrb[0].mxu0
        %833 = vdwg.mxu0
        %v835 = vlaneseq
        %v836 = vshrl.u32 %v835, 7
        %v837 = vsub.s32 0, %v836
        %v838 = vrot.slane %v740, %v837
        %841 = vrot.lane.b32.xlu0 %v831, 96
        %v842 = vpop.permute.xlu0 %841
        %vm843 = vcmask 64512
        %v844 = vsel %vm843, %v831, 0
        %v846 = vsel %vm843, %v842, 0
        %848 = vmatprep.subr.mxu0 0.0
        %849 = vmatpush1.xpose.msra.mxu0 %v846
        %850 = vmatprep.subr.mxu0 0.0
        %851 = vmatpush1.xpose.msra.mxu0 0.0
        %852 = vmatprep.subr.mxu0 0.0
        %853 = vmatpush1.xpose.msra.mxu0 0.0
        %854 = vmatprep.subr.mxu0 0.0
        %855 = vmatpush1.xpose.msra.mxu0 0.0
        %856 = vmatprep.subr.mxu0 0.0
        %857 = vmatpush1.xpose.msra.mxu0 0.0
        %858 = vmatprep.subr.mxu0 0.0
        %859 = vmatpush1.xpose.msra.mxu0 0.0
        %860 = vmatprep.subr.mxu0 0.0
        %861 = vmatpush1.xpose.msra.mxu0 0.0
        %862 = vmatprep.subr.mxu0 0.0
        %863 = vmatpush1.xpose.msra.mxu0 0.0
        %864 = vmatprep.subr.mxu0 0.0
        %865 = vmatpush1.xpose.msra.mxu0 0.0
        %866 = vmatprep.subr.mxu0 0.0
        %867 = vmatpush1.xpose.msra.mxu0 0.0
        %868 = vmatprep.subr.mxu0 0.0
        %869 = vmatpush1.xpose.msra.mxu0 0.0
        %870 = vmatprep.subr.mxu0 0.0
        %871 = vmatpush1.xpose.msra.mxu0 0.0
        %872 = vmatprep.subr.mxu0 0.0
        %873 = vmatpush1.xpose.msra.mxu0 0.0
        %874 = vmatprep.subr.mxu0 0.0
        %875 = vmatpush1.xpose.msra.mxu0 0.0
        %876 = vmatprep.subr.mxu0 0.0
        %877 = vmatpush1.xpose.msra.mxu0 0.0
        %878 = vmatprep.subr.mxu0 0.0
        %879 = vmatpush1.xpose.msra.mxu0 0.0
        %880 = vmatprep.subr.mxu0 0.0
        %881 = vmatpush1.xpose.msra.mxu0 0.0
        %882 = vmatprep.subr.mxu0 0.0
        %883 = vmatpush1.xpose.msra.mxu0 0.0
        %884 = vmatprep.subr.mxu0 0.0
        %885 = vmatpush1.xpose.msra.mxu0 0.0
        %886 = vmatprep.subr.mxu0 0.0
        %887 = vmatpush1.xpose.msra.mxu0 0.0
        %888 = vmatprep.subr.mxu0 0.0
        %889 = vmatpush1.xpose.msra.mxu0 0.0
        %890 = vmatprep.subr.mxu0 0.0
        %891 = vmatpush1.xpose.msra.mxu0 0.0
        %892 = vmatprep.subr.mxu0 0.0
        %893 = vmatpush1.xpose.msra.mxu0 0.0
        %894 = vmatprep.subr.mxu0 0.0
        %895 = vmatpush1.xpose.msra.mxu0 0.0
        %896 = vmatprep.subr.mxu0 0.0
        %897 = vmatpush1.xpose.msra.mxu0 0.0
        %898 = vmatprep.subr.mxu0 0.0
        %899 = vmatpush1.xpose.msra.mxu0 0.0
        %900 = vmatprep.subr.mxu0 0.0
        %901 = vmatpush1.xpose.msra.mxu0 0.0
        %902 = vmatprep.subr.mxu0 0.0
        %903 = vmatpush1.xpose.msra.mxu0 0.0
        %904 = vmatprep.subr.mxu0 0.0
        %905 = vmatpush1.xpose.msra.mxu0 0.0
        %906 = vmatprep.subr.mxu0 0.0
        %907 = vmatpush1.xpose.msra.mxu0 0.0
        %908 = vmatprep.subr.mxu0 0.0
        %909 = vmatpush1.xpose.msra.mxu0 0.0
        %910 = vmatprep.subr.mxu0 0.0
        %911 = vmatpush1.xpose.msra.mxu0 0.0
        %912 = vmatprep.mubr.f32.mxu0 0.0
        %913 = vmatmul.mubr.f32.gmra.mrb[0].mxu0 %v844
        %v914 = vpop.f32.mrb[0].mxu0
        %v915 = vadd.f32 %v838, %v914
        %v916 = vpop.f32.mrb[0].mxu0
        %917 = vdwg.mxu0
        %v918 = vsel %vm843, %v915, -inf
        %919 = vmax.xlane.f32.xlu0 %v918
        %v920 = vpop.xlane.xlu0 %919
        %v921 = vsub.f32 %v915, %v920
        %v922 = vmul.f32 %v921, 1.442695
        %v923 = vpow.pop %v922
        %v924 = vsel %vm843, %v923, 0.0
        %925 = vadd.xlane.f32.xlu0 %v924
        %v926 = vpop.xlane.xlu0 %925
        %v927 = vrcp.pop %v926
        %v928 = vmul.f32 %v923, %v927
        %929 = vrot.lane.b32.xlu0 %v831, 64
        %v930 = vpop.permute.xlu0 %929
        %v933 = vsel %vm843, %v928, 0
        %935 = vmatprep.subr.mxu0 0.0
        %936 = vmatpush1.msra.mxu0 %v930
        %937 = vmatprep.subr.mxu0 0.0
        %938 = vmatpush1.msra.mxu0 0.0
        %939 = vmatprep.subr.mxu0 0.0
        %940 = vmatpush1.msra.mxu0 0.0
        %941 = vmatprep.subr.mxu0 0.0
        %942 = vmatpush1.msra.mxu0 0.0
        %943 = vmatprep.subr.mxu0 0.0
        %944 = vmatpush1.msra.mxu0 0.0
        %945 = vmatprep.subr.mxu0 0.0
        %946 = vmatpush1.msra.mxu0 0.0
        %947 = vmatprep.subr.mxu0 0.0
        %948 = vmatpush1.msra.mxu0 0.0
        %949 = vmatprep.subr.mxu0 0.0
        %950 = vmatpush1.msra.mxu0 0.0
        %951 = vmatprep.subr.mxu0 0.0
        %952 = vmatpush1.msra.mxu0 0.0
        %953 = vmatprep.subr.mxu0 0.0
        %954 = vmatpush1.msra.mxu0 0.0
        %955 = vmatprep.subr.mxu0 0.0
        %956 = vmatpush1.msra.mxu0 0.0
        %957 = vmatprep.subr.mxu0 0.0
        %958 = vmatpush1.msra.mxu0 0.0
        %959 = vmatprep.subr.mxu0 0.0
        %960 = vmatpush1.msra.mxu0 0.0
        %961 = vmatprep.subr.mxu0 0.0
        %962 = vmatpush1.msra.mxu0 0.0
        %963 = vmatprep.subr.mxu0 0.0
        %964 = vmatpush1.msra.mxu0 0.0
        %965 = vmatprep.subr.mxu0 0.0
        %966 = vmatpush1.msra.mxu0 0.0
        %967 = vmatprep.subr.mxu0 0.0
        %968 = vmatpush1.msra.mxu0 0.0
        %969 = vmatprep.subr.mxu0 0.0
        %970 = vmatpush1.msra.mxu0 0.0
        %971 = vmatprep.subr.mxu0 0.0
        %972 = vmatpush1.msra.mxu0 0.0
        %973 = vmatprep.subr.mxu0 0.0
        %974 = vmatpush1.msra.mxu0 0.0
        %975 = vmatprep.subr.mxu0 0.0
        %976 = vmatpush1.msra.mxu0 0.0
        %977 = vmatprep.subr.mxu0 0.0
        %978 = vmatpush1.msra.mxu0 0.0
        %979 = vmatprep.subr.mxu0 0.0
        %980 = vmatpush1.msra.mxu0 0.0
        %981 = vmatprep.subr.mxu0 0.0
        %982 = vmatpush1.msra.mxu0 0.0
        %983 = vmatprep.subr.mxu0 0.0
        %984 = vmatpush1.msra.mxu0 0.0
        %985 = vmatprep.subr.mxu0 0.0
        %986 = vmatpush1.msra.mxu0 0.0
        %987 = vmatprep.subr.mxu0 0.0
        %988 = vmatpush1.msra.mxu0 0.0
        %989 = vmatprep.subr.mxu0 0.0
        %990 = vmatpush1.msra.mxu0 0.0
        %991 = vmatprep.subr.mxu0 0.0
        %992 = vmatpush1.msra.mxu0 0.0
        %993 = vmatprep.subr.mxu0 0.0
        %994 = vmatpush1.msra.mxu0 0.0
        %995 = vmatprep.subr.mxu0 0.0
        %996 = vmatpush1.msra.mxu0 0.0
        %997 = vmatprep.subr.mxu0 0.0
        %998 = vmatpush1.msra.mxu0 0.0
        %999 = vmatprep.mubr.f32.mxu0 0.0
        %1000 = vmatmul.mubr.f32.gmra.mrb[0].mxu0 %v933
        %v1001 = vpop.f32.mrb[0].mxu0
        %v1002 = vadd.f32 0.0, %v1001
        %v1003 = vpop.f32.mrb[0].mxu0
        %1004 = vdwg.mxu0
        %v1005 = vld [vmem:[%s8] sm:$0xff]
        %1006 = vrot.lane.b32.xlu0 %v831, 120
        %v1007 = vpop.permute.xlu0 %1006
        %1008 = vrot.lane.b32.xlu0 %v831, 88
        %v1009 = vpop.permute.xlu0 %1008
        %v1010 = vsel %vm843, %v1007, 0
        %v1012 = vsel %vm843, %v1009, 0
        %1014 = vmatprep.subr.mxu0 0.0
        %1015 = vmatpush1.xpose.msra.mxu0 %v1012
        %1016 = vmatprep.subr.mxu0 0.0
        %1017 = vmatpush1.xpose.msra.mxu0 0.0
        %1018 = vmatprep.subr.mxu0 0.0
        %1019 = vmatpush1.xpose.msra.mxu0 0.0
        %1020 = vmatprep.subr.mxu0 0.0
        %1021 = vmatpush1.xpose.msra.mxu0 0.0
        %1022 = vmatprep.subr.mxu0 0.0
        %1023 = vmatpush1.xpose.msra.mxu0 0.0
        %1024 = vmatprep.subr.mxu0 0.0
        %1025 = vmatpush1.xpose.msra.mxu0 0.0
        %1026 = vmatprep.subr.mxu0 0.0
        %1027 = vmatpush1.xpose.msra.mxu0 0.0
        %1028 = vmatprep.subr.mxu0 0.0
        %1029 = vmatpush1.xpose.msra.mxu0 0.0
        %1030 = vmatprep.subr.mxu0 0.0
        %1031 = vmatpush1.xpose.msra.mxu0 0.0
        %1032 = vmatprep.subr.mxu0 0.0
        %1033 = vmatpush1.xpose.msra.mxu0 0.0
        %1034 = vmatprep.subr.mxu0 0.0
        %1035 = vmatpush1.xpose.msra.mxu0 0.0
        %1036 = vmatprep.subr.mxu0 0.0
        %1037 = vmatpush1.xpose.msra.mxu0 0.0
        %1038 = vmatprep.subr.mxu0 0.0
        %1039 = vmatpush1.xpose.msra.mxu0 0.0
        %1040 = vmatprep.subr.mxu0 0.0
        %1041 = vmatpush1.xpose.msra.mxu0 0.0
        %1042 = vmatprep.subr.mxu0 0.0
        %1043 = vmatpush1.xpose.msra.mxu0 0.0
        %1044 = vmatprep.subr.mxu0 0.0
        %1045 = vmatpush1.xpose.msra.mxu0 0.0
        %1046 = vmatprep.subr.mxu0 0.0
        %1047 = vmatpush1.xpose.msra.mxu0 0.0
        %1048 = vmatprep.subr.mxu0 0.0
        %1049 = vmatpush1.xpose.msra.mxu0 0.0
        %1050 = vmatprep.subr.mxu0 0.0
        %1051 = vmatpush1.xpose.msra.mxu0 0.0
        %1052 = vmatprep.subr.mxu0 0.0
        %1053 = vmatpush1.xpose.msra.mxu0 0.0
        %1054 = vmatprep.subr.mxu0 0.0
        %1055 = vmatpush1.xpose.msra.mxu0 0.0
        %1056 = vmatprep.subr.mxu0 0.0
        %1057 = vmatpush1.xpose.msra.mxu0 0.0
        %1058 = vmatprep.subr.mxu0 0.0
        %1059 = vmatpush1.xpose.msra.mxu0 0.0
        %1060 = vmatprep.subr.mxu0 0.0
        %1061 = vmatpush1.xpose.msra.mxu0 0.0
        %1062 = vmatprep.subr.mxu0 0.0
        %1063 = vmatpush1.xpose.msra.mxu0 0.0
        %1064 = vmatprep.subr.mxu0 0.0
        %1065 = vmatpush1.xpose.msra.mxu0 0.0
        %1066 = vmatprep.subr.mxu0 0.0
        %1067 = vmatpush1.xpose.msra.mxu0 0.0
        %1068 = vmatprep.subr.mxu0 0.0
        %1069 = vmatpush1.xpose.msra.mxu0 0.0
        %1070 = vmatprep.subr.mxu0 0.0
        %1071 = vmatpush1.xpose.msra.mxu0 0.0
        %1072 = vmatprep.subr.mxu0 0.0
        %1073 = vmatpush1.xpose.msra.mxu0 0.0
        %1074 = vmatprep.subr.mxu0 0.0
        %1075 = vmatpush1.xpose.msra.mxu0 0.0
        %1076 = vmatprep.subr.mxu0 0.0
        %1077 = vmatpush1.xpose.msra.mxu0 0.0
        %1078 = vmatprep.mubr.f32.mxu0 0.0
        %1079 = vmatmul.mubr.f32.gmra.mrb[0].mxu0 %v1010
        %v1080 = vpop.f32.mrb[0].mxu0
        %v1081 = vadd.f32 %v838, %v1080
        %v1082 = vpop.f32.mrb[0].mxu0
        %1083 = vdwg.mxu0
        %v1084 = vsel %vm843, %v1081, -inf
        %1085 = vmax.xlane.f32.xlu0 %v1084
        %v1086 = vpop.xlane.xlu0 %1085
        %v1087 = vsub.f32 %v1081, %v1086
        %v1088 = vmul.f32 %v1087, 1.442695
        %v1089 = vpow.pop %v1088
        %v1090 = vsel %vm843, %v1089, 0.0
        %1091 = vadd.xlane.f32.xlu0 %v1090
        %v1092 = vpop.xlane.xlu0 %1091
        %v1093 = vrcp.pop %v1092
        %v1094 = vmul.f32 %v1089, %v1093
        %1095 = vrot.lane.b32.xlu0 %v831, 56
        %v1096 = vpop.permute.xlu0 %1095
        %v1099 = vsel %vm843, %v1094, 0
        %1101 = vmatprep.subr.mxu0 0.0
        %1102 = vmatpush1.msra.mxu0 %v1096
        %1103 = vmatprep.subr.mxu0 0.0
        %1104 = vmatpush1.msra.mxu0 0.0
        %1105 = vmatprep.subr.mxu0 0.0
        %1106 = vmatpush1.msra.mxu0 0.0
        %1107 = vmatprep.subr.mxu0 0.0
        %1108 = vmatpush1.msra.mxu0 0.0
        %1109 = vmatprep.subr.mxu0 0.0
        %1110 = vmatpush1.msra.mxu0 0.0
        %1111 = vmatprep.subr.mxu0 0.0
        %1112 = vmatpush1.msra.mxu0 0.0
        %1113 = vmatprep.subr.mxu0 0.0
        %1114 = vmatpush1.msra.mxu0 0.0
        %1115 = vmatprep.subr.mxu0 0.0
        %1116 = vmatpush1.msra.mxu0 0.0
        %1117 = vmatprep.subr.mxu0 0.0
        %1118 = vmatpush1.msra.mxu0 0.0
        %1119 = vmatprep.subr.mxu0 0.0
        %1120 = vmatpush1.msra.mxu0 0.0
        %1121 = vmatprep.subr.mxu0 0.0
        %1122 = vmatpush1.msra.mxu0 0.0
        %1123 = vmatprep.subr.mxu0 0.0
        %1124 = vmatpush1.msra.mxu0 0.0
        %1125 = vmatprep.subr.mxu0 0.0
        %1126 = vmatpush1.msra.mxu0 0.0
        %1127 = vmatprep.subr.mxu0 0.0
        %1128 = vmatpush1.msra.mxu0 0.0
        %1129 = vmatprep.subr.mxu0 0.0
        %1130 = vmatpush1.msra.mxu0 0.0
        %1131 = vmatprep.subr.mxu0 0.0
        %1132 = vmatpush1.msra.mxu0 0.0
        %1133 = vmatprep.subr.mxu0 0.0
        %1134 = vmatpush1.msra.mxu0 0.0
        %1135 = vmatprep.subr.mxu0 0.0
        %1136 = vmatpush1.msra.mxu0 0.0
        %1137 = vmatprep.subr.mxu0 0.0
        %1138 = vmatpush1.msra.mxu0 0.0
        %1139 = vmatprep.subr.mxu0 0.0
        %1140 = vmatpush1.msra.mxu0 0.0
        %1141 = vmatprep.subr.mxu0 0.0
        %1142 = vmatpush1.msra.mxu0 0.0
        %1143 = vmatprep.subr.mxu0 0.0
        %1144 = vmatpush1.msra.mxu0 0.0
        %1145 = vmatprep.subr.mxu0 0.0
        %1146 = vmatpush1.msra.mxu0 0.0
        %1147 = vmatprep.subr.mxu0 0.0
        %1148 = vmatpush1.msra.mxu0 0.0
        %1149 = vmatprep.subr.mxu0 0.0
        %1150 = vmatpush1.msra.mxu0 0.0
        %1151 = vmatprep.subr.mxu0 0.0
        %1152 = vmatpush1.msra.mxu0 0.0
        %1153 = vmatprep.subr.mxu0 0.0
        %1154 = vmatpush1.msra.mxu0 0.0
        %1155 = vmatprep.subr.mxu0 0.0
        %1156 = vmatpush1.msra.mxu0 0.0
        %1157 = vmatprep.subr.mxu0 0.0
        %1158 = vmatpush1.msra.mxu0 0.0
        %1159 = vmatprep.subr.mxu0 0.0
        %1160 = vmatpush1.msra.mxu0 0.0
        %1161 = vmatprep.subr.mxu0 0.0
        %1162 = vmatpush1.msra.mxu0 0.0
        %1163 = vmatprep.subr.mxu0 0.0
        %1164 = vmatpush1.msra.mxu0 0.0
        %1165 = vmatprep.mubr.f32.mxu0 0.0
        %1166 = vmatmul.mubr.f32.gmra.mrb[0].mxu0 %v1099
        %v1167 = vpop.f32.mrb[0].mxu0
        %v1168 = vadd.f32 0.0, %v1167
        %v1169 = vpop.f32.mrb[0].mxu0
        %1170 = vdwg.mxu0
        %s1171 = scalar_lea.vmem %s8, 8
        %v1172 = vld [vmem:[%s1171] sm:$0xff]
        %v1174 = vsel %vm843, %v1168, 0
        %1176 = vmatprep.subr.mxu0 0.0
        %1177 = vmatpush1.msra.mxu0 %v1172
        %1178 = vmatprep.subr.mxu0 0.0
        %1179 = vmatpush1.msra.mxu0 0.0
        %1180 = vmatprep.subr.mxu0 0.0
        %1181 = vmatpush1.msra.mxu0 0.0
        %1182 = vmatprep.subr.mxu0 0.0
        %1183 = vmatpush1.msra.mxu0 0.0
        %1184 = vmatprep.subr.mxu0 0.0
        %1185 = vmatpush1.msra.mxu0 0.0
        %1186 = vmatprep.subr.mxu0 0.0
        %1187 = vmatpush1.msra.mxu0 0.0
        %1188 = vmatprep.subr.mxu0 0.0
        %1189 = vmatpush1.msra.mxu0 0.0
        %1190 = vmatprep.subr.mxu0 0.0
        %1191 = vmatpush1.msra.mxu0 0.0
        %1192 = vmatprep.subr.mxu0 0.0
        %1193 = vmatpush1.msra.mxu0 0.0
        %1194 = vmatprep.subr.mxu0 0.0
        %1195 = vmatpush1.msra.mxu0 0.0
        %1196 = vmatprep.subr.mxu0 0.0
        %1197 = vmatpush1.msra.mxu0 0.0
        %1198 = vmatprep.subr.mxu0 0.0
        %1199 = vmatpush1.msra.mxu0 0.0
        %1200 = vmatprep.subr.mxu0 0.0
        %1201 = vmatpush1.msra.mxu0 0.0
        %1202 = vmatprep.subr.mxu0 0.0
        %1203 = vmatpush1.msra.mxu0 0.0
        %1204 = vmatprep.subr.mxu0 0.0
        %1205 = vmatpush1.msra.mxu0 0.0
        %1206 = vmatprep.subr.mxu0 0.0
        %1207 = vmatpush1.msra.mxu0 0.0
        %1208 = vmatprep.subr.mxu0 0.0
        %1209 = vmatpush1.msra.mxu0 0.0
        %1210 = vmatprep.subr.mxu0 0.0
        %1211 = vmatpush1.msra.mxu0 0.0
        %1212 = vmatprep.subr.mxu0 0.0
        %1213 = vmatpush1.msra.mxu0 0.0
        %1214 = vmatprep.subr.mxu0 0.0
        %1215 = vmatpush1.msra.mxu0 0.0
        %1216 = vmatprep.subr.mxu0 0.0
        %1217 = vmatpush1.msra.mxu0 0.0
        %1218 = vmatprep.subr.mxu0 0.0
        %1219 = vmatpush1.msra.mxu0 0.0
        %1220 = vmatprep.subr.mxu0 0.0
        %1221 = vmatpush1.msra.mxu0 0.0
        %1222 = vmatprep.subr.mxu0 0.0
        %1223 = vmatpush1.msra.mxu0 0.0
        %1224 = vmatprep.subr.mxu0 0.0
        %1225 = vmatpush1.msra.mxu0 0.0
        %1226 = vmatprep.subr.mxu0 0.0
        %1227 = vmatpush1.msra.mxu0 0.0
        %1228 = vmatprep.subr.mxu0 0.0
        %1229 = vmatpush1.msra.mxu0 0.0
        %1230 = vmatprep.subr.mxu0 0.0
        %1231 = vmatpush1.msra.mxu0 0.0
        %1232 = vmatprep.subr.mxu0 0.0
        %1233 = vmatpush1.msra.mxu0 0.0
        %1234 = vmatprep.subr.mxu0 0.0
        %1235 = vmatpush1.msra.mxu0 0.0
        %1236 = vmatprep.subr.mxu0 0.0
        %1237 = vmatpush1.msra.mxu0 0.0
        %1238 = vmatprep.subr.mxu0 0.0
        %1239 = vmatpush1.msra.mxu0 0.0
        %1240 = vmatprep.mubr.f32.mxu0 0.0
        %1241 = vmatmul.mubr.f32.gmra.mrb[0].mxu0 %v1174
        %v1242 = vpop.f32.mrb[0].mxu0
        %v1243 = vadd.f32 0.0, %v1242
        %v1244 = vpop.f32.mrb[0].mxu0
        %1245 = vdwg.mxu0
        %v1247 = vsel %vm843, %v1002, 0
        %1249 = vmatprep.subr.mxu0 0.0
        %1250 = vmatpush1.msra.mxu0 %v1005
        %1251 = vmatprep.subr.mxu0 0.0
        %1252 = vmatpush1.msra.mxu0 0.0
        %1253 = vmatprep.subr.mxu0 0.0
        %1254 = vmatpush1.msra.mxu0 0.0
        %1255 = vmatprep.subr.mxu0 0.0
        %1256 = vmatpush1.msra.mxu0 0.0
        %1257 = vmatprep.subr.mxu0 0.0
        %1258 = vmatpush1.msra.mxu0 0.0
        %1259 = vmatprep.subr.mxu0 0.0
        %1260 = vmatpush1.msra.mxu0 0.0
        %1261 = vmatprep.subr.mxu0 0.0
        %1262 = vmatpush1.msra.mxu0 0.0
        %1263 = vmatprep.subr.mxu0 0.0
        %1264 = vmatpush1.msra.mxu0 0.0
        %1265 = vmatprep.subr.mxu0 0.0
        %1266 = vmatpush1.msra.mxu0 0.0
        %1267 = vmatprep.subr.mxu0 0.0
        %1268 = vmatpush1.msra.mxu0 0.0
        %1269 = vmatprep.subr.mxu0 0.0
        %1270 = vmatpush1.msra.mxu0 0.0
        %1271 = vmatprep.subr.mxu0 0.0
        %1272 = vmatpush1.msra.mxu0 0.0
        %1273 = vmatprep.subr.mxu0 0.0
        %1274 = vmatpush1.msra.mxu0 0.0
        %1275 = vmatprep.subr.mxu0 0.0
        %1276 = vmatpush1.msra.mxu0 0.0
        %1277 = vmatprep.subr.mxu0 0.0
        %1278 = vmatpush1.msra.mxu0 0.0
        %1279 = vmatprep.subr.mxu0 0.0
        %1280 = vmatpush1.msra.mxu0 0.0
        %1281 = vmatprep.subr.mxu0 0.0
        %1282 = vmatpush1.msra.mxu0 0.0
        %1283 = vmatprep.subr.mxu0 0.0
        %1284 = vmatpush1.msra.mxu0 0.0
        %1285 = vmatprep.subr.mxu0 0.0
        %1286 = vmatpush1.msra.mxu0 0.0
        %1287 = vmatprep.subr.mxu0 0.0
        %1288 = vmatpush1.msra.mxu0 0.0
        %1289 = vmatprep.subr.mxu0 0.0
        %1290 = vmatpush1.msra.mxu0 0.0
        %1291 = vmatprep.subr.mxu0 0.0
        %1292 = vmatpush1.msra.mxu0 0.0
        %1293 = vmatprep.subr.mxu0 0.0
        %1294 = vmatpush1.msra.mxu0 0.0
        %1295 = vmatprep.subr.mxu0 0.0
        %1296 = vmatpush1.msra.mxu0 0.0
        %1297 = vmatprep.subr.mxu0 0.0
        %1298 = vmatpush1.msra.mxu0 0.0
        %1299 = vmatprep.subr.mxu0 0.0
        %1300 = vmatpush1.msra.mxu0 0.0
        %1301 = vmatprep.subr.mxu0 0.0
        %1302 = vmatpush1.msra.mxu0 0.0
        %1303 = vmatprep.subr.mxu0 0.0
        %1304 = vmatpush1.msra.mxu0 0.0
        %1305 = vmatprep.subr.mxu0 0.0
        %1306 = vmatpush1.msra.mxu0 0.0
        %1307 = vmatprep.subr.mxu0 0.0
        %1308 = vmatpush1.msra.mxu0 0.0
        %1309 = vmatprep.subr.mxu0 0.0
        %1310 = vmatpush1.msra.mxu0 0.0
        %1311 = vmatprep.subr.mxu0 0.0
        %1312 = vmatpush1.msra.mxu0 0.0
        %1313 = vmatprep.mubr.f32.mxu0 0.0
        %1314 = vmatmul.mubr.f32.gmra.mrb[0].mxu0 %v1247
        %v1315 = vpop.f32.mrb[0].mxu0
        %v1316 = vadd.f32 %v1243, %v1315
        %v1317 = vpop.f32.mrb[0].mxu0
        %1318 = vdwg.mxu0
        %1319 = vrot.lane.b32.xlu0 %v831, 112
        %v1320 = vpop.permute.xlu0 %1319
        %1321 = vrot.lane.b32.xlu0 %v831, 80
        %v1322 = vpop.permute.xlu0 %1321
        %v1323 = vsel %vm843, %v1320, 0
        %v1325 = vsel %vm843, %v1322, 0
        %1327 = vmatprep.subr.mxu0 0.0
        %1328 = vmatpush1.xpose.msra.mxu0 %v1325
        %1329 = vmatprep.subr.mxu0 0.0
        %1330 = vmatpush1.xpose.msra.mxu0 0.0
        %1331 = vmatprep.subr.mxu0 0.0
        %1332 = vmatpush1.xpose.msra.mxu0 0.0
        %1333 = vmatprep.subr.mxu0 0.0
        %1334 = vmatpush1.xpose.msra.mxu0 0.0
        %1335 = vmatprep.subr.mxu0 0.0
        %1336 = vmatpush1.xpose.msra.mxu0 0.0
        %1337 = vmatprep.subr.mxu0 0.0
        %1338 = vmatpush1.xpose.msra.mxu0 0.0
        %1339 = vmatprep.subr.mxu0 0.0
        %1340 = vmatpush1.xpose.msra.mxu0 0.0
        %1341 = vmatprep.subr.mxu0 0.0
        %1342 = vmatpush1.xpose.msra.mxu0 0.0
        %1343 = vmatprep.subr.mxu0 0.0
        %1344 = vmatpush1.xpose.msra.mxu0 0.0
        %1345 = vmatprep.subr.mxu0 0.0
        %1346 = vmatpush1.xpose.msra.mxu0 0.0
        %1347 = vmatprep.subr.mxu0 0.0
        %1348 = vmatpush1.xpose.msra.mxu0 0.0
        %1349 = vmatprep.subr.mxu0 0.0
        %1350 = vmatpush1.xpose.msra.mxu0 0.0
        %1351 = vmatprep.subr.mxu0 0.0
        %1352 = vmatpush1.xpose.msra.mxu0 0.0
        %1353 = vmatprep.subr.mxu0 0.0
        %1354 = vmatpush1.xpose.msra.mxu0 0.0
        %1355 = vmatprep.subr.mxu0 0.0
        %1356 = vmatpush1.xpose.msra.mxu0 0.0
        %1357 = vmatprep.subr.mxu0 0.0
        %1358 = vmatpush1.xpose.msra.mxu0 0.0
        %1359 = vmatprep.subr.mxu0 0.0
        %1360 = vmatpush1.xpose.msra.mxu0 0.0
        %1361 = vmatprep.subr.mxu0 0.0
        %1362 = vmatpush1.xpose.msra.mxu0 0.0
        %1363 = vmatprep.subr.mxu0 0.0
        %1364 = vmatpush1.xpose.msra.mxu0 0.0
        %1365 = vmatprep.subr.mxu0 0.0
        %1366 = vmatpush1.xpose.msra.mxu0 0.0
        %1367 = vmatprep.subr.mxu0 0.0
        %1368 = vmatpush1.xpose.msra.mxu0 0.0
        %1369 = vmatprep.subr.mxu0 0.0
        %1370 = vmatpush1.xpose.msra.mxu0 0.0
        %1371 = vmatprep.subr.mxu0 0.0
        %1372 = vmatpush1.xpose.msra.mxu0 0.0
        %1373 = vmatprep.subr.mxu0 0.0
        %1374 = vmatpush1.xpose.msra.mxu0 0.0
        %1375 = vmatprep.subr.mxu0 0.0
        %1376 = vmatpush1.xpose.msra.mxu0 0.0
        %1377 = vmatprep.subr.mxu0 0.0
        %1378 = vmatpush1.xpose.msra.mxu0 0.0
        %1379 = vmatprep.subr.mxu0 0.0
        %1380 = vmatpush1.xpose.msra.mxu0 0.0
        %1381 = vmatprep.subr.mxu0 0.0
        %1382 = vmatpush1.xpose.msra.mxu0 0.0
        %1383 = vmatprep.subr.mxu0 0.0
        %1384 = vmatpush1.xpose.msra.mxu0 0.0
        %1385 = vmatprep.subr.mxu0 0.0
        %1386 = vmatpush1.xpose.msra.mxu0 0.0
        %1387 = vmatprep.subr.mxu0 0.0
        %1388 = vmatpush1.xpose.msra.mxu0 0.0
        %1389 = vmatprep.subr.mxu0 0.0
        %1390 = vmatpush1.xpose.msra.mxu0 0.0
        %1391 = vmatprep.mubr.f32.mxu0 0.0
        %1392 = vmatmul.mubr.f32.gmra.mrb[0].mxu0 %v1323
        %v1393 = vpop.f32.mrb[0].mxu0
        %v1394 = vadd.f32 %v838, %v1393
        %v1395 = vpop.f32.mrb[0].mxu0
        %1396 = vdwg.mxu0
        %v1397 = vsel %vm843, %v1394, -inf
        %1398 = vmax.xlane.f32.xlu0 %v1397
        %v1399 = vpop.xlane.xlu0 %1398
        %v1400 = vsub.f32 %v1394, %v1399
        %v1401 = vmul.f32 %v1400, 1.442695
        %v1402 = vpow.pop %v1401
        %v1403 = vsel %vm843, %v1402, 0.0
        %1404 = vadd.xlane.f32.xlu0 %v1403
        %v1405 = vpop.xlane.xlu0 %1404
        %v1406 = vrcp.pop %v1405
        %v1407 = vmul.f32 %v1402, %v1406
        %1408 = vrot.lane.b32.xlu0 %v831, 48
        %v1409 = vpop.permute.xlu0 %1408
        %v1412 = vsel %vm843, %v1407, 0
        %1414 = vmatprep.subr.mxu0 0.0
        %1415 = vmatpush1.msra.mxu0 %v1409
        %1416 = vmatprep.subr.mxu0 0.0
        %1417 = vmatpush1.msra.mxu0 0.0
        %1418 = vmatprep.subr.mxu0 0.0
        %1419 = vmatpush1.msra.mxu0 0.0
        %1420 = vmatprep.subr.mxu0 0.0
        %1421 = vmatpush1.msra.mxu0 0.0
        %1422 = vmatprep.subr.mxu0 0.0
        %1423 = vmatpush1.msra.mxu0 0.0
        %1424 = vmatprep.subr.mxu0 0.0
        %1425 = vmatpush1.msra.mxu0 0.0
        %1426 = vmatprep.subr.mxu0 0.0
        %1427 = vmatpush1.msra.mxu0 0.0
        %1428 = vmatprep.subr.mxu0 0.0
        %1429 = vmatpush1.msra.mxu0 0.0
        %1430 = vmatprep.subr.mxu0 0.0
        %1431 = vmatpush1.msra.mxu0 0.0
        %1432 = vmatprep.subr.mxu0 0.0
        %1433 = vmatpush1.msra.mxu0 0.0
        %1434 = vmatprep.subr.mxu0 0.0
        %1435 = vmatpush1.msra.mxu0 0.0
        %1436 = vmatprep.subr.mxu0 0.0
        %1437 = vmatpush1.msra.mxu0 0.0
        %1438 = vmatprep.subr.mxu0 0.0
        %1439 = vmatpush1.msra.mxu0 0.0
        %1440 = vmatprep.subr.mxu0 0.0
        %1441 = vmatpush1.msra.mxu0 0.0
        %1442 = vmatprep.subr.mxu0 0.0
        %1443 = vmatpush1.msra.mxu0 0.0
        %1444 = vmatprep.subr.mxu0 0.0
        %1445 = vmatpush1.msra.mxu0 0.0
        %1446 = vmatprep.subr.mxu0 0.0
        %1447 = vmatpush1.msra.mxu0 0.0
        %1448 = vmatprep.subr.mxu0 0.0
        %1449 = vmatpush1.msra.mxu0 0.0
        %1450 = vmatprep.subr.mxu0 0.0
        %1451 = vmatpush1.msra.mxu0 0.0
        %1452 = vmatprep.subr.mxu0 0.0
        %1453 = vmatpush1.msra.mxu0 0.0
        %1454 = vmatprep.subr.mxu0 0.0
        %1455 = vmatpush1.msra.mxu0 0.0
        %1456 = vmatprep.subr.mxu0 0.0
        %1457 = vmatpush1.msra.mxu0 0.0
        %1458 = vmatprep.subr.mxu0 0.0
        %1459 = vmatpush1.msra.mxu0 0.0
        %1460 = vmatprep.subr.mxu0 0.0
        %1461 = vmatpush1.msra.mxu0 0.0
        %1462 = vmatprep.subr.mxu0 0.0
        %1463 = vmatpush1.msra.mxu0 0.0
        %1464 = vmatprep.subr.mxu0 0.0
        %1465 = vmatpush1.msra.mxu0 0.0
        %1466 = vmatprep.subr.mxu0 0.0
        %1467 = vmatpush1.msra.mxu0 0.0
        %1468 = vmatprep.subr.mxu0 0.0
        %1469 = vmatpush1.msra.mxu0 0.0
        %1470 = vmatprep.subr.mxu0 0.0
        %1471 = vmatpush1.msra.mxu0 0.0
        %1472 = vmatprep.subr.mxu0 0.0
        %1473 = vmatpush1.msra.mxu0 0.0
        %1474 = vmatprep.subr.mxu0 0.0
        %1475 = vmatpush1.msra.mxu0 0.0
        %1476 = vmatprep.subr.mxu0 0.0
        %1477 = vmatpush1.msra.mxu0 0.0
        %1478 = vmatprep.mubr.f32.mxu0 0.0
        %1479 = vmatmul.mubr.f32.gmra.mrb[0].mxu0 %v1412
        %v1480 = vpop.f32.mrb[0].mxu0
        %v1481 = vadd.f32 0.0, %v1480
        %v1482 = vpop.f32.mrb[0].mxu0
        %1483 = vdwg.mxu0
        %s1484 = scalar_lea.vmem %s8, 16
        %v1485 = vld [vmem:[%s1484] sm:$0xff]
        %v1487 = vsel %vm843, %v1481, 0
        %1489 = vmatprep.subr.mxu0 0.0
        %1490 = vmatpush1.msra.mxu0 %v1485
        %1491 = vmatprep.subr.mxu0 0.0
        %1492 = vmatpush1.msra.mxu0 0.0
        %1493 = vmatprep.subr.mxu0 0.0
        %1494 = vmatpush1.msra.mxu0 0.0
        %1495 = vmatprep.subr.mxu0 0.0
        %1496 = vmatpush1.msra.mxu0 0.0
        %1497 = vmatprep.subr.mxu0 0.0
        %1498 = vmatpush1.msra.mxu0 0.0
        %1499 = vmatprep.subr.mxu0 0.0
        %1500 = vmatpush1.msra.mxu0 0.0
        %1501 = vmatprep.subr.mxu0 0.0
        %1502 = vmatpush1.msra.mxu0 0.0
        %1503 = vmatprep.subr.mxu0 0.0
        %1504 = vmatpush1.msra.mxu0 0.0
        %1505 = vmatprep.subr.mxu0 0.0
        %1506 = vmatpush1.msra.mxu0 0.0
        %1507 = vmatprep.subr.mxu0 0.0
        %1508 = vmatpush1.msra.mxu0 0.0
        %1509 = vmatprep.subr.mxu0 0.0
        %1510 = vmatpush1.msra.mxu0 0.0
        %1511 = vmatprep.subr.mxu0 0.0
        %1512 = vmatpush1.msra.mxu0 0.0
        %1513 = vmatprep.subr.mxu0 0.0
        %1514 = vmatpush1.msra.mxu0 0.0
        %1515 = vmatprep.subr.mxu0 0.0
        %1516 = vmatpush1.msra.mxu0 0.0
        %1517 = vmatprep.subr.mxu0 0.0
        %1518 = vmatpush1.msra.mxu0 0.0
        %1519 = vmatprep.subr.mxu0 0.0
        %1520 = vmatpush1.msra.mxu0 0.0
        %1521 = vmatprep.subr.mxu0 0.0
        %1522 = vmatpush1.msra.mxu0 0.0
        %1523 = vmatprep.subr.mxu0 0.0
        %1524 = vmatpush1.msra.mxu0 0.0
        %1525 = vmatprep.subr.mxu0 0.0
        %1526 = vmatpush1.msra.mxu0 0.0
        %1527 = vmatprep.subr.mxu0 0.0
        %1528 = vmatpush1.msra.mxu0 0.0
        %1529 = vmatprep.subr.mxu0 0.0
        %1530 = vmatpush1.msra.mxu0 0.0
        %1531 = vmatprep.subr.mxu0 0.0
        %1532 = vmatpush1.msra.mxu0 0.0
        %1533 = vmatprep.subr.mxu0 0.0
        %1534 = vmatpush1.msra.mxu0 0.0
        %1535 = vmatprep.subr.mxu0 0.0
        %1536 = vmatpush1.msra.mxu0 0.0
        %1537 = vmatprep.subr.mxu0 0.0
        %1538 = vmatpush1.msra.mxu0 0.0
        %1539 = vmatprep.subr.mxu0 0.0
        %1540 = vmatpush1.msra.mxu0 0.0
        %1541 = vmatprep.subr.mxu0 0.0
        %1542 = vmatpush1.msra.mxu0 0.0
        %1543 = vmatprep.subr.mxu0 0.0
        %1544 = vmatpush1.msra.mxu0 0.0
        %1545 = vmatprep.subr.mxu0 0.0
        %1546 = vmatpush1.msra.mxu0 0.0
        %1547 = vmatprep.subr.mxu0 0.0
        %1548 = vmatpush1.msra.mxu0 0.0
        %1549 = vmatprep.subr.mxu0 0.0
        %1550 = vmatpush1.msra.mxu0 0.0
        %1551 = vmatprep.subr.mxu0 0.0
        %1552 = vmatpush1.msra.mxu0 0.0
        %1553 = vmatprep.mubr.f32.mxu0 0.0
        %1554 = vmatmul.mubr.f32.gmra.mrb[0].mxu0 %v1487
        %v1555 = vpop.f32.mrb[0].mxu0
        %v1556 = vadd.f32 0.0, %v1555
        %v1557 = vpop.f32.mrb[0].mxu0
        %1558 = vdwg.mxu0
        %v1559 = vadd.f32 %v1316, %v1556
        %1560 = vrot.lane.b32.xlu0 %v831, 104
        %v1561 = vpop.permute.xlu0 %1560
        %1562 = vrot.lane.b32.xlu0 %v831, 72
        %v1563 = vpop.permute.xlu0 %1562
        %v1564 = vsel %vm843, %v1561, 0
        %v1566 = vsel %vm843, %v1563, 0
        %1568 = vmatprep.subr.mxu0 0.0
        %1569 = vmatpush1.xpose.msra.mxu0 %v1566
        %1570 = vmatprep.subr.mxu0 0.0
        %1571 = vmatpush1.xpose.msra.mxu0 0.0
        %1572 = vmatprep.subr.mxu0 0.0
        %1573 = vmatpush1.xpose.msra.mxu0 0.0
        %1574 = vmatprep.subr.mxu0 0.0
        %1575 = vmatpush1.xpose.msra.mxu0 0.0
        %1576 = vmatprep.subr.mxu0 0.0
        %1577 = vmatpush1.xpose.msra.mxu0 0.0
        %1578 = vmatprep.subr.mxu0 0.0
        %1579 = vmatpush1.xpose.msra.mxu0 0.0
        %1580 = vmatprep.subr.mxu0 0.0
        %1581 = vmatpush1.xpose.msra.mxu0 0.0
        %1582 = vmatprep.subr.mxu0 0.0
        %1583 = vmatpush1.xpose.msra.mxu0 0.0
        %1584 = vmatprep.subr.mxu0 0.0
        %1585 = vmatpush1.xpose.msra.mxu0 0.0
        %1586 = vmatprep.subr.mxu0 0.0
        %1587 = vmatpush1.xpose.msra.mxu0 0.0
        %1588 = vmatprep.subr.mxu0 0.0
        %1589 = vmatpush1.xpose.msra.mxu0 0.0
        %1590 = vmatprep.subr.mxu0 0.0
        %1591 = vmatpush1.xpose.msra.mxu0 0.0
        %1592 = vmatprep.subr.mxu0 0.0
        %1593 = vmatpush1.xpose.msra.mxu0 0.0
        %1594 = vmatprep.subr.mxu0 0.0
        %1595 = vmatpush1.xpose.msra.mxu0 0.0
        %1596 = vmatprep.subr.mxu0 0.0
        %1597 = vmatpush1.xpose.msra.mxu0 0.0
        %1598 = vmatprep.subr.mxu0 0.0
        %1599 = vmatpush1.xpose.msra.mxu0 0.0
        %1600 = vmatprep.subr.mxu0 0.0
        %1601 = vmatpush1.xpose.msra.mxu0 0.0
        %1602 = vmatprep.subr.mxu0 0.0
        %1603 = vmatpush1.xpose.msra.mxu0 0.0
        %1604 = vmatprep.subr.mxu0 0.0
        %1605 = vmatpush1.xpose.msra.mxu0 0.0
        %1606 = vmatprep.subr.mxu0 0.0
        %1607 = vmatpush1.xpose.msra.mxu0 0.0
        %1608 = vmatprep.subr.mxu0 0.0
        %1609 = vmatpush1.xpose.msra.mxu0 0.0
        %1610 = vmatprep.subr.mxu0 0.0
        %1611 = vmatpush1.xpose.msra.mxu0 0.0
        %1612 = vmatprep.subr.mxu0 0.0
        %1613 = vmatpush1.xpose.msra.mxu0 0.0
        %1614 = vmatprep.subr.mxu0 0.0
        %1615 = vmatpush1.xpose.msra.mxu0 0.0
        %1616 = vmatprep.subr.mxu0 0.0
        %1617 = vmatpush1.xpose.msra.mxu0 0.0
        %1618 = vmatprep.subr.mxu0 0.0
        %1619 = vmatpush1.xpose.msra.mxu0 0.0
        %1620 = vmatprep.subr.mxu0 0.0
        %1621 = vmatpush1.xpose.msra.mxu0 0.0
        %1622 = vmatprep.subr.mxu0 0.0
        %1623 = vmatpush1.xpose.msra.mxu0 0.0
        %1624 = vmatprep.subr.mxu0 0.0
        %1625 = vmatpush1.xpose.msra.mxu0 0.0
        %1626 = vmatprep.subr.mxu0 0.0
        %1627 = vmatpush1.xpose.msra.mxu0 0.0
        %1628 = vmatprep.subr.mxu0 0.0
        %1629 = vmatpush1.xpose.msra.mxu0 0.0
        %1630 = vmatprep.subr.mxu0 0.0
        %1631 = vmatpush1.xpose.msra.mxu0 0.0
        %1632 = vmatprep.mubr.f32.mxu0 0.0
        %1633 = vmatmul.mubr.f32.gmra.mrb[0].mxu0 %v1564
        %v1634 = vpop.f32.mrb[0].mxu0
        %v1635 = vadd.f32 %v838, %v1634
        %v1636 = vpop.f32.mrb[0].mxu0
        %1637 = vdwg.mxu0
        %v1638 = vsel %vm843, %v1635, -inf
        %1639 = vmax.xlane.f32.xlu0 %v1638
        %v1640 = vpop.xlane.xlu0 %1639
        %v1641 = vsub.f32 %v1635, %v1640
        %v1642 = vmul.f32 %v1641, 1.442695
        %v1643 = vpow.pop %v1642
        %v1644 = vsel %vm843, %v1643, 0.0
        %1645 = vadd.xlane.f32.xlu0 %v1644
        %v1646 = vpop.xlane.xlu0 %1645
        %v1647 = vrcp.pop %v1646
        %v1648 = vmul.f32 %v1643, %v1647
        %1649 = vrot.lane.b32.xlu0 %v831, 40
        %v1650 = vpop.permute.xlu0 %1649
        %v1653 = vsel %vm843, %v1648, 0
        %1655 = vmatprep.subr.mxu0 0.0
        %1656 = vmatpush1.msra.mxu0 %v1650
        %1657 = vmatprep.subr.mxu0 0.0
        %1658 = vmatpush1.msra.mxu0 0.0
        %1659 = vmatprep.subr.mxu0 0.0
        %1660 = vmatpush1.msra.mxu0 0.0
        %1661 = vmatprep.subr.mxu0 0.0
        %1662 = vmatpush1.msra.mxu0 0.0
        %1663 = vmatprep.subr.mxu0 0.0
        %1664 = vmatpush1.msra.mxu0 0.0
        %1665 = vmatprep.subr.mxu0 0.0
        %1666 = vmatpush1.msra.mxu0 0.0
        %1667 = vmatprep.subr.mxu0 0.0
        %1668 = vmatpush1.msra.mxu0 0.0
        %1669 = vmatprep.subr.mxu0 0.0
        %1670 = vmatpush1.msra.mxu0 0.0
        %1671 = vmatprep.subr.mxu0 0.0
        %1672 = vmatpush1.msra.mxu0 0.0
        %1673 = vmatprep.subr.mxu0 0.0
        %1674 = vmatpush1.msra.mxu0 0.0
        %1675 = vmatprep.subr.mxu0 0.0
        %1676 = vmatpush1.msra.mxu0 0.0
        %1677 = vmatprep.subr.mxu0 0.0
        %1678 = vmatpush1.msra.mxu0 0.0
        %1679 = vmatprep.subr.mxu0 0.0
        %1680 = vmatpush1.msra.mxu0 0.0
        %1681 = vmatprep.subr.mxu0 0.0
        %1682 = vmatpush1.msra.mxu0 0.0
        %1683 = vmatprep.subr.mxu0 0.0
        %1684 = vmatpush1.msra.mxu0 0.0
        %1685 = vmatprep.subr.mxu0 0.0
        %1686 = vmatpush1.msra.mxu0 0.0
        %1687 = vmatprep.subr.mxu0 0.0
        %1688 = vmatpush1.msra.mxu0 0.0
        %1689 = vmatprep.subr.mxu0 0.0
        %1690 = vmatpush1.msra.mxu0 0.0
        %1691 = vmatprep.subr.mxu0 0.0
        %1692 = vmatpush1.msra.mxu0 0.0
        %1693 = vmatprep.subr.mxu0 0.0
        %1694 = vmatpush1.msra.mxu0 0.0
        %1695 = vmatprep.subr.mxu0 0.0
        %1696 = vmatpush1.msra.mxu0 0.0
        %1697 = vmatprep.subr.mxu0 0.0
        %1698 = vmatpush1.msra.mxu0 0.0
        %1699 = vmatprep.subr.mxu0 0.0
        %1700 = vmatpush1.msra.mxu0 0.0
        %1701 = vmatprep.subr.mxu0 0.0
        %1702 = vmatpush1.msra.mxu0 0.0
        %1703 = vmatprep.subr.mxu0 0.0
        %1704 = vmatpush1.msra.mxu0 0.0
        %1705 = vmatprep.subr.mxu0 0.0
        %1706 = vmatpush1.msra.mxu0 0.0
        %1707 = vmatprep.subr.mxu0 0.0
        %1708 = vmatpush1.msra.mxu0 0.0
        %1709 = vmatprep.subr.mxu0 0.0
        %1710 = vmatpush1.msra.mxu0 0.0
        %1711 = vmatprep.subr.mxu0 0.0
        %1712 = vmatpush1.msra.mxu0 0.0
        %1713 = vmatprep.subr.mxu0 0.0
        %1714 = vmatpush1.msra.mxu0 0.0
        %1715 = vmatprep.subr.mxu0 0.0
        %1716 = vmatpush1.msra.mxu0 0.0
        %1717 = vmatprep.subr.mxu0 0.0
        %1718 = vmatpush1.msra.mxu0 0.0
        %1719 = vmatprep.mubr.f32.mxu0 0.0
        %1720 = vmatmul.mubr.f32.gmra.mrb[0].mxu0 %v1653
        %v1721 = vpop.f32.mrb[0].mxu0
        %v1722 = vadd.f32 0.0, %v1721
        %v1723 = vpop.f32.mrb[0].mxu0
        %1724 = vdwg.mxu0
        %s1725 = scalar_lea.vmem %s8, 24
        %v1726 = vld [vmem:[%s1725] sm:$0xff]
        %v1728 = vsel %vm843, %v1722, 0
        %1730 = vmatprep.subr.mxu0 0.0
        %1731 = vmatpush1.msra.mxu0 %v1726
        %1732 = vmatprep.subr.mxu0 0.0
        %1733 = vmatpush1.msra.mxu0 0.0
        %1734 = vmatprep.subr.mxu0 0.0
        %1735 = vmatpush1.msra.mxu0 0.0
        %1736 = vmatprep.subr.mxu0 0.0
        %1737 = vmatpush1.msra.mxu0 0.0
        %1738 = vmatprep.subr.mxu0 0.0
        %1739 = vmatpush1.msra.mxu0 0.0
        %1740 = vmatprep.subr.mxu0 0.0
        %1741 = vmatpush1.msra.mxu0 0.0
        %1742 = vmatprep.subr.mxu0 0.0
        %1743 = vmatpush1.msra.mxu0 0.0
        %1744 = vmatprep.subr.mxu0 0.0
        %1745 = vmatpush1.msra.mxu0 0.0
        %1746 = vmatprep.subr.mxu0 0.0
        %1747 = vmatpush1.msra.mxu0 0.0
        %1748 = vmatprep.subr.mxu0 0.0
        %1749 = vmatpush1.msra.mxu0 0.0
        %1750 = vmatprep.subr.mxu0 0.0
        %1751 = vmatpush1.msra.mxu0 0.0
        %1752 = vmatprep.subr.mxu0 0.0
        %1753 = vmatpush1.msra.mxu0 0.0
        %1754 = vmatprep.subr.mxu0 0.0
        %1755 = vmatpush1.msra.mxu0 0.0
        %1756 = vmatprep.subr.mxu0 0.0
        %1757 = vmatpush1.msra.mxu0 0.0
        %1758 = vmatprep.subr.mxu0 0.0
        %1759 = vmatpush1.msra.mxu0 0.0
        %1760 = vmatprep.subr.mxu0 0.0
        %1761 = vmatpush1.msra.mxu0 0.0
        %1762 = vmatprep.subr.mxu0 0.0
        %1763 = vmatpush1.msra.mxu0 0.0
        %1764 = vmatprep.subr.mxu0 0.0
        %1765 = vmatpush1.msra.mxu0 0.0
        %1766 = vmatprep.subr.mxu0 0.0
        %1767 = vmatpush1.msra.mxu0 0.0
        %1768 = vmatprep.subr.mxu0 0.0
        %1769 = vmatpush1.msra.mxu0 0.0
        %1770 = vmatprep.subr.mxu0 0.0
        %1771 = vmatpush1.msra.mxu0 0.0
        %1772 = vmatprep.subr.mxu0 0.0
        %1773 = vmatpush1.msra.mxu0 0.0
        %1774 = vmatprep.subr.mxu0 0.0
        %1775 = vmatpush1.msra.mxu0 0.0
        %1776 = vmatprep.subr.mxu0 0.0
        %1777 = vmatpush1.msra.mxu0 0.0
        %1778 = vmatprep.subr.mxu0 0.0
        %1779 = vmatpush1.msra.mxu0 0.0
        %1780 = vmatprep.subr.mxu0 0.0
        %1781 = vmatpush1.msra.mxu0 0.0
        %1782 = vmatprep.subr.mxu0 0.0
        %1783 = vmatpush1.msra.mxu0 0.0
        %1784 = vmatprep.subr.mxu0 0.0
        %1785 = vmatpush1.msra.mxu0 0.0
        %1786 = vmatprep.subr.mxu0 0.0
        %1787 = vmatpush1.msra.mxu0 0.0
        %1788 = vmatprep.subr.mxu0 0.0
        %1789 = vmatpush1.msra.mxu0 0.0
        %1790 = vmatprep.subr.mxu0 0.0
        %1791 = vmatpush1.msra.mxu0 0.0
        %1792 = vmatprep.subr.mxu0 0.0
        %1793 = vmatpush1.msra.mxu0 0.0
        %1794 = vmatprep.mubr.f32.mxu0 0.0
        %1795 = vmatmul.mubr.f32.gmra.mrb[0].mxu0 %v1728
        %v1796 = vpop.f32.mrb[0].mxu0
        %v1797 = vadd.f32 0.0, %v1796
        %v1798 = vpop.f32.mrb[0].mxu0
        %1799 = vdwg.mxu0
        %v1800 = vadd.f32 %v1559, %v1797
        %v1801 = vld [vmem:[%s9] sm:$0x1]
        %v1803 = vlaneseq
        %v1804 = vshrl.u32 %v1803, 7
        %v1805 = vsub.s32 0, %v1804
        %v1806 = vrot.slane %v1801, %v1805
        %v1808 = vadd.f32 %v1800, %v1806
        %v1809 = vadd.f32 %v748, %v1808
        %v1810 = vsel %vm760, %v1809, 0.0
        %1811 = vadd.xlane.f32.xlu0 %v1810
        %v1812 = vpop.xlane.xlu0 %1811
        %v1813 = vrcp.pop 32.0
        %v1814 = vmul.f32 %v1812, %v1813
        %v1815 = vsub.f32 %v1809, %v1814
        %v1816 = vmul.f32 %v1815, %v1815
        %v1817 = vsel %vm760, %v1816, 0.0
        %1818 = vadd.xlane.f32.xlu0 %v1817
        %v1819 = vpop.xlane.xlu0 %1818
        %v1820 = vmul.f32 %v1819, %v1813
        %v1821 = vadd.f32 %v1820, 1e-05
        %v1822 = vrsqrt.pop %v1821
        %v1823 = vmul.f32 %v1815, %v1822
        %v1824 = vld [vmem:[%s10] sm:$0xff]
        %v1825 = vld [vmem:[%s10 + $0x8] sm:$0xff]
        %v1826 = vld [vmem:[%s10 + $0x10] sm:$0xff]
        %v1827 = vld [vmem:[%s10 + $0x18] sm:$0xff]
        %v1828 = vld [vmem:[%s11] sm:$0x1]
        %v1830 = vlaneseq
        %v1831 = vshrl.u32 %v1830, 7
        %v1832 = vsub.s32 0, %v1831
        %v1833 = vrot.slane %v1828, %v1832
        %v1836 = vsel %vm760, %v1823, 0
        %1838 = vmatprep.subr.mxu0 0.0
        %1839 = vmatpush1.msra.mxu0 %v1824
        %1840 = vmatprep.subr.mxu0 0.0
        %1841 = vmatpush1.msra.mxu0 %v1825
        %1842 = vmatprep.subr.mxu0 0.0
        %1843 = vmatpush1.msra.mxu0 %v1826
        %1844 = vmatprep.subr.mxu0 0.0
        %1845 = vmatpush1.msra.mxu0 %v1827
        %1846 = vmatprep.subr.mxu0 0.0
        %1847 = vmatpush1.msra.mxu0 0.0
        %1848 = vmatprep.subr.mxu0 0.0
        %1849 = vmatpush1.msra.mxu0 0.0
        %1850 = vmatprep.subr.mxu0 0.0
        %1851 = vmatpush1.msra.mxu0 0.0
        %1852 = vmatprep.subr.mxu0 0.0
        %1853 = vmatpush1.msra.mxu0 0.0
        %1854 = vmatprep.subr.mxu0 0.0
        %1855 = vmatpush1.msra.mxu0 0.0
        %1856 = vmatprep.subr.mxu0 0.0
        %1857 = vmatpush1.msra.mxu0 0.0
        %1858 = vmatprep.subr.mxu0 0.0
        %1859 = vmatpush1.msra.mxu0 0.0
        %1860 = vmatprep.subr.mxu0 0.0
        %1861 = vmatpush1.msra.mxu0 0.0
        %1862 = vmatprep.subr.mxu0 0.0
        %1863 = vmatpush1.msra.mxu0 0.0
        %1864 = vmatprep.subr.mxu0 0.0
        %1865 = vmatpush1.msra.mxu0 0.0
        %1866 = vmatprep.subr.mxu0 0.0
        %1867 = vmatpush1.msra.mxu0 0.0
        %1868 = vmatprep.subr.mxu0 0.0
        %1869 = vmatpush1.msra.mxu0 0.0
        %1870 = vmatprep.subr.mxu0 0.0
        %1871 = vmatpush1.msra.mxu0 0.0
        %1872 = vmatprep.subr.mxu0 0.0
        %1873 = vmatpush1.msra.mxu0 0.0
        %1874 = vmatprep.subr.mxu0 0.0
        %1875 = vmatpush1.msra.mxu0 0.0
        %1876 = vmatprep.subr.mxu0 0.0
        %1877 = vmatpush1.msra.mxu0 0.0
        %1878 = vmatprep.subr.mxu0 0.0
        %1879 = vmatpush1.msra.mxu0 0.0
        %1880 = vmatprep.subr.mxu0 0.0
        %1881 = vmatpush1.msra.mxu0 0.0
        %1882 = vmatprep.subr.mxu0 0.0
        %1883 = vmatpush1.msra.mxu0 0.0
        %1884 = vmatprep.subr.mxu0 0.0
        %1885 = vmatpush1.msra.mxu0 0.0
        %1886 = vmatprep.subr.mxu0 0.0
        %1887 = vmatpush1.msra.mxu0 0.0
        %1888 = vmatprep.subr.mxu0 0.0
        %1889 = vmatpush1.msra.mxu0 0.0
        %1890 = vmatprep.subr.mxu0 0.0
        %1891 = vmatpush1.msra.mxu0 0.0
        %1892 = vmatprep.subr.mxu0 0.0
        %1893 = vmatpush1.msra.mxu0 0.0
        %1894 = vmatprep.subr.mxu0 0.0
        %1895 = vmatpush1.msra.mxu0 0.0
        %1896 = vmatprep.subr.mxu0 0.0
        %1897 = vmatpush1.msra.mxu0 0.0
        %1898 = vmatprep.subr.mxu0 0.0
        %1899 = vmatpush1.msra.mxu0 0.0
        %1900 = vmatprep.subr.mxu0 0.0
        %1901 = vmatpush1.msra.mxu0 0.0
        %1902 = vmatprep.mubr.f32.mxu0 0.0
        %1903 = vmatmul.mubr.f32.gmra.mrb[0].mxu0 %v1836
        %v1904 = vpop.f32.mrb[0].mxu0
        %v1905 = vadd.f32 %v1833, %v1904
        %v1906 = vpop.f32.mrb[0].mxu0
        %1907 = vdwg.mxu0
        %v1908 = vmul.f32 %v1905, 0.5
        %v1909 = vmul.f32 %v1905, 0.044715
        %v1910 = vmul.f32 %v1909, %v1905
        %v1911 = vmul.f32 %v1910, %v1905
        %v1912 = vadd.f32 %v1905, %v1911
        %v1913 = vmul.f32 %v1912, 0.7978846
        %v1914 = vtanh.pop %v1913
        %v1915 = vadd.f32 %v1914, 1.0
        %v1916 = vmul.f32 %v1908, %v1915
        %v1917 = vld [vmem:[%s12] sm:$0xff]
        %v1918 = vld [vmem:[%s12 + $0x8] sm:$0xff]
        %v1919 = vld [vmem:[%s12 + $0x10] sm:$0xff]
        %v1920 = vld [vmem:[%s12 + $0x18] sm:$0xff]
        %v1921 = vld [vmem:[%s12 + $0x20] sm:$0xff]
        %v1922 = vld [vmem:[%s12 + $0x28] sm:$0xff]
        %v1923 = vld [vmem:[%s12 + $0x30] sm:$0xff]
        %v1924 = vld [vmem:[%s12 + $0x38] sm:$0xff]
        %v1925 = vld [vmem:[%s12 + $0x40] sm:$0xff]
        %v1926 = vld [vmem:[%s12 + $0x48] sm:$0xff]
        %v1927 = vld [vmem:[%s12 + $0x50] sm:$0xff]
        %v1928 = vld [vmem:[%s12 + $0x58] sm:$0xff]
        %v1929 = vld [vmem:[%s12 + $0x60] sm:$0xff]
        %v1930 = vld [vmem:[%s12 + $0x68] sm:$0xff]
        %v1931 = vld [vmem:[%s12 + $0x70] sm:$0xff]
        %v1932 = vld [vmem:[%s12 + $0x78] sm:$0xff]
        %v1933 = vld [vmem:[%s13] sm:$0x1]
        %v1935 = vlaneseq
        %v1936 = vshrl.u32 %v1935, 7
        %v1937 = vsub.s32 0, %v1936
        %v1938 = vrot.slane %v1933, %v1937
        %1940 = vmatprep.subr.mxu0 0.0
        %1941 = vmatpush1.msra.mxu0 %v1917
        %1942 = vmatprep.subr.mxu0 0.0
        %1943 = vmatpush1.msra.mxu0 %v1918
        %1944 = vmatprep.subr.mxu0 0.0
        %1945 = vmatpush1.msra.mxu0 %v1919
        %1946 = vmatprep.subr.mxu0 0.0
        %1947 = vmatpush1.msra.mxu0 %v1920
        %1948 = vmatprep.subr.mxu0 0.0
        %1949 = vmatpush1.msra.mxu0 %v1921
        %1950 = vmatprep.subr.mxu0 0.0
        %1951 = vmatpush1.msra.mxu0 %v1922
        %1952 = vmatprep.subr.mxu0 0.0
        %1953 = vmatpush1.msra.mxu0 %v1923
        %1954 = vmatprep.subr.mxu0 0.0
        %1955 = vmatpush1.msra.mxu0 %v1924
        %1956 = vmatprep.subr.mxu0 0.0
        %1957 = vmatpush1.msra.mxu0 %v1925
        %1958 = vmatprep.subr.mxu0 0.0
        %1959 = vmatpush1.msra.mxu0 %v1926
        %1960 = vmatprep.subr.mxu0 0.0
        %1961 = vmatpush1.msra.mxu0 %v1927
        %1962 = vmatprep.subr.mxu0 0.0
        %1963 = vmatpush1.msra.mxu0 %v1928
        %1964 = vmatprep.subr.mxu0 0.0
        %1965 = vmatpush1.msra.mxu0 %v1929
        %1966 = vmatprep.subr.mxu0 0.0
        %1967 = vmatpush1.msra.mxu0 %v1930
        %1968 = vmatprep.subr.mxu0 0.0
        %1969 = vmatpush1.msra.mxu0 %v1931
        %1970 = vmatprep.subr.mxu0 0.0
        %1971 = vmatpush1.msra.mxu0 %v1932
        %1972 = vmatprep.subr.mxu0 0.0
        %1973 = vmatpush1.msra.mxu0 0.0
        %1974 = vmatprep.subr.mxu0 0.0
        %1975 = vmatpush1.msra.mxu0 0.0
        %1976 = vmatprep.subr.mxu0 0.0
        %1977 = vmatpush1.msra.mxu0 0.0
        %1978 = vmatprep.subr.mxu0 0.0
        %1979 = vmatpush1.msra.mxu0 0.0
        %1980 = vmatprep.subr.mxu0 0.0
        %1981 = vmatpush1.msra.mxu0 0.0
        %1982 = vmatprep.subr.mxu0 0.0
        %1983 = vmatpush1.msra.mxu0 0.0
        %1984 = vmatprep.subr.mxu0 0.0
        %1985 = vmatpush1.msra.mxu0 0.0
        %1986 = vmatprep.subr.mxu0 0.0
        %1987 = vmatpush1.msra.mxu0 0.0
        %1988 = vmatprep.subr.mxu0 0.0
        %1989 = vmatpush1.msra.mxu0 0.0
        %1990 = vmatprep.subr.mxu0 0.0
        %1991 = vmatpush1.msra.mxu0 0.0
        %1992 = vmatprep.subr.mxu0 0.0
        %1993 = vmatpush1.msra.mxu0 0.0
        %1994 = vmatprep.subr.mxu0 0.0
        %1995 = vmatpush1.msra.mxu0 0.0
        %1996 = vmatprep.subr.mxu0 0.0
        %1997 = vmatpush1.msra.mxu0 0.0
        %1998 = vmatprep.subr.mxu0 0.0
        %1999 = vmatpush1.msra.mxu0 0.0
        %2000 = vmatprep.subr.mxu0 0.0
        %2001 = vmatpush1.msra.mxu0 0.0
        %2002 = vmatprep.subr.mxu0 0.0
        %2003 = vmatpush1.msra.mxu0 0.0
        %2004 = vmatprep.mubr.f32.mxu0 0.0
        %2005 = vmatmul.mubr.f32.gmra.mrb[0].mxu0 %v1916
        %v2006 = vpop.f32.mrb[0].mxu0
        %v2007 = vadd.f32 %v1938, %v2006
        %v2008 = vpop.f32.mrb[0].mxu0
        %2009 = vdwg.mxu0
        %v2010 = vmul.f32 %v2007, 0.5
        %v2011 = vmul.f32 %v2007, 0.044715
        %v2012 = vmul.f32 %v2011, %v2007
        %v2013 = vmul.f32 %v2012, %v2007
        %v2014 = vadd.f32 %v2007, %v2013
        %v2015 = vmul.f32 %v2014, 0.7978846
        %v2016 = vtanh.pop %v2015
        %v2017 = vadd.f32 %v2016, 1.0
        %v2018 = vmul.f32 %v2010, %v2017
        %v2019 = vld [vmem:[%s14] sm:$0xff]
        %v2020 = vld [vmem:[%s14 + $0x8] sm:$0xff]
        %v2021 = vld [vmem:[%s14 + $0x10] sm:$0xff]
        %v2022 = vld [vmem:[%s14 + $0x18] sm:$0xff]
        %v2023 = vld [vmem:[%s14 + $0x20] sm:$0xff]
        %v2024 = vld [vmem:[%s14 + $0x28] sm:$0xff]
        %v2025 = vld [vmem:[%s14 + $0x30] sm:$0xff]
        %v2026 = vld [vmem:[%s14 + $0x38] sm:$0xff]
        %v2027 = vld [vmem:[%s15] sm:$0x1]
        %v2029 = vlaneseq
        %v2030 = vshrl.u32 %v2029, 7
        %v2031 = vsub.s32 0, %v2030
        %v2032 = vrot.slane %v2027, %v2031
        %vm2034 = vcmask 523264
        %v2036 = vsel %vm2034, %v2018, 0
        %2038 = vmatprep.subr.mxu0 0.0
        %2039 = vmatpush1.msra.mxu0 %v2019
        %2040 = vmatprep.subr.mxu0 0.0
        %2041 = vmatpush1.msra.mxu0 %v2020
        %2042 = vmatprep.subr.mxu0 0.0
        %2043 = vmatpush1.msra.mxu0 %v2021
        %2044 = vmatprep.subr.mxu0 0.0
        %2045 = vmatpush1.msra.mxu0 %v2022
        %2046 = vmatprep.subr.mxu0 0.0
        %2047 = vmatpush1.msra.mxu0 %v2023
        %2048 = vmatprep.subr.mxu0 0.0
        %2049 = vmatpush1.msra.mxu0 %v2024
        %2050 = vmatprep.subr.mxu0 0.0
        %2051 = vmatpush1.msra.mxu0 %v2025
        %2052 = vmatprep.subr.mxu0 0.0
        %2053 = vmatpush1.msra.mxu0 %v2026
        %2054 = vmatprep.subr.mxu0 0.0
        %2055 = vmatpush1.msra.mxu0 0.0
        %2056 = vmatprep.subr.mxu0 0.0
        %2057 = vmatpush1.msra.mxu0 0.0
        %2058 = vmatprep.subr.mxu0 0.0
        %2059 = vmatpush1.msra.mxu0 0.0
        %2060 = vmatprep.subr.mxu0 0.0
        %2061 = vmatpush1.msra.mxu0 0.0
        %2062 = vmatprep.subr.mxu0 0.0
        %2063 = vmatpush1.msra.mxu0 0.0
        %2064 = vmatprep.subr.mxu0 0.0
        %2065 = vmatpush1.msra.mxu0 0.0
        %2066 = vmatprep.subr.mxu0 0.0
        %2067 = vmatpush1.msra.mxu0 0.0
        %2068 = vmatprep.subr.mxu0 0.0
        %2069 = vmatpush1.msra.mxu0 0.0
        %2070 = vmatprep.subr.mxu0 0.0
        %2071 = vmatpush1.msra.mxu0 0.0
        %2072 = vmatprep.subr.mxu0 0.0
        %2073 = vmatpush1.msra.mxu0 0.0
        %2074 = vmatprep.subr.mxu0 0.0
        %2075 = vmatpush1.msra.mxu0 0.0
        %2076 = vmatprep.subr.mxu0 0.0
        %2077 = vmatpush1.msra.mxu0 0.0
        %2078 = vmatprep.subr.mxu0 0.0
        %2079 = vmatpush1.msra.mxu0 0.0
        %2080 = vmatprep.subr.mxu0 0.0
        %2081 = vmatpush1.msra.mxu0 0.0
        %2082 = vmatprep.subr.mxu0 0.0
        %2083 = vmatpush1.msra.mxu0 0.0
        %2084 = vmatprep.subr.mxu0 0.0
        %2085 = vmatpush1.msra.mxu0 0.0
        %2086 = vmatprep.subr.mxu0 0.0
        %2087 = vmatpush1.msra.mxu0 0.0
        %2088 = vmatprep.subr.mxu0 0.0
        %2089 = vmatpush1.msra.mxu0 0.0
        %2090 = vmatprep.subr.mxu0 0.0
        %2091 = vmatpush1.msra.mxu0 0.0
        %2092 = vmatprep.subr.mxu0 0.0
        %2093 = vmatpush1.msra.mxu0 0.0
        %2094 = vmatprep.subr.mxu0 0.0
        %2095 = vmatpush1.msra.mxu0 0.0
        %2096 = vmatprep.subr.mxu0 0.0
        %2097 = vmatpush1.msra.mxu0 0.0
        %2098 = vmatprep.subr.mxu0 0.0
        %2099 = vmatpush1.msra.mxu0 0.0
        %2100 = vmatprep.subr.mxu0 0.0
        %2101 = vmatpush1.msra.mxu0 0.0
        %2102 = vmatprep.mubr.f32.mxu0 0.0
        %2103 = vmatmul.mubr.f32.gmra.mrb[0].mxu0 %v2036
        %v2104 = vpop.f32.mrb[0].mxu0
        %v2105 = vadd.f32 %v2032, %v2104
        %v2106 = vpop.f32.mrb[0].mxu0
        %2107 = vdwg.mxu0
        %v2108 = vld [vmem:[%s16] sm:$0x3]
        %v2109 = vadd.f32 %v1823, %v2105
        %v2110 = vsel %vm760, %v2109, 0.0
        %2111 = vadd.xlane.f32.xlu0 %v2110
        %v2112 = vpop.xlane.xlu0 %2111
        %v2113 = vmul.f32 %v2112, %v1813
        %v2114 = vsub.f32 %v2109, %v2113
        %v2115 = vmul.f32 %v2114, %v2114
        %v2116 = vsel %vm760, %v2115, 0.0
        %2117 = vadd.xlane.f32.xlu0 %v2116
        %v2118 = vpop.xlane.xlu0 %2117
        %v2119 = vmul.f32 %v2118, %v1813
        %v2120 = vadd.f32 %v2119, 1e-05
        %v2121 = vrsqrt.pop %v2120
        %v2122 = vmul.f32 %v2114, %v2121
        %v2123 = vlaneseq
        %v2124 = vshrl.u32 %v2123, 7
        %v2125 = vsub.s32 0, %v2124
        %v2126 = vrot.slane %v2108, %v2125
        %v2127 = vmul.f32 %v2122, %v2126
        %v2128 = vlaneseq
        %v2129 = vshrl.u32 %v2128, 7
        %v2130 = vsub.s32 1, %v2129
        %v2131 = vrot.slane %v2108, %v2130
        %v2132 = vadd.f32 %v2127, %v2131
        %v2133 = vld [vmem:[%s655 + $0x1] sm:$0x1]
        %v2134 = vlaneseq
        %v2135 = vshrl.u32 %v2134, 7
        %v2136 = vsub.s32 0, %v2135
        %v2137 = vrot.slane %v2133, %v2136
        %v2138 = vadd.f32 %v2132, %v2137
        %s2139 = scalar_lea.vmem %s5, 8
        %v2140 = vld [vmem:[%s2139] sm:$0xff]
        %v2141 = vadd.f32 %v2138, %v2140
        %s2142 = scalar_lea.vmem %s6, 32
        %v2143 = vld [vmem:[%s2142] sm:$0xff]
        %v2144 = vld [vmem:[%s2142 + $0x8] sm:$0xff]
        %v2145 = vld [vmem:[%s2142 + $0x10] sm:$0xff]
        %v2146 = vld [vmem:[%s2142 + $0x18] sm:$0xff]
        %s2147 = scalar_lea.vmem %s7, 1
        %v2148 = vld [vmem:[%s2147] sm:$0x1]
        %v2150 = vlaneseq
        %v2151 = vshrl.u32 %v2150, 7
        %v2152 = vsub.s32 0, %v2151
        %v2153 = vrot.slane %v2148, %v2152
        %v2156 = vsel %vm760, %v2141, 0
        %2158 = vmatprep.subr.mxu0 0.0
        %2159 = vmatpush1.msra.mxu0 %v2143
        %2160 = vmatprep.subr.mxu0 0.0
        %2161 = vmatpush1.msra.mxu0 %v2144
        %2162 = vmatprep.subr.mxu0 0.0
        %2163 = vmatpush1.msra.mxu0 %v2145
        %2164 = vmatprep.subr.mxu0 0.0
        %2165 = vmatpush1.msra.mxu0 %v2146
        %2166 = vmatprep.subr.mxu0 0.0
        %2167 = vmatpush1.msra.mxu0 0.0
        %2168 = vmatprep.subr.mxu0 0.0
        %2169 = vmatpush1.msra.mxu0 0.0
        %2170 = vmatprep.subr.mxu0 0.0
        %2171 = vmatpush1.msra.mxu0 0.0
        %2172 = vmatprep.subr.mxu0 0.0
        %2173 = vmatpush1.msra.mxu0 0.0
        %2174 = vmatprep.subr.mxu0 0.0
        %2175 = vmatpush1.msra.mxu0 0.0
        %2176 = vmatprep.subr.mxu0 0.0
        %2177 = vmatpush1.msra.mxu0 0.0
        %2178 = vmatprep.subr.mxu0 0.0
        %2179 = vmatpush1.msra.mxu0 0.0
        %2180 = vmatprep.subr.mxu0 0.0
        %2181 = vmatpush1.msra.mxu0 0.0
        %2182 = vmatprep.subr.mxu0 0.0
        %2183 = vmatpush1.msra.mxu0 0.0
        %2184 = vmatprep.subr.mxu0 0.0
        %2185 = vmatpush1.msra.mxu0 0.0
        %2186 = vmatprep.subr.mxu0 0.0
        %2187 = vmatpush1.msra.mxu0 0.0
        %2188 = vmatprep.subr.mxu0 0.0
        %2189 = vmatpush1.msra.mxu0 0.0
        %2190 = vmatprep.subr.mxu0 0.0
        %2191 = vmatpush1.msra.mxu0 0.0
        %2192 = vmatprep.subr.mxu0 0.0
        %2193 = vmatpush1.msra.mxu0 0.0
        %2194 = vmatprep.subr.mxu0 0.0
        %2195 = vmatpush1.msra.mxu0 0.0
        %2196 = vmatprep.subr.mxu0 0.0
        %2197 = vmatpush1.msra.mxu0 0.0
        %2198 = vmatprep.subr.mxu0 0.0
        %2199 = vmatpush1.msra.mxu0 0.0
        %2200 = vmatprep.subr.mxu0 0.0
        %2201 = vmatpush1.msra.mxu0 0.0
        %2202 = vmatprep.subr.mxu0 0.0
        %2203 = vmatpush1.msra.mxu0 0.0
        %2204 = vmatprep.subr.mxu0 0.0
        %2205 = vmatpush1.msra.mxu0 0.0
        %2206 = vmatprep.subr.mxu0 0.0
        %2207 = vmatpush1.msra.mxu0 0.0
        %2208 = vmatprep.subr.mxu0 0.0
        %2209 = vmatpush1.msra.mxu0 0.0
        %2210 = vmatprep.subr.mxu0 0.0
        %2211 = vmatpush1.msra.mxu0 0.0
        %2212 = vmatprep.subr.mxu0 0.0
        %2213 = vmatpush1.msra.mxu0 0.0
        %2214 = vmatprep.subr.mxu0 0.0
        %2215 = vmatpush1.msra.mxu0 0.0
        %2216 = vmatprep.subr.mxu0 0.0
        %2217 = vmatpush1.msra.mxu0 0.0
        %2218 = vmatprep.subr.mxu0 0.0
        %2219 = vmatpush1.msra.mxu0 0.0
        %2220 = vmatprep.subr.mxu0 0.0
        %2221 = vmatpush1.msra.mxu0 0.0
        %2222 = vmatprep.mubr.f32.mxu0 0.0
        %2223 = vmatmul.mubr.f32.gmra.mrb[0].mxu0 %v2156
        %v2224 = vpop.f32.mrb[0].mxu0
        %v2225 = vadd.f32 %v2153, %v2224
        %v2226 = vpop.f32.mrb[0].mxu0
        %2227 = vdwg.mxu0
        %2229 = vrot.lane.b32.xlu0 %v2225, 96
        %v2230 = vpop.permute.xlu0 %2229
        %v2231 = vsel %vm843, %v2225, 0
        %v2233 = vsel %vm843, %v2230, 0
        %2235 = vmatprep.subr.mxu0 0.0
        %2236 = vmatpush1.xpose.msra.mxu0 %v2233
        %2237 = vmatprep.subr.mxu0 0.0
        %2238 = vmatpush1.xpose.msra.mxu0 0.0
        %2239 = vmatprep.subr.mxu0 0.0
        %2240 = vmatpush1.xpose.msra.mxu0 0.0
        %2241 = vmatprep.subr.mxu0 0.0
        %2242 = vmatpush1.xpose.msra.mxu0 0.0
        %2243 = vmatprep.subr.mxu0 0.0
        %2244 = vmatpush1.xpose.msra.mxu0 0.0
        %2245 = vmatprep.subr.mxu0 0.0
        %2246 = vmatpush1.xpose.msra.mxu0 0.0
        %2247 = vmatprep.subr.mxu0 0.0
        %2248 = vmatpush1.xpose.msra.mxu0 0.0
        %2249 = vmatprep.subr.mxu0 0.0
        %2250 = vmatpush1.xpose.msra.mxu0 0.0
        %2251 = vmatprep.subr.mxu0 0.0
        %2252 = vmatpush1.xpose.msra.mxu0 0.0
        %2253 = vmatprep.subr.mxu0 0.0
        %2254 = vmatpush1.xpose.msra.mxu0 0.0
        %2255 = vmatprep.subr.mxu0 0.0
        %2256 = vmatpush1.xpose.msra.mxu0 0.0
        %2257 = vmatprep.subr.mxu0 0.0
        %2258 = vmatpush1.xpose.msra.mxu0 0.0
        %2259 = vmatprep.subr.mxu0 0.0
        %2260 = vmatpush1.xpose.msra.mxu0 0.0
        %2261 = vmatprep.subr.mxu0 0.0
        %2262 = vmatpush1.xpose.msra.mxu0 0.0
        %2263 = vmatprep.subr.mxu0 0.0
        %2264 = vmatpush1.xpose.msra.mxu0 0.0
        %2265 = vmatprep.subr.mxu0 0.0
        %2266 = vmatpush1.xpose.msra.mxu0 0.0
        %2267 = vmatprep.subr.mxu0 0.0
        %2268 = vmatpush1.xpose.msra.mxu0 0.0
        %2269 = vmatprep.subr.mxu0 0.0
        %2270 = vmatpush1.xpose.msra.mxu0 0.0
        %2271 = vmatprep.subr.mxu0 0.0
        %2272 = vmatpush1.xpose.msra.mxu0 0.0
        %2273 = vmatprep.subr.mxu0 0.0
        %2274 = vmatpush1.xpose.msra.mxu0 0.0
        %2275 = vmatprep.subr.mxu0 0.0
        %2276 = vmatpush1.xpose.msra.mxu0 0.0
        %2277 = vmatprep.subr.mxu0 0.0
        %2278 = vmatpush1.xpose.msra.mxu0 0.0
        %2279 = vmatprep.subr.mxu0 0.0
        %2280 = vmatpush1.xpose.msra.mxu0 0.0
        %2281 = vmatprep.subr.mxu0 0.0
        %2282 = vmatpush1.xpose.msra.mxu0 0.0
        %2283 = vmatprep.subr.mxu0 0.0
        %2284 = vmatpush1.xpose.msra.mxu0 0.0
        %2285 = vmatprep.subr.mxu0 0.0
        %2286 = vmatpush1.xpose.msra.mxu0 0.0
        %2287 = vmatprep.subr.mxu0 0.0
        %2288 = vmatpush1.xpose.msra.mxu0 0.0
        %2289 = vmatprep.subr.mxu0 0.0
        %2290 = vmatpush1.xpose.msra.mxu0 0.0
        %2291 = vmatprep.subr.mxu0 0.0
        %2292 = vmatpush1.xpose.msra.mxu0 0.0
        %2293 = vmatprep.subr.mxu0 0.0
        %2294 = vmatpush1.xpose.msra.mxu0 0.0
        %2295 = vmatprep.subr.mxu0 0.0
        %2296 = vmatpush1.xpose.msra.mxu0 0.0
        %2297 = vmatprep.subr.mxu0 0.0
        %2298 = vmatpush1.xpose.msra.mxu0 0.0
        %2299 = vmatprep.mubr.f32.mxu0 0.0
        %2300 = vmatmul.mubr.f32.gmra.mrb[0].mxu0 %v2231
        %v2301 = vpop.f32.mrb[0].mxu0
        %v2302 = vadd.f32 %v838, %v2301
        %v2303 = vpop.f32.mrb[0].mxu0
        %2304 = vdwg.mxu0
        %v2305 = vsel %vm843, %v2302, -inf
        %2306 = vmax.xlane.f32.xlu0 %v2305
        %v2307 = vpop.xlane.xlu0 %2306
        %v2308 = vsub.f32 %v2302, %v2307
        %v2309 = vmul.f32 %v2308, 1.442695
        %v2310 = vpow.pop %v2309
        %v2311 = vsel %vm843, %v2310, 0.0
        %2312 = vadd.xlane.f32.xlu0 %v2311
        %v2313 = vpop.xlane.xlu0 %2312
        %v2314 = vrcp.pop %v2313
        %v2315 = vmul.f32 %v2310, %v2314
        %2316 = vrot.lane.b32.xlu0 %v2225, 64
        %v2317 = vpop.permute.xlu0 %2316
        %v2320 = vsel %vm843, %v2315, 0
        %2322 = vmatprep.subr.mxu0 0.0
        %2323 = vmatpush1.msra.mxu0 %v2317
        %2324 = vmatprep.subr.mxu0 0.0
        %2325 = vmatpush1.msra.mxu0 0.0
        %2326 = vmatprep.subr.mxu0 0.0
        %2327 = vmatpush1.msra.mxu0 0.0
        %2328 = vmatprep.subr.mxu0 0.0
        %2329 = vmatpush1.msra.mxu0 0.0
        %2330 = vmatprep.subr.mxu0 0.0
        %2331 = vmatpush1.msra.mxu0 0.0
        %2332 = vmatprep.subr.mxu0 0.0
        %2333 = vmatpush1.msra.mxu0 0.0
        %2334 = vmatprep.subr.mxu0 0.0
        %2335 = vmatpush1.msra.mxu0 0.0
        %2336 = vmatprep.subr.mxu0 0.0
        %2337 = vmatpush1.msra.mxu0 0.0
        %2338 = vmatprep.subr.mxu0 0.0
        %2339 = vmatpush1.msra.mxu0 0.0
        %2340 = vmatprep.subr.mxu0 0.0
        %2341 = vmatpush1.msra.mxu0 0.0
        %2342 = vmatprep.subr.mxu0 0.0
        %2343 = vmatpush1.msra.mxu0 0.0
        %2344 = vmatprep.subr.mxu0 0.0
        %2345 = vmatpush1.msra.mxu0 0.0
        %2346 = vmatprep.subr.mxu0 0.0
        %2347 = vmatpush1.msra.mxu0 0.0
        %2348 = vmatprep.subr.mxu0 0.0
        %2349 = vmatpush1.msra.mxu0 0.0
        %2350 = vmatprep.subr.mxu0 0.0
        %2351 = vmatpush1.msra.mxu0 0.0
        %2352 = vmatprep.subr.mxu0 0.0
        %2353 = vmatpush1.msra.mxu0 0.0
        %2354 = vmatprep.subr.mxu0 0.0
        %2355 = vmatpush1.msra.mxu0 0.0
        %2356 = vmatprep.subr.mxu0 0.0
        %2357 = vmatpush1.msra.mxu0 0.0
        %2358 = vmatprep.subr.mxu0 0.0
        %2359 = vmatpush1.msra.mxu0 0.0
        %2360 = vmatprep.subr.mxu0 0.0
        %2361 = vmatpush1.msra.mxu0 0.0
        %2362 = vmatprep.subr.mxu0 0.0
        %2363 = vmatpush1.msra.mxu0 0.0
        %2364 = vmatprep.subr.mxu0 0.0
        %2365 = vmatpush1.msra.mxu0 0.0
        %2366 = vmatprep.subr.mxu0 0.0
        %2367 = vmatpush1.msra.mxu0 0.0
        %2368 = vmatprep.subr.mxu0 0.0
        %2369 = vmatpush1.msra.mxu0 0.0
        %2370 = vmatprep.subr.mxu0 0.0
        %2371 = vmatpush1.msra.mxu0 0.0
        %2372 = vmatprep.subr.mxu0 0.0
        %2373 = vmatpush1.msra.mxu0 0.0
        %2374 = vmatprep.subr.mxu0 0.0
        %2375 = vmatpush1.msra.mxu0 0.0
        %2376 = vmatprep.subr.mxu0 0.0
        %2377 = vmatpush1.msra.mxu0 0.0
        %2378 = vmatprep.subr.mxu0 0.0
        %2379 = vmatpush1.msra.mxu0 0.0
        %2380 = vmatprep.subr.mxu0 0.0
        %2381 = vmatpush1.msra.mxu0 0.0
        %2382 = vmatprep.subr.mxu0 0.0
        %2383 = vmatpush1.msra.mxu0 0.0
        %2384 = vmatprep.subr.mxu0 0.0
        %2385 = vmatpush1.msra.mxu0 0.0
        %2386 = vmatprep.mubr.f32.mxu0 0.0
        %2387 = vmatmul.mubr.f32.gmra.mrb[0].mxu0 %v2320
        %v2388 = vpop.f32.mrb[0].mxu0
        %v2389 = vadd.f32 0.0, %v2388
        %v2390 = vpop.f32.mrb[0].mxu0
        %2391 = vdwg.mxu0
        %s2392 = scalar_lea.vmem %s8, 32
        %v2393 = vld [vmem:[%s2392] sm:$0xff]
        %2394 = vrot.lane.b32.xlu0 %v2225, 120
        %v2395 = vpop.permute.xlu0 %2394
        %2396 = vrot.lane.b32.xlu0 %v2225, 88
        %v2397 = vpop.permute.xlu0 %2396
        %v2398 = vsel %vm843, %v2395, 0
        %v2400 = vsel %vm843, %v2397, 0
        %2402 = vmatprep.subr.mxu0 0.0
        %2403 = vmatpush1.xpose.msra.mxu0 %v2400
        %2404 = vmatprep.subr.mxu0 0.0
        %2405 = vmatpush1.xpose.msra.mxu0 0.0
        %2406 = vmatprep.subr.mxu0 0.0
        %2407 = vmatpush1.xpose.msra.mxu0 0.0
        %2408 = vmatprep.subr.mxu0 0.0
        %2409 = vmatpush1.xpose.msra.mxu0 0.0
        %2410 = vmatprep.subr.mxu0 0.0
        %2411 = vmatpush1.xpose.msra.mxu0 0.0
        %2412 = vmatprep.subr.mxu0 0.0
        %2413 = vmatpush1.xpose.msra.mxu0 0.0
        %2414 = vmatprep.subr.mxu0 0.0
        %2415 = vmatpush1.xpose.msra.mxu0 0.0
        %2416 = vmatprep.subr.mxu0 0.0
        %2417 = vmatpush1.xpose.msra.mxu0 0.0
        %2418 = vmatprep.subr.mxu0 0.0
        %2419 = vmatpush1.xpose.msra.mxu0 0.0
        %2420 = vmatprep.subr.mxu0 0.0
        %2421 = vmatpush1.xpose.msra.mxu0 0.0
        %2422 = vmatprep.subr.mxu0 0.0
        %2423 = vmatpush1.xpose.msra.mxu0 0.0
        %2424 = vmatprep.subr.mxu0 0.0
        %2425 = vmatpush1.xpose.msra.mxu0 0.0
        %2426 = vmatprep.subr.mxu0 0.0
        %2427 = vmatpush1.xpose.msra.mxu0 0.0
        %2428 = vmatprep.subr.mxu0 0.0
        %2429 = vmatpush1.xpose.msra.mxu0 0.0
        %2430 = vmatprep.subr.mxu0 0.0
        %2431 = vmatpush1.xpose.msra.mxu0 0.0
        %2432 = vmatprep.subr.mxu0 0.0
        %2433 = vmatpush1.xpose.msra.mxu0 0.0
        %2434 = vmatprep.subr.mxu0 0.0
        %2435 = vmatpush1.xpose.msra.mxu0 0.0
        %2436 = vmatprep.subr.mxu0 0.0
        %2437 = vmatpush1.xpose.msra.mxu0 0.0
        %2438 = vmatprep.subr.mxu0 0.0
        %2439 = vmatpush1.xpose.msra.mxu0 0.0
        %2440 = vmatprep.subr.mxu0 0.0
        %2441 = vmatpush1.xpose.msra.mxu0 0.0
        %2442 = vmatprep.subr.mxu0 0.0
        %2443 = vmatpush1.xpose.msra.mxu0 0.0
        %2444 = vmatprep.subr.mxu0 0.0
        %2445 = vmatpush1.xpose.msra.mxu0 0.0
        %2446 = vmatprep.subr.mxu0 0.0
        %2447 = vmatpush1.xpose.msra.mxu0 0.0
        %2448 = vmatprep.subr.mxu0 0.0
        %2449 = vmatpush1.xpose.msra.mxu0 0.0
        %2450 = vmatprep.subr.mxu0 0.0
        %2451 = vmatpush1.xpose.msra.mxu0 0.0
        %2452 = vmatprep.subr.mxu0 0.0
        %2453 = vmatpush1.xpose.msra.mxu0 0.0
        %2454 = vmatprep.subr.mxu0 0.0
        %2455 = vmatpush1.xpose.msra.mxu0 0.0
        %2456 = vmatprep.subr.mxu0 0.0
        %2457 = vmatpush1.xpose.msra.mxu0 0.0
        %2458 = vmatprep.subr.mxu0 0.0
        %2459 = vmatpush1.xpose.msra.mxu0 0.0
        %2460 = vmatprep.subr.mxu0 0.0
        %2461 = vmatpush1.xpose.msra.mxu0 0.0
        %2462 = vmatprep.subr.mxu0 0.0
        %2463 = vmatpush1.xpose.msra.mxu0 0.0
        %2464 = vmatprep.subr.mxu0 0.0
        %2465 = vmatpush1.xpose.msra.mxu0 0.0
        %2466 = vmatprep.mubr.f32.mxu0 0.0
        %2467 = vmatmul.mubr.f32.gmra.mrb[0].mxu0 %v2398
        %v2468 = vpop.f32.mrb[0].mxu0
        %v2469 = vadd.f32 %v838, %v2468
        %v2470 = vpop.f32.mrb[0].mxu0
        %2471 = vdwg.mxu0
        %v2472 = vsel %vm843, %v2469, -inf
        %2473 = vmax.xlane.f32.xlu0 %v2472
        %v2474 = vpop.xlane.xlu0 %2473
        %v2475 = vsub.f32 %v2469, %v2474
        %v2476 = vmul.f32 %v2475, 1.442695
        %v2477 = vpow.pop %v2476
        %v2478 = vsel %vm843, %v2477, 0.0
        %2479 = vadd.xlane.f32.xlu0 %v2478
        %v2480 = vpop.xlane.xlu0 %2479
        %v2481 = vrcp.pop %v2480
        %v2482 = vmul.f32 %v2477, %v2481
        %2483 = vrot.lane.b32.xlu0 %v2225, 56
        %v2484 = vpop.permute.xlu0 %2483
        %v2487 = vsel %vm843, %v2482, 0
        %2489 = vmatprep.subr.mxu0 0.0
        %2490 = vmatpush1.msra.mxu0 %v2484
        %2491 = vmatprep.subr.mxu0 0.0
        %2492 = vmatpush1.msra.mxu0 0.0
        %2493 = vmatprep.subr.mxu0 0.0
        %2494 = vmatpush1.msra.mxu0 0.0
        %2495 = vmatprep.subr.mxu0 0.0
        %2496 = vmatpush1.msra.mxu0 0.0
        %2497 = vmatprep.subr.mxu0 0.0
        %2498 = vmatpush1.msra.mxu0 0.0
        %2499 = vmatprep.subr.mxu0 0.0
        %2500 = vmatpush1.msra.mxu0 0.0
        %2501 = vmatprep.subr.mxu0 0.0
        %2502 = vmatpush1.msra.mxu0 0.0
        %2503 = vmatprep.subr.mxu0 0.0
        %2504 = vmatpush1.msra.mxu0 0.0
        %2505 = vmatprep.subr.mxu0 0.0
        %2506 = vmatpush1.msra.mxu0 0.0
        %2507 = vmatprep.subr.mxu0 0.0
        %2508 = vmatpush1.msra.mxu0 0.0
        %2509 = vmatprep.subr.mxu0 0.0
        %2510 = vmatpush1.msra.mxu0 0.0
        %2511 = vmatprep.subr.mxu0 0.0
        %2512 = vmatpush1.msra.mxu0 0.0
        %2513 = vmatprep.subr.mxu0 0.0
        %2514 = vmatpush1.msra.mxu0 0.0
        %2515 = vmatprep.subr.mxu0 0.0
        %2516 = vmatpush1.msra.mxu0 0.0
        %2517 = vmatprep.subr.mxu0 0.0
        %2518 = vmatpush1.msra.mxu0 0.0
        %2519 = vmatprep.subr.mxu0 0.0
        %2520 = vmatpush1.msra.mxu0 0.0
        %2521 = vmatprep.subr.mxu0 0.0
        %2522 = vmatpush1.msra.mxu0 0.0
        %2523 = vmatprep.subr.mxu0 0.0
        %2524 = vmatpush1.msra.mxu0 0.0
        %2525 = vmatprep.subr.mxu0 0.0
        %2526 = vmatpush1.msra.mxu0 0.0
        %2527 = vmatprep.subr.mxu0 0.0
        %2528 = vmatpush1.msra.mxu0 0.0
        %2529 = vmatprep.subr.mxu0 0.0
        %2530 = vmatpush1.msra.mxu0 0.0
        %2531 = vmatprep.subr.mxu0 0.0
        %2532 = vmatpush1.msra.mxu0 0.0
        %2533 = vmatprep.subr.mxu0 0.0
        %2534 = vmatpush1.msra.mxu0 0.0
        %2535 = vmatprep.subr.mxu0 0.0
        %2536 = vmatpush1.msra.mxu0 0.0
        %2537 = vmatprep.subr.mxu0 0.0
        %2538 = vmatpush1.msra.mxu0 0.0
        %2539 = vmatprep.subr.mxu0 0.0
        %2540 = vmatpush1.msra.mxu0 0.0
        %2541 = vmatprep.subr.mxu0 0.0
        %2542 = vmatpush1.msra.mxu0 0.0
        %2543 = vmatprep.subr.mxu0 0.0
        %2544 = vmatpush1.msra.mxu0 0.0
        %2545 = vmatprep.subr.mxu0 0.0
        %2546 = vmatpush1.msra.mxu0 0.0
        %2547 = vmatprep.subr.mxu0 0.0
        %2548 = vmatpush1.msra.mxu0 0.0
        %2549 = vmatprep.subr.mxu0 0.0
        %2550 = vmatpush1.msra.mxu0 0.0
        %2551 = vmatprep.subr.mxu0 0.0
        %2552 = vmatpush1.msra.mxu0 0.0
        %2553 = vmatprep.mubr.f32.mxu0 0.0
        %2554 = vmatmul.mubr.f32.gmra.mrb[0].mxu0 %v2487
        %v2555 = vpop.f32.mrb[0].mxu0
        %v2556 = vadd.f32 0.0, %v2555
        %v2557 = vpop.f32.mrb[0].mxu0
        %2558 = vdwg.mxu0
        %s2559 = scalar_lea.vmem %s8, 40
        %v2560 = vld [vmem:[%s2559] sm:$0xff]
        %v2562 = vsel %vm843, %v2556, 0
        %2564 = vmatprep.subr.mxu0 0.0
        %2565 = vmatpush1.msra.mxu0 %v2560
        %2566 = vmatprep.subr.mxu0 0.0
        %2567 = vmatpush1.msra.mxu0 0.0
        %2568 = vmatprep.subr.mxu0 0.0
        %2569 = vmatpush1.msra.mxu0 0.0
        %2570 = vmatprep.subr.mxu0 0.0
        %2571 = vmatpush1.msra.mxu0 0.0
        %2572 = vmatprep.subr.mxu0 0.0
        %2573 = vmatpush1.msra.mxu0 0.0
        %2574 = vmatprep.subr.mxu0 0.0
        %2575 = vmatpush1.msra.mxu0 0.0
        %2576 = vmatprep.subr.mxu0 0.0
        %2577 = vmatpush1.msra.mxu0 0.0
        %2578 = vmatprep.subr.mxu0 0.0
        %2579 = vmatpush1.msra.mxu0 0.0
        %2580 = vmatprep.subr.mxu0 0.0
        %2581 = vmatpush1.msra.mxu0 0.0
        %2582 = vmatprep.subr.mxu0 0.0
        %2583 = vmatpush1.msra.mxu0 0.0
        %2584 = vmatprep.subr.mxu0 0.0
        %2585 = vmatpush1.msra.mxu0 0.0
        %2586 = vmatprep.subr.mxu0 0.0
        %2587 = vmatpush1.msra.mxu0 0.0
        %2588 = vmatprep.subr.mxu0 0.0
        %2589 = vmatpush1.msra.mxu0 0.0
        %2590 = vmatprep.subr.mxu0 0.0
        %2591 = vmatpush1.msra.mxu0 0.0
        %2592 = vmatprep.subr.mxu0 0.0
        %2593 = vmatpush1.msra.mxu0 0.0
        %2594 = vmatprep.subr.mxu0 0.0
        %2595 = vmatpush1.msra.mxu0 0.0
        %2596 = vmatprep.subr.mxu0 0.0
        %2597 = vmatpush1.msra.mxu0 0.0
        %2598 = vmatprep.subr.mxu0 0.0
        %2599 = vmatpush1.msra.mxu0 0.0
        %2600 = vmatprep.subr.mxu0 0.0
        %2601 = vmatpush1.msra.mxu0 0.0
        %2602 = vmatprep.subr.mxu0 0.0
        %2603 = vmatpush1.msra.mxu0 0.0
        %2604 = vmatprep.subr.mxu0 0.0
        %2605 = vmatpush1.msra.mxu0 0.0
        %2606 = vmatprep.subr.mxu0 0.0
        %2607 = vmatpush1.msra.mxu0 0.0
        %2608 = vmatprep.subr.mxu0 0.0
        %2609 = vmatpush1.msra.mxu0 0.0
        %2610 = vmatprep.subr.mxu0 0.0
        %2611 = vmatpush1.msra.mxu0 0.0
        %2612 = vmatprep.subr.mxu0 0.0
        %2613 = vmatpush1.msra.mxu0 0.0
        %2614 = vmatprep.subr.mxu0 0.0
        %2615 = vmatpush1.msra.mxu0 0.0
        %2616 = vmatprep.subr.mxu0 0.0
        %2617 = vmatpush1.msra.mxu0 0.0
        %2618 = vmatprep.subr.mxu0 0.0
        %2619 = vmatpush1.msra.mxu0 0.0
        %2620 = vmatprep.subr.mxu0 0.0
        %2621 = vmatpush1.msra.mxu0 0.0
        %2622 = vmatprep.subr.mxu0 0.0
        %2623 = vmatpush1.msra.mxu0 0.0
        %2624 = vmatprep.subr.mxu0 0.0
        %2625 = vmatpush1.msra.mxu0 0.0
        %2626 = vmatprep.subr.mxu0 0.0
        %2627 = vmatpush1.msra.mxu0 0.0
        %2628 = vmatprep.mubr.f32.mxu0 0.0
        %2629 = vmatmul.mubr.f32.gmra.mrb[0].mxu0 %v2562
        %v2630 = vpop.f32.mrb[0].mxu0
        %v2631 = vadd.f32 0.0, %v2630
        %v2632 = vpop.f32.mrb[0].mxu0
        %2633 = vdwg.mxu0
        %v2635 = vsel %vm843, %v2389, 0
        %2637 = vmatprep.subr.mxu0 0.0
        %2638 = vmatpush1.msra.mxu0 %v2393
        %2639 = vmatprep.subr.mxu0 0.0
        %2640 = vmatpush1.msra.mxu0 0.0
        %2641 = vmatprep.subr.mxu0 0.0
        %2642 = vmatpush1.msra.mxu0 0.0
        %2643 = vmatprep.subr.mxu0 0.0
        %2644 = vmatpush1.msra.mxu0 0.0
        %2645 = vmatprep.subr.mxu0 0.0
        %2646 = vmatpush1.msra.mxu0 0.0
        %2647 = vmatprep.subr.mxu0 0.0
        %2648 = vmatpush1.msra.mxu0 0.0
        %2649 = vmatprep.subr.mxu0 0.0
        %2650 = vmatpush1.msra.mxu0 0.0
        %2651 = vmatprep.subr.mxu0 0.0
        %2652 = vmatpush1.msra.mxu0 0.0
        %2653 = vmatprep.subr.mxu0 0.0
        %2654 = vmatpush1.msra.mxu0 0.0
        %2655 = vmatprep.subr.mxu0 0.0
        %2656 = vmatpush1.msra.mxu0 0.0
        %2657 = vmatprep.subr.mxu0 0.0
        %2658 = vmatpush1.msra.mxu0 0.0
        %2659 = vmatprep.subr.mxu0 0.0
        %2660 = vmatpush1.msra.mxu0 0.0
        %2661 = vmatprep.subr.mxu0 0.0
        %2662 = vmatpush1.msra.mxu0 0.0
        %2663 = vmatprep.subr.mxu0 0.0
        %2664 = vmatpush1.msra.mxu0 0.0
        %2665 = vmatprep.subr.mxu0 0.0
        %2666 = vmatpush1.msra.mxu0 0.0
        %2667 = vmatprep.subr.mxu0 0.0
        %2668 = vmatpush1.msra.mxu0 0.0
        %2669 = vmatprep.subr.mxu0 0.0
        %2670 = vmatpush1.msra.mxu0 0.0
        %2671 = vmatprep.subr.mxu0 0.0
        %2672 = vmatpush1.msra.mxu0 0.0
        %2673 = vmatprep.subr.mxu0 0.0
        %2674 = vmatpush1.msra.mxu0 0.0
        %2675 = vmatprep.subr.mxu0 0.0
        %2676 = vmatpush1.msra.mxu0 0.0
        %2677 = vmatprep.subr.mxu0 0.0
        %2678 = vmatpush1.msra.mxu0 0.0
        %2679 = vmatprep.subr.mxu0 0.0
        %2680 = vmatpush1.msra.mxu0 0.0
        %2681 = vmatprep.subr.mxu0 0.0
        %2682 = vmatpush1.msra.mxu0 0.0
        %2683 = vmatprep.subr.mxu0 0.0
        %2684 = vmatpush1.msra.mxu0 0.0
        %2685 = vmatprep.subr.mxu0 0.0
        %2686 = vmatpush1.msra.mxu0 0.0
        %2687 = vmatprep.subr.mxu0 0.0
        %2688 = vmatpush1.msra.mxu0 0.0
        %2689 = vmatprep.subr.mxu0 0.0
        %2690 = vmatpush1.msra.mxu0 0.0
        %2691 = vmatprep.subr.mxu0 0.0
        %2692 = vmatpush1.msra.mxu0 0.0
        %2693 = vmatprep.subr.mxu0 0.0
        %2694 = vmatpush1.msra.mxu0 0.0
        %2695 = vmatprep.subr.mxu0 0.0
        %2696 = vmatpush1.msra.mxu0 0.0
        %2697 = vmatprep.subr.mxu0 0.0
        %2698 = vmatpush1.msra.mxu0 0.0
        %2699 = vmatprep.subr.mxu0 0.0
        %2700 = vmatpush1.msra.mxu0 0.0
        %2701 = vmatprep.mubr.f32.mxu0 0.0
        %2702 = vmatmul.mubr.f32.gmra.mrb[0].mxu0 %v2635
        %v2703 = vpop.f32.mrb[0].mxu0
        %v2704 = vadd.f32 %v2631, %v2703
        %v2705 = vpop.f32.mrb[0].mxu0
        %2706 = vdwg.mxu0
        %2707 = vrot.lane.b32.xlu0 %v2225, 112
        %v2708 = vpop.permute.xlu0 %2707
        %2709 = vrot.lane.b32.xlu0 %v2225, 80
        %v2710 = vpop.permute.xlu0 %2709
        %v2711 = vsel %vm843, %v2708, 0
        %v2713 = vsel %vm843, %v2710, 0
        %2715 = vmatprep.subr.mxu0 0.0
        %2716 = vmatpush1.xpose.msra.mxu0 %v2713
        %2717 = vmatprep.subr.mxu0 0.0
        %2718 = vmatpush1.xpose.msra.mxu0 0.0
        %2719 = vmatprep.subr.mxu0 0.0
        %2720 = vmatpush1.xpose.msra.mxu0 0.0
        %2721 = vmatprep.subr.mxu0 0.0
        %2722 = vmatpush1.xpose.msra.mxu0 0.0
        %2723 = vmatprep.subr.mxu0 0.0
        %2724 = vmatpush1.xpose.msra.mxu0 0.0
        %2725 = vmatprep.subr.mxu0 0.0
        %2726 = vmatpush1.xpose.msra.mxu0 0.0
        %2727 = vmatprep.subr.mxu0 0.0
        %2728 = vmatpush1.xpose.msra.mxu0 0.0
        %2729 = vmatprep.subr.mxu0 0.0
        %2730 = vmatpush1.xpose.msra.mxu0 0.0
        %2731 = vmatprep.subr.mxu0 0.0
        %2732 = vmatpush1.xpose.msra.mxu0 0.0
        %2733 = vmatprep.subr.mxu0 0.0
        %2734 = vmatpush1.xpose.msra.mxu0 0.0
        %2735 = vmatprep.subr.mxu0 0.0
        %2736 = vmatpush1.xpose.msra.mxu0 0.0
        %2737 = vmatprep.subr.mxu0 0.0
        %2738 = vmatpush1.xpose.msra.mxu0 0.0
        %2739 = vmatprep.subr.mxu0 0.0
        %2740 = vmatpush1.xpose.msra.mxu0 0.0
        %2741 = vmatprep.subr.mxu0 0.0
        %2742 = vmatpush1.xpose.msra.mxu0 0.0
        %2743 = vmatprep.subr.mxu0 0.0
        %2744 = vmatpush1.xpose.msra.mxu0 0.0
        %2745 = vmatprep.subr.mxu0 0.0
        %2746 = vmatpush1.xpose.msra.mxu0 0.0
        %2747 = vmatprep.subr.mxu0 0.0
        %2748 = vmatpush1.xpose.msra.mxu0 0.0
        %2749 = vmatprep.subr.mxu0 0.0
        %2750 = vmatpush1.xpose.msra.mxu0 0.0
        %2751 = vmatprep.subr.mxu0 0.0
        %2752 = vmatpush1.xpose.msra.mxu0 0.0
        %2753 = vmatprep.subr.mxu0 0.0
        %2754 = vmatpush1.xpose.msra.mxu0 0.0
        %2755 = vmatprep.subr.mxu0 0.0
        %2756 = vmatpush1.xpose.msra.mxu0 0.0
        %2757 = vmatprep.subr.mxu0 0.0
        %2758 = vmatpush1.xpose.msra.mxu0 0.0
        %2759 = vmatprep.subr.mxu0 0.0
        %2760 = vmatpush1.xpose.msra.mxu0 0.0
        %2761 = vmatprep.subr.mxu0 0.0
        %2762 = vmatpush1.xpose.msra.mxu0 0.0
        %2763 = vmatprep.subr.mxu0 0.0
        %2764 = vmatpush1.xpose.msra.mxu0 0.0
        %2765 = vmatprep.subr.mxu0 0.0
        %2766 = vmatpush1.xpose.msra.mxu0 0.0
        %2767 = vmatprep.subr.mxu0 0.0
        %2768 = vmatpush1.xpose.msra.mxu0 0.0
        %2769 = vmatprep.subr.mxu0 0.0
        %2770 = vmatpush1.xpose.msra.mxu0 0.0
        %2771 = vmatprep.subr.mxu0 0.0
        %2772 = vmatpush1.xpose.msra.mxu0 0.0
        %2773 = vmatprep.subr.mxu0 0.0
        %2774 = vmatpush1.xpose.msra.mxu0 0.0
        %2775 = vmatprep.subr.mxu0 0.0
        %2776 = vmatpush1.xpose.msra.mxu0 0.0
        %2777 = vmatprep.subr.mxu0 0.0
        %2778 = vmatpush1.xpose.msra.mxu0 0.0
        %2779 = vmatprep.mubr.f32.mxu0 0.0
        %2780 = vmatmul.mubr.f32.gmra.mrb[0].mxu0 %v2711
        %v2781 = vpop.f32.mrb[0].mxu0
        %v2782 = vadd.f32 %v838, %v2781
        %v2783 = vpop.f32.mrb[0].mxu0
        %2784 = vdwg.mxu0
        %v2785 = vsel %vm843, %v2782, -inf
        %2786 = vmax.xlane.f32.xlu0 %v2785
        %v2787 = vpop.xlane.xlu0 %2786
        %v2788 = vsub.f32 %v2782, %v2787
        %v2789 = vmul.f32 %v2788, 1.442695
        %v2790 = vpow.pop %v2789
        %v2791 = vsel %vm843, %v2790, 0.0
        %2792 = vadd.xlane.f32.xlu0 %v2791
        %v2793 = vpop.xlane.xlu0 %2792
        %v2794 = vrcp.pop %v2793
        %v2795 = vmul.f32 %v2790, %v2794
        %2796 = vrot.lane.b32.xlu0 %v2225, 48
        %v2797 = vpop.permute.xlu0 %2796
        %v2800 = vsel %vm843, %v2795, 0
        %2802 = vmatprep.subr.mxu0 0.0
        %2803 = vmatpush1.msra.mxu0 %v2797
        %2804 = vmatprep.subr.mxu0 0.0
        %2805 = vmatpush1.msra.mxu0 0.0
        %2806 = vmatprep.subr.mxu0 0.0
        %2807 = vmatpush1.msra.mxu0 0.0
        %2808 = vmatprep.subr.mxu0 0.0
        %2809 = vmatpush1.msra.mxu0 0.0
        %2810 = vmatprep.subr.mxu0 0.0
        %2811 = vmatpush1.msra.mxu0 0.0
        %2812 = vmatprep.subr.mxu0 0.0
        %2813 = vmatpush1.msra.mxu0 0.0
        %2814 = vmatprep.subr.mxu0 0.0
        %2815 = vmatpush1.msra.mxu0 0.0
        %2816 = vmatprep.subr.mxu0 0.0
        %2817 = vmatpush1.msra.mxu0 0.0
        %2818 = vmatprep.subr.mxu0 0.0
        %2819 = vmatpush1.msra.mxu0 0.0
        %2820 = vmatprep.subr.mxu0 0.0
        %2821 = vmatpush1.msra.mxu0 0.0
        %2822 = vmatprep.subr.mxu0 0.0
        %2823 = vmatpush1.msra.mxu0 0.0
        %2824 = vmatprep.subr.mxu0 0.0
        %2825 = vmatpush1.msra.mxu0 0.0
        %2826 = vmatprep.subr.mxu0 0.0
        %2827 = vmatpush1.msra.mxu0 0.0
        %2828 = vmatprep.subr.mxu0 0.0
        %2829 = vmatpush1.msra.mxu0 0.0
        %2830 = vmatprep.subr.mxu0 0.0
        %2831 = vmatpush1.msra.mxu0 0.0
        %2832 = vmatprep.subr.mxu0 0.0
        %2833 = vmatpush1.msra.mxu0 0.0
        %2834 = vmatprep.subr.mxu0 0.0
        %2835 = vmatpush1.msra.mxu0 0.0
        %2836 = vmatprep.subr.mxu0 0.0
        %2837 = vmatpush1.msra.mxu0 0.0
        %2838 = vmatprep.subr.mxu0 0.0
        %2839 = vmatpush1.msra.mxu0 0.0
        %2840 = vmatprep.subr.mxu0 0.0
        %2841 = vmatpush1.msra.mxu0 0.0
        %2842 = vmatprep.subr.mxu0 0.0
        %2843 = vmatpush1.msra.mxu0 0.0
        %2844 = vmatprep.subr.mxu0 0.0
        %2845 = vmatpush1.msra.mxu0 0.0
        %2846 = vmatprep.subr.mxu0 0.0
        %2847 = vmatpush1.msra.mxu0 0.0
        %2848 = vmatprep.subr.mxu0 0.0
        %2849 = vmatpush1.msra.mxu0 0.0
        %2850 = vmatprep.subr.mxu0 0.0
        %2851 = vmatpush1.msra.mxu0 0.0
        %2852 = vmatprep.subr.mxu0 0.0
        %2853 = vmatpush1.msra.mxu0 0.0
        %2854 = vmatprep.subr.mxu0 0.0
        %2855 = vmatpush1.msra.mxu0 0.0
        %2856 = vmatprep.subr.mxu0 0.0
        %2857 = vmatpush1.msra.mxu0 0.0
        %2858 = vmatprep.subr.mxu0 0.0
        %2859 = vmatpush1.msra.mxu0 0.0
        %2860 = vmatprep.subr.mxu0 0.0
        %2861 = vmatpush1.msra.mxu0 0.0
        %2862 = vmatprep.subr.mxu0 0.0
        %2863 = vmatpush1.msra.mxu0 0.0
        %2864 = vmatprep.subr.mxu0 0.0
        %2865 = vmatpush1.msra.mxu0 0.0
        %2866 = vmatprep.mubr.f32.mxu0 0.0
        %2867 = vmatmul.mubr.f32.gmra.mrb[0].mxu0 %v2800
        %v2868 = vpop.f32.mrb[0].mxu0
        %v2869 = vadd.f32 0.0, %v2868
        %v2870 = vpop.f32.mrb[0].mxu0
        %2871 = vdwg.mxu0
        %s2872 = scalar_lea.vmem %s8, 48
        %v2873 = vld [vmem:[%s2872] sm:$0xff]
        %v2875 = vsel %vm843, %v2869, 0
        %2877 = vmatprep.subr.mxu0 0.0
        %2878 = vmatpush1.msra.mxu0 %v2873
        %2879 = vmatprep.subr.mxu0 0.0
        %2880 = vmatpush1.msra.mxu0 0.0
        %2881 = vmatprep.subr.mxu0 0.0
        %2882 = vmatpush1.msra.mxu0 0.0
        %2883 = vmatprep.subr.mxu0 0.0
        %2884 = vmatpush1.msra.mxu0 0.0
        %2885 = vmatprep.subr.mxu0 0.0
        %2886 = vmatpush1.msra.mxu0 0.0
        %2887 = vmatprep.subr.mxu0 0.0
        %2888 = vmatpush1.msra.mxu0 0.0
        %2889 = vmatprep.subr.mxu0 0.0
        %2890 = vmatpush1.msra.mxu0 0.0
        %2891 = vmatprep.subr.mxu0 0.0
        %2892 = vmatpush1.msra.mxu0 0.0
        %2893 = vmatprep.subr.mxu0 0.0
        %2894 = vmatpush1.msra.mxu0 0.0
        %2895 = vmatprep.subr.mxu0 0.0
        %2896 = vmatpush1.msra.mxu0 0.0
        %2897 = vmatprep.subr.mxu0 0.0
        %2898 = vmatpush1.msra.mxu0 0.0
        %2899 = vmatprep.subr.mxu0 0.0
        %2900 = vmatpush1.msra.mxu0 0.0
        %2901 = vmatprep.subr.mxu0 0.0
        %2902 = vmatpush1.msra.mxu0 0.0
        %2903 = vmatprep.subr.mxu0 0.0
        %2904 = vmatpush1.msra.mxu0 0.0
        %2905 = vmatprep.subr.mxu0 0.0
        %2906 = vmatpush1.msra.mxu0 0.0
        %2907 = vmatprep.subr.mxu0 0.0
        %2908 = vmatpush1.msra.mxu0 0.0
        %2909 = vmatprep.subr.mxu0 0.0
        %2910 = vmatpush1.msra.mxu0 0.0
        %2911 = vmatprep.subr.mxu0 0.0
        %2912 = vmatpush1.msra.mxu0 0.0
        %2913 = vmatprep.subr.mxu0 0.0
        %2914 = vmatpush1.msra.mxu0 0.0
        %2915 = vmatprep.subr.mxu0 0.0
        %2916 = vmatpush1.msra.mxu0 0.0
        %2917 = vmatprep.subr.mxu0 0.0
        %2918 = vmatpush1.msra.mxu0 0.0
        %2919 = vmatprep.subr.mxu0 0.0
        %2920 = vmatpush1.msra.mxu0 0.0
        %2921 = vmatprep.subr.mxu0 0.0
        %2922 = vmatpush1.msra.mxu0 0.0
        %2923 = vmatprep.subr.mxu0 0.0
        %2924 = vmatpush1.msra.mxu0 0.0
        %2925 = vmatprep.subr.mxu0 0.0
        %2926 = vmatpush1.msra.mxu0 0.0
        %2927 = vmatprep.subr.mxu0 0.0
        %2928 = vmatpush1.msra.mxu0 0.0
        %2929 = vmatprep.subr.mxu0 0.0
        %2930 = vmatpush1.msra.mxu0 0.0
        %2931 = vmatprep.subr.mxu0 0.0
        %2932 = vmatpush1.msra.mxu0 0.0
        %2933 = vmatprep.subr.mxu0 0.0
        %2934 = vmatpush1.msra.mxu0 0.0
        %2935 = vmatprep.subr.mxu0 0.0
        %2936 = vmatpush1.msra.mxu0 0.0
        %2937 = vmatprep.subr.mxu0 0.0
        %2938 = vmatpush1.msra.mxu0 0.0
        %2939 = vmatprep.subr.mxu0 0.0
        %2940 = vmatpush1.msra.mxu0 0.0
        %2941 = vmatprep.mubr.f32.mxu0 0.0
        %2942 = vmatmul.mubr.f32.gmra.mrb[0].mxu0 %v2875
        %v2943 = vpop.f32.mrb[0].mxu0
        %v2944 = vadd.f32 0.0, %v2943
        %v2945 = vpop.f32.mrb[0].mxu0
        %2946 = vdwg.mxu0
        %v2947 = vadd.f32 %v2704, %v2944
        %2948 = vrot.lane.b32.xlu0 %v2225, 104
        %v2949 = vpop.permute.xlu0 %2948
        %2950 = vrot.lane.b32.xlu0 %v2225, 72
        %v2951 = vpop.permute.xlu0 %2950
        %v2952 = vsel %vm843, %v2949, 0
        %v2954 = vsel %vm843, %v2951, 0
        %2956 = vmatprep.subr.mxu0 0.0
        %2957 = vmatpush1.xpose.msra.mxu0 %v2954
        %2958 = vmatprep.subr.mxu0 0.0
        %2959 = vmatpush1.xpose.msra.mxu0 0.0
        %2960 = vmatprep.subr.mxu0 0.0
        %2961 = vmatpush1.xpose.msra.mxu0 0.0
        %2962 = vmatprep.subr.mxu0 0.0
        %2963 = vmatpush1.xpose.msra.mxu0 0.0
        %2964 = vmatprep.subr.mxu0 0.0
        %2965 = vmatpush1.xpose.msra.mxu0 0.0
        %2966 = vmatprep.subr.mxu0 0.0
        %2967 = vmatpush1.xpose.msra.mxu0 0.0
        %2968 = vmatprep.subr.mxu0 0.0
        %2969 = vmatpush1.xpose.msra.mxu0 0.0
        %2970 = vmatprep.subr.mxu0 0.0
        %2971 = vmatpush1.xpose.msra.mxu0 0.0
        %2972 = vmatprep.subr.mxu0 0.0
        %2973 = vmatpush1.xpose.msra.mxu0 0.0
        %2974 = vmatprep.subr.mxu0 0.0
        %2975 = vmatpush1.xpose.msra.mxu0 0.0
        %2976 = vmatprep.subr.mxu0 0.0
        %2977 = vmatpush1.xpose.msra.mxu0 0.0
        %2978 = vmatprep.subr.mxu0 0.0
        %2979 = vmatpush1.xpose.msra.mxu0 0.0
        %2980 = vmatprep.subr.mxu0 0.0
        %2981 = vmatpush1.xpose.msra.mxu0 0.0
        %2982 = vmatprep.subr.mxu0 0.0
        %2983 = vmatpush1.xpose.msra.mxu0 0.0
        %2984 = vmatprep.subr.mxu0 0.0
        %2985 = vmatpush1.xpose.msra.mxu0 0.0
        %2986 = vmatprep.subr.mxu0 0.0
        %2987 = vmatpush1.xpose.msra.mxu0 0.0
        %2988 = vmatprep.subr.mxu0 0.0
        %2989 = vmatpush1.xpose.msra.mxu0 0.0
        %2990 = vmatprep.subr.mxu0 0.0
        %2991 = vmatpush1.xpose.msra.mxu0 0.0
        %2992 = vmatprep.subr.mxu0 0.0
        %2993 = vmatpush1.xpose.msra.mxu0 0.0
        %2994 = vmatprep.subr.mxu0 0.0
        %2995 = vmatpush1.xpose.msra.mxu0 0.0
        %2996 = vmatprep.subr.mxu0 0.0
        %2997 = vmatpush1.xpose.msra.mxu0 0.0
        %2998 = vmatprep.subr.mxu0 0.0
        %2999 = vmatpush1.xpose.msra.mxu0 0.0
        %3000 = vmatprep.subr.mxu0 0.0
        %3001 = vmatpush1.xpose.msra.mxu0 0.0
        %3002 = vmatprep.subr.mxu0 0.0
        %3003 = vmatpush1.xpose.msra.mxu0 0.0
        %3004 = vmatprep.subr.mxu0 0.0
        %3005 = vmatpush1.xpose.msra.mxu0 0.0
        %3006 = vmatprep.subr.mxu0 0.0
        %3007 = vmatpush1.xpose.msra.mxu0 0.0
        %3008 = vmatprep.subr.mxu0 0.0
        %3009 = vmatpush1.xpose.msra.mxu0 0.0
        %3010 = vmatprep.subr.mxu0 0.0
        %3011 = vmatpush1.xpose.msra.mxu0 0.0
        %3012 = vmatprep.subr.mxu0 0.0
        %3013 = vmatpush1.xpose.msra.mxu0 0.0
        %3014 = vmatprep.subr.mxu0 0.0
        %3015 = vmatpush1.xpose.msra.mxu0 0.0
        %3016 = vmatprep.subr.mxu0 0.0
        %3017 = vmatpush1.xpose.msra.mxu0 0.0
        %3018 = vmatprep.subr.mxu0 0.0
        %3019 = vmatpush1.xpose.msra.mxu0 0.0
        %3020 = vmatprep.mubr.f32.mxu0 0.0
        %3021 = vmatmul.mubr.f32.gmra.mrb[0].mxu0 %v2952
        %v3022 = vpop.f32.mrb[0].mxu0
        %v3023 = vadd.f32 %v838, %v3022
        %v3024 = vpop.f32.mrb[0].mxu0
        %3025 = vdwg.mxu0
        %v3026 = vsel %vm843, %v3023, -inf
        %3027 = vmax.xlane.f32.xlu0 %v3026
        %v3028 = vpop.xlane.xlu0 %3027
        %v3029 = vsub.f32 %v3023, %v3028
        %v3030 = vmul.f32 %v3029, 1.442695
        %v3031 = vpow.pop %v3030
        %v3032 = vsel %vm843, %v3031, 0.0
        %3033 = vadd.xlane.f32.xlu0 %v3032
        %v3034 = vpop.xlane.xlu0 %3033
        %v3035 = vrcp.pop %v3034
        %v3036 = vmul.f32 %v3031, %v3035
        %3037 = vrot.lane.b32.xlu0 %v2225, 40
        %v3038 = vpop.permute.xlu0 %3037
        %v3041 = vsel %vm843, %v3036, 0
        %3043 = vmatprep.subr.mxu0 0.0
        %3044 = vmatpush1.msra.mxu0 %v3038
        %3045 = vmatprep.subr.mxu0 0.0
        %3046 = vmatpush1.msra.mxu0 0.0
        %3047 = vmatprep.subr.mxu0 0.0
        %3048 = vmatpush1.msra.mxu0 0.0
        %3049 = vmatprep.subr.mxu0 0.0
        %3050 = vmatpush1.msra.mxu0 0.0
        %3051 = vmatprep.subr.mxu0 0.0
        %3052 = vmatpush1.msra.mxu0 0.0
        %3053 = vmatprep.subr.mxu0 0.0
        %3054 = vmatpush1.msra.mxu0 0.0
        %3055 = vmatprep.subr.mxu0 0.0
        %3056 = vmatpush1.msra.mxu0 0.0
        %3057 = vmatprep.subr.mxu0 0.0
        %3058 = vmatpush1.msra.mxu0 0.0
        %3059 = vmatprep.subr.mxu0 0.0
        %3060 = vmatpush1.msra.mxu0 0.0
        %3061 = vmatprep.subr.mxu0 0.0
        %3062 = vmatpush1.msra.mxu0 0.0
        %3063 = vmatprep.subr.mxu0 0.0
        %3064 = vmatpush1.msra.mxu0 0.0
        %3065 = vmatprep.subr.mxu0 0.0
        %3066 = vmatpush1.msra.mxu0 0.0
        %3067 = vmatprep.subr.mxu0 0.0
        %3068 = vmatpush1.msra.mxu0 0.0
        %3069 = vmatprep.subr.mxu0 0.0
        %3070 = vmatpush1.msra.mxu0 0.0
        %3071 = vmatprep.subr.mxu0 0.0
        %3072 = vmatpush1.msra.mxu0 0.0
        %3073 = vmatprep.subr.mxu0 0.0
        %3074 = vmatpush1.msra.mxu0 0.0
        %3075 = vmatprep.subr.mxu0 0.0
        %3076 = vmatpush1.msra.mxu0 0.0
        %3077 = vmatprep.subr.mxu0 0.0
        %3078 = vmatpush1.msra.mxu0 0.0
        %3079 = vmatprep.subr.mxu0 0.0
        %3080 = vmatpush1.msra.mxu0 0.0
        %3081 = vmatprep.subr.mxu0 0.0
        %3082 = vmatpush1.msra.mxu0 0.0
        %3083 = vmatprep.subr.mxu0 0.0
        %3084 = vmatpush1.msra.mxu0 0.0
        %3085 = vmatprep.subr.mxu0 0.0
        %3086 = vmatpush1.msra.mxu0 0.0
        %3087 = vmatprep.subr.mxu0 0.0
        %3088 = vmatpush1.msra.mxu0 0.0
        %3089 = vmatprep.subr.mxu0 0.0
        %3090 = vmatpush1.msra.mxu0 0.0
        %3091 = vmatprep.subr.mxu0 0.0
        %3092 = vmatpush1.msra.mxu0 0.0
        %3093 = vmatprep.subr.mxu0 0.0
        %3094 = vmatpush1.msra.mxu0 0.0
        %3095 = vmatprep.subr.mxu0 0.0
        %3096 = vmatpush1.msra.mxu0 0.0
        %3097 = vmatprep.subr.mxu0 0.0
        %3098 = vmatpush1.msra.mxu0 0.0
        %3099 = vmatprep.subr.mxu0 0.0
        %3100 = vmatpush1.msra.mxu0 0.0
        %3101 = vmatprep.subr.mxu0 0.0
        %3102 = vmatpush1.msra.mxu0 0.0
        %3103 = vmatprep.subr.mxu0 0.0
        %3104 = vmatpush1.msra.mxu0 0.0
        %3105 = vmatprep.subr.mxu0 0.0
        %3106 = vmatpush1.msra.mxu0 0.0
        %3107 = vmatprep.mubr.f32.mxu0 0.0
        %3108 = vmatmul.mubr.f32.gmra.mrb[0].mxu0 %v3041
        %v3109 = vpop.f32.mrb[0].mxu0
        %v3110 = vadd.f32 0.0, %v3109
        %v3111 = vpop.f32.mrb[0].mxu0
        %3112 = vdwg.mxu0
        %s3113 = scalar_lea.vmem %s8, 56
        %v3114 = vld [vmem:[%s3113] sm:$0xff]
        %v3116 = vsel %vm843, %v3110, 0
        %3118 = vmatprep.subr.mxu0 0.0
        %3119 = vmatpush1.msra.mxu0 %v3114
        %3120 = vmatprep.subr.mxu0 0.0
        %3121 = vmatpush1.msra.mxu0 0.0
        %3122 = vmatprep.subr.mxu0 0.0
        %3123 = vmatpush1.msra.mxu0 0.0
        %3124 = vmatprep.subr.mxu0 0.0
        %3125 = vmatpush1.msra.mxu0 0.0
        %3126 = vmatprep.subr.mxu0 0.0
        %3127 = vmatpush1.msra.mxu0 0.0
        %3128 = vmatprep.subr.mxu0 0.0
        %3129 = vmatpush1.msra.mxu0 0.0
        %3130 = vmatprep.subr.mxu0 0.0
        %3131 = vmatpush1.msra.mxu0 0.0
        %3132 = vmatprep.subr.mxu0 0.0
        %3133 = vmatpush1.msra.mxu0 0.0
        %3134 = vmatprep.subr.mxu0 0.0
        %3135 = vmatpush1.msra.mxu0 0.0
        %3136 = vmatprep.subr.mxu0 0.0
        %3137 = vmatpush1.msra.mxu0 0.0
        %3138 = vmatprep.subr.mxu0 0.0
        %3139 = vmatpush1.msra.mxu0 0.0
        %3140 = vmatprep.subr.mxu0 0.0
        %3141 = vmatpush1.msra.mxu0 0.0
        %3142 = vmatprep.subr.mxu0 0.0
        %3143 = vmatpush1.msra.mxu0 0.0
        %3144 = vmatprep.subr.mxu0 0.0
        %3145 = vmatpush1.msra.mxu0 0.0
        %3146 = vmatprep.subr.mxu0 0.0
        %3147 = vmatpush1.msra.mxu0 0.0
        %3148 = vmatprep.subr.mxu0 0.0
        %3149 = vmatpush1.msra.mxu0 0.0
        %3150 = vmatprep.subr.mxu0 0.0
        %3151 = vmatpush1.msra.mxu0 0.0
        %3152 = vmatprep.subr.mxu0 0.0
        %3153 = vmatpush1.msra.mxu0 0.0
        %3154 = vmatprep.subr.mxu0 0.0
        %3155 = vmatpush1.msra.mxu0 0.0
        %3156 = vmatprep.subr.mxu0 0.0
        %3157 = vmatpush1.msra.mxu0 0.0
        %3158 = vmatprep.subr.mxu0 0.0
        %3159 = vmatpush1.msra.mxu0 0.0
        %3160 = vmatprep.subr.mxu0 0.0
        %3161 = vmatpush1.msra.mxu0 0.0
        %3162 = vmatprep.subr.mxu0 0.0
        %3163 = vmatpush1.msra.mxu0 0.0
        %3164 = vmatprep.subr.mxu0 0.0
        %3165 = vmatpush1.msra.mxu0 0.0
        %3166 = vmatprep.subr.mxu0 0.0
        %3167 = vmatpush1.msra.mxu0 0.0
        %3168 = vmatprep.subr.mxu0 0.0
        %3169 = vmatpush1.msra.mxu0 0.0
        %3170 = vmatprep.subr.mxu0 0.0
        %3171 = vmatpush1.msra.mxu0 0.0
        %3172 = vmatprep.subr.mxu0 0.0
        %3173 = vmatpush1.msra.mxu0 0.0
        %3174 = vmatprep.subr.mxu0 0.0
        %3175 = vmatpush1.msra.mxu0 0.0
        %3176 = vmatprep.subr.mxu0 0.0
        %3177 = vmatpush1.msra.mxu0 0.0
        %3178 = vmatprep.subr.mxu0 0.0
        %3179 = vmatpush1.msra.mxu0 0.0
        %3180 = vmatprep.subr.mxu0 0.0
        %3181 = vmatpush1.msra.mxu0 0.0
        %3182 = vmatprep.mubr.f32.mxu0 0.0
        %3183 = vmatmul.mubr.f32.gmra.mrb[0].mxu0 %v3116
        %v3184 = vpop.f32.mrb[0].mxu0
        %v3185 = vadd.f32 0.0, %v3184
        %v3186 = vpop.f32.mrb[0].mxu0
        %3187 = vdwg.mxu0
        %v3188 = vadd.f32 %v2947, %v3185
        %s3189 = scalar_lea.vmem %s9, 1
        %v3190 = vld [vmem:[%s3189] sm:$0x1]
        %v3192 = vlaneseq
        %v3193 = vshrl.u32 %v3192, 7
        %v3194 = vsub.s32 0, %v3193
        %v3195 = vrot.slane %v3190, %v3194
        %v3197 = vadd.f32 %v3188, %v3195
        %v3198 = vadd.f32 %v2141, %v3197
        %v3199 = vsel %vm760, %v3198, 0.0
        %3200 = vadd.xlane.f32.xlu0 %v3199
        %v3201 = vpop.xlane.xlu0 %3200
        %v3202 = vmul.f32 %v3201, %v1813
        %v3203 = vsub.f32 %v3198, %v3202
        %v3204 = vmul.f32 %v3203, %v3203
        %v3205 = vsel %vm760, %v3204, 0.0
        %3206 = vadd.xlane.f32.xlu0 %v3205
        %v3207 = vpop.xlane.xlu0 %3206
        %v3208 = vmul.f32 %v3207, %v1813
        %v3209 = vadd.f32 %v3208, 1e-05
        %v3210 = vrsqrt.pop %v3209
        %v3211 = vmul.f32 %v3203, %v3210
        %s3212 = scalar_lea.vmem %s10, 32
        %v3213 = vld [vmem:[%s3212] sm:$0xff]
        %v3214 = vld [vmem:[%s3212 + $0x8] sm:$0xff]
        %v3215 = vld [vmem:[%s3212 + $0x10] sm:$0xff]
        %v3216 = vld [vmem:[%s3212 + $0x18] sm:$0xff]
        %s3217 = scalar_lea.vmem %s11, 1
        %v3218 = vld [vmem:[%s3217] sm:$0x1]
        %v3220 = vlaneseq
        %v3221 = vshrl.u32 %v3220, 7
        %v3222 = vsub.s32 0, %v3221
        %v3223 = vrot.slane %v3218, %v3222
        %v3226 = vsel %vm760, %v3211, 0
        %3228 = vmatprep.subr.mxu0 0.0
        %3229 = vmatpush1.msra.mxu0 %v3213
        %3230 = vmatprep.subr.mxu0 0.0
        %3231 = vmatpush1.msra.mxu0 %v3214
        %3232 = vmatprep.subr.mxu0 0.0
        %3233 = vmatpush1.msra.mxu0 %v3215
        %3234 = vmatprep.subr.mxu0 0.0
        %3235 = vmatpush1.msra.mxu0 %v3216
        %3236 = vmatprep.subr.mxu0 0.0
        %3237 = vmatpush1.msra.mxu0 0.0
        %3238 = vmatprep.subr.mxu0 0.0
        %3239 = vmatpush1.msra.mxu0 0.0
        %3240 = vmatprep.subr.mxu0 0.0
        %3241 = vmatpush1.msra.mxu0 0.0
        %3242 = vmatprep.subr.mxu0 0.0
        %3243 = vmatpush1.msra.mxu0 0.0
        %3244 = vmatprep.subr.mxu0 0.0
        %3245 = vmatpush1.msra.mxu0 0.0
        %3246 = vmatprep.subr.mxu0 0.0
        %3247 = vmatpush1.msra.mxu0 0.0
        %3248 = vmatprep.subr.mxu0 0.0
        %3249 = vmatpush1.msra.mxu0 0.0
        %3250 = vmatprep.subr.mxu0 0.0
        %3251 = vmatpush1.msra.mxu0 0.0
        %3252 = vmatprep.subr.mxu0 0.0
        %3253 = vmatpush1.msra.mxu0 0.0
        %3254 = vmatprep.subr.mxu0 0.0
        %3255 = vmatpush1.msra.mxu0 0.0
        %3256 = vmatprep.subr.mxu0 0.0
        %3257 = vmatpush1.msra.mxu0 0.0
        %3258 = vmatprep.subr.mxu0 0.0
        %3259 = vmatpush1.msra.mxu0 0.0
        %3260 = vmatprep.subr.mxu0 0.0
        %3261 = vmatpush1.msra.mxu0 0.0
        %3262 = vmatprep.subr.mxu0 0.0
        %3263 = vmatpush1.msra.mxu0 0.0
        %3264 = vmatprep.subr.mxu0 0.0
        %3265 = vmatpush1.msra.mxu0 0.0
        %3266 = vmatprep.subr.mxu0 0.0
        %3267 = vmatpush1.msra.mxu0 0.0
        %3268 = vmatprep.subr.mxu0 0.0
        %3269 = vmatpush1.msra.mxu0 0.0
        %3270 = vmatprep.subr.mxu0 0.0
        %3271 = vmatpush1.msra.mxu0 0.0
        %3272 = vmatprep.subr.mxu0 0.0
        %3273 = vmatpush1.msra.mxu0 0.0
        %3274 = vmatprep.subr.mxu0 0.0
        %3275 = vmatpush1.msra.mxu0 0.0
        %3276 = vmatprep.subr.mxu0 0.0
        %3277 = vmatpush1.msra.mxu0 0.0
        %3278 = vmatprep.subr.mxu0 0.0
        %3279 = vmatpush1.msra.mxu0 0.0
        %3280 = vmatprep.subr.mxu0 0.0
        %3281 = vmatpush1.msra.mxu0 0.0
        %3282 = vmatprep.subr.mxu0 0.0
        %3283 = vmatpush1.msra.mxu0 0.0
        %3284 = vmatprep.subr.mxu0 0.0
        %3285 = vmatpush1.msra.mxu0 0.0
        %3286 = vmatprep.subr.mxu0 0.0
        %3287 = vmatpush1.msra.mxu0 0.0
        %3288 = vmatprep.subr.mxu0 0.0
        %3289 = vmatpush1.msra.mxu0 0.0
        %3290 = vmatprep.subr.mxu0 0.0
        %3291 = vmatpush1.msra.mxu0 0.0
        %3292 = vmatprep.mubr.f32.mxu0 0.0
        %3293 = vmatmul.mubr.f32.gmra.mrb[0].mxu0 %v3226
        %v3294 = vpop.f32.mrb[0].mxu0
        %v3295 = vadd.f32 %v3223, %v3294
        %v3296 = vpop.f32.mrb[0].mxu0
        %3297 = vdwg.mxu0
        %v3298 = vmul.f32 %v3295, 0.5
        %v3299 = vmul.f32 %v3295, 0.044715
        %v3300 = vmul.f32 %v3299, %v3295
        %v3301 = vmul.f32 %v3300, %v3295
        %v3302 = vadd.f32 %v3295, %v3301
        %v3303 = vmul.f32 %v3302, 0.7978846
        %v3304 = vtanh.pop %v3303
        %v3305 = vadd.f32 %v3304, 1.0
        %v3306 = vmul.f32 %v3298, %v3305
        %s3307 = scalar_lea.vmem %s12, 128
        %v3308 = vld [vmem:[%s3307] sm:$0xff]
        %v3309 = vld [vmem:[%s3307 + $0x8] sm:$0xff]
        %v3310 = vld [vmem:[%s3307 + $0x10] sm:$0xff]
        %v3311 = vld [vmem:[%s3307 + $0x18] sm:$0xff]
        %v3312 = vld [vmem:[%s3307 + $0x20] sm:$0xff]
        %v3313 = vld [vmem:[%s3307 + $0x28] sm:$0xff]
        %v3314 = vld [vmem:[%s3307 + $0x30] sm:$0xff]
        %v3315 = vld [vmem:[%s3307 + $0x38] sm:$0xff]
        %v3316 = vld [vmem:[%s3307 + $0x40] sm:$0xff]
        %v3317 = vld [vmem:[%s3307 + $0x48] sm:$0xff]
        %v3318 = vld [vmem:[%s3307 + $0x50] sm:$0xff]
        %v3319 = vld [vmem:[%s3307 + $0x58] sm:$0xff]
        %v3320 = vld [vmem:[%s3307 + $0x60] sm:$0xff]
        %v3321 = vld [vmem:[%s3307 + $0x68] sm:$0xff]
        %v3322 = vld [vmem:[%s3307 + $0x70] sm:$0xff]
        %v3323 = vld [vmem:[%s3307 + $0x78] sm:$0xff]
        %s3324 = scalar_lea.vmem %s13, 1
        %v3325 = vld [vmem:[%s3324] sm:$0x1]
        %v3327 = vlaneseq
        %v3328 = vshrl.u32 %v3327, 7
        %v3329 = vsub.s32 0, %v3328
        %v3330 = vrot.slane %v3325, %v3329
        %3332 = vmatprep.subr.mxu0 0.0
        %3333 = vmatpush1.msra.mxu0 %v3308
        %3334 = vmatprep.subr.mxu0 0.0
        %3335 = vmatpush1.msra.mxu0 %v3309
        %3336 = vmatprep.subr.mxu0 0.0
        %3337 = vmatpush1.msra.mxu0 %v3310
        %3338 = vmatprep.subr.mxu0 0.0
        %3339 = vmatpush1.msra.mxu0 %v3311
        %3340 = vmatprep.subr.mxu0 0.0
        %3341 = vmatpush1.msra.mxu0 %v3312
        %3342 = vmatprep.subr.mxu0 0.0
        %3343 = vmatpush1.msra.mxu0 %v3313
        %3344 = vmatprep.subr.mxu0 0.0
        %3345 = vmatpush1.msra.mxu0 %v3314
        %3346 = vmatprep.subr.mxu0 0.0
        %3347 = vmatpush1.msra.mxu0 %v3315
        %3348 = vmatprep.subr.mxu0 0.0
        %3349 = vmatpush1.msra.mxu0 %v3316
        %3350 = vmatprep.subr.mxu0 0.0
        %3351 = vmatpush1.msra.mxu0 %v3317
        %3352 = vmatprep.subr.mxu0 0.0
        %3353 = vmatpush1.msra.mxu0 %v3318
        %3354 = vmatprep.subr.mxu0 0.0
        %3355 = vmatpush1.msra.mxu0 %v3319
        %3356 = vmatprep.subr.mxu0 0.0
        %3357 = vmatpush1.msra.mxu0 %v3320
        %3358 = vmatprep.subr.mxu0 0.0
        %3359 = vmatpush1.msra.mxu0 %v3321
        %3360 = vmatprep.subr.mxu0 0.0
        %3361 = vmatpush1.msra.mxu0 %v3322
        %3362 = vmatprep.subr.mxu0 0.0
        %3363 = vmatpush1.msra.mxu0 %v3323
        %3364 = vmatprep.subr.mxu0 0.0
        %3365 = vmatpush1.msra.mxu0 0.0
        %3366 = vmatprep.subr.mxu0 0.0
        %3367 = vmatpush1.msra.mxu0 0.0
        %3368 = vmatprep.subr.mxu0 0.0
        %3369 = vmatpush1.msra.mxu0 0.0
        %3370 = vmatprep.subr.mxu0 0.0
        %3371 = vmatpush1.msra.mxu0 0.0
        %3372 = vmatprep.subr.mxu0 0.0
        %3373 = vmatpush1.msra.mxu0 0.0
        %3374 = vmatprep.subr.mxu0 0.0
        %3375 = vmatpush1.msra.mxu0 0.0
        %3376 = vmatprep.subr.mxu0 0.0
        %3377 = vmatpush1.msra.mxu0 0.0
        %3378 = vmatprep.subr.mxu0 0.0
        %3379 = vmatpush1.msra.mxu0 0.0
        %3380 = vmatprep.subr.mxu0 0.0
        %3381 = vmatpush1.msra.mxu0 0.0
        %3382 = vmatprep.subr.mxu0 0.0
        %3383 = vmatpush1.msra.mxu0 0.0
        %3384 = vmatprep.subr.mxu0 0.0
        %3385 = vmatpush1.msra.mxu0 0.0
        %3386 = vmatprep.subr.mxu0 0.0
        %3387 = vmatpush1.msra.mxu0 0.0
        %3388 = vmatprep.subr.mxu0 0.0
        %3389 = vmatpush1.msra.mxu0 0.0
        %3390 = vmatprep.subr.mxu0 0.0
        %3391 = vmatpush1.msra.mxu0 0.0
        %3392 = vmatprep.subr.mxu0 0.0
        %3393 = vmatpush1.msra.mxu0 0.0
        %3394 = vmatprep.subr.mxu0 0.0
        %3395 = vmatpush1.msra.mxu0 0.0
        %3396 = vmatprep.mubr.f32.mxu0 0.0
        %3397 = vmatmul.mubr.f32.gmra.mrb[0].mxu0 %v3306
        %v3398 = vpop.f32.mrb[0].mxu0
        %v3399 = vadd.f32 %v3330, %v3398
        %v3400 = vpop.f32.mrb[0].mxu0
        %3401 = vdwg.mxu0
        %v3402 = vmul.f32 %v3399, 0.5
        %v3403 = vmul.f32 %v3399, 0.044715
        %v3404 = vmul.f32 %v3403, %v3399
        %v3405 = vmul.f32 %v3404, %v3399
        %v3406 = vadd.f32 %v3399, %v3405
        %v3407 = vmul.f32 %v3406, 0.7978846
        %v3408 = vtanh.pop %v3407
        %v3409 = vadd.f32 %v3408, 1.0
        %v3410 = vmul.f32 %v3402, %v3409
        %s3411 = scalar_lea.vmem %s14, 64
        %v3412 = vld [vmem:[%s3411] sm:$0xff]
        %v3413 = vld [vmem:[%s3411 + $0x8] sm:$0xff]
        %v3414 = vld [vmem:[%s3411 + $0x10] sm:$0xff]
        %v3415 = vld [vmem:[%s3411 + $0x18] sm:$0xff]
        %v3416 = vld [vmem:[%s3411 + $0x20] sm:$0xff]
        %v3417 = vld [vmem:[%s3411 + $0x28] sm:$0xff]
        %v3418 = vld [vmem:[%s3411 + $0x30] sm:$0xff]
        %v3419 = vld [vmem:[%s3411 + $0x38] sm:$0xff]
        %s3420 = scalar_lea.vmem %s15, 1
        %v3421 = vld [vmem:[%s3420] sm:$0x1]
        %v3423 = vlaneseq
        %v3424 = vshrl.u32 %v3423, 7
        %v3425 = vsub.s32 0, %v3424
        %v3426 = vrot.slane %v3421, %v3425
        %v3429 = vsel %vm2034, %v3410, 0
        %3431 = vmatprep.subr.mxu0 0.0
        %3432 = vmatpush1.msra.mxu0 %v3412
        %3433 = vmatprep.subr.mxu0 0.0
        %3434 = vmatpush1.msra.mxu0 %v3413
        %3435 = vmatprep.subr.mxu0 0.0
        %3436 = vmatpush1.msra.mxu0 %v3414
        %3437 = vmatprep.subr.mxu0 0.0
        %3438 = vmatpush1.msra.mxu0 %v3415
        %3439 = vmatprep.subr.mxu0 0.0
        %3440 = vmatpush1.msra.mxu0 %v3416
        %3441 = vmatprep.subr.mxu0 0.0
        %3442 = vmatpush1.msra.mxu0 %v3417
        %3443 = vmatprep.subr.mxu0 0.0
        %3444 = vmatpush1.msra.mxu0 %v3418
        %3445 = vmatprep.subr.mxu0 0.0
        %3446 = vmatpush1.msra.mxu0 %v3419
        %3447 = vmatprep.subr.mxu0 0.0
        %3448 = vmatpush1.msra.mxu0 0.0
        %3449 = vmatprep.subr.mxu0 0.0
        %3450 = vmatpush1.msra.mxu0 0.0
        %3451 = vmatprep.subr.mxu0 0.0
        %3452 = vmatpush1.msra.mxu0 0.0
        %3453 = vmatprep.subr.mxu0 0.0
        %3454 = vmatpush1.msra.mxu0 0.0
        %3455 = vmatprep.subr.mxu0 0.0
        %3456 = vmatpush1.msra.mxu0 0.0
        %3457 = vmatprep.subr.mxu0 0.0
        %3458 = vmatpush1.msra.mxu0 0.0
        %3459 = vmatprep.subr.mxu0 0.0
        %3460 = vmatpush1.msra.mxu0 0.0
        %3461 = vmatprep.subr.mxu0 0.0
        %3462 = vmatpush1.msra.mxu0 0.0
        %3463 = vmatprep.subr.mxu0 0.0
        %3464 = vmatpush1.msra.mxu0 0.0
        %3465 = vmatprep.subr.mxu0 0.0
        %3466 = vmatpush1.msra.mxu0 0.0
        %3467 = vmatprep.subr.mxu0 0.0
        %3468 = vmatpush1.msra.mxu0 0.0
        %3469 = vmatprep.subr.mxu0 0.0
        %3470 = vmatpush1.msra.mxu0 0.0
        %3471 = vmatprep.subr.mxu0 0.0
        %3472 = vmatpush1.msra.mxu0 0.0
        %3473 = vmatprep.subr.mxu0 0.0
        %3474 = vmatpush1.msra.mxu0 0.0
        %3475 = vmatprep.subr.mxu0 0.0
        %3476 = vmatpush1.msra.mxu0 0.0
        %3477 = vmatprep.subr.mxu0 0.0
        %3478 = vmatpush1.msra.mxu0 0.0
        %3479 = vmatprep.subr.mxu0 0.0
        %3480 = vmatpush1.msra.mxu0 0.0
        %3481 = vmatprep.subr.mxu0 0.0
        %3482 = vmatpush1.msra.mxu0 0.0
        %3483 = vmatprep.subr.mxu0 0.0
        %3484 = vmatpush1.msra.mxu0 0.0
        %3485 = vmatprep.subr.mxu0 0.0
        %3486 = vmatpush1.msra.mxu0 0.0
        %3487 = vmatprep.subr.mxu0 0.0
        %3488 = vmatpush1.msra.mxu0 0.0
        %3489 = vmatprep.subr.mxu0 0.0
        %3490 = vmatpush1.msra.mxu0 0.0
        %3491 = vmatprep.subr.mxu0 0.0
        %3492 = vmatpush1.msra.mxu0 0.0
        %3493 = vmatprep.subr.mxu0 0.0
        %3494 = vmatpush1.msra.mxu0 0.0
        %3495 = vmatprep.mubr.f32.mxu0 0.0
        %3496 = vmatmul.mubr.f32.gmra.mrb[0].mxu0 %v3429
        %v3497 = vpop.f32.mrb[0].mxu0
        %v3498 = vadd.f32 %v3426, %v3497
        %v3499 = vpop.f32.mrb[0].mxu0
        %3500 = vdwg.mxu0
        %s3501 = scalar_lea.vmem %s16, 2
        %v3502 = vld [vmem:[%s3501] sm:$0x3]
        %v3503 = vadd.f32 %v3211, %v3498
        %v3504 = vsel %vm760, %v3503, 0.0
        %3505 = vadd.xlane.f32.xlu0 %v3504
        %v3506 = vpop.xlane.xlu0 %3505
        %v3507 = vmul.f32 %v3506, %v1813
        %v3508 = vsub.f32 %v3503, %v3507
        %v3509 = vmul.f32 %v3508, %v3508
        %v3510 = vsel %vm760, %v3509, 0.0
        %3511 = vadd.xlane.f32.xlu0 %v3510
        %v3512 = vpop.xlane.xlu0 %3511
        %v3513 = vmul.f32 %v3512, %v1813
        %v3514 = vadd.f32 %v3513, 1e-05
        %v3515 = vrsqrt.pop %v3514
        %v3516 = vmul.f32 %v3508, %v3515
        %v3517 = vlaneseq
        %v3518 = vshrl.u32 %v3517, 7
        %v3519 = vsub.s32 0, %v3518
        %v3520 = vrot.slane %v3502, %v3519
        %v3521 = vmul.f32 %v3516, %v3520
        %v3522 = vlaneseq
        %v3523 = vshrl.u32 %v3522, 7
        %v3524 = vsub.s32 1, %v3523
        %v3525 = vrot.slane %v3502, %v3524
        %v3526 = vadd.f32 %v3521, %v3525
        %v3527 = vld [vmem:[%s17] sm:$0x3]
        %v3528 = vsel %vm760, %v3526, 0.0
        %3529 = vadd.xlane.f32.xlu0 %v3528
        %v3530 = vpop.xlane.xlu0 %3529
        %v3531 = vmul.f32 %v3530, %v1813
        %v3532 = vsub.f32 %v3526, %v3531
        %v3533 = vmul.f32 %v3532, %v3532
        %v3534 = vsel %vm760, %v3533, 0.0
        %3535 = vadd.xlane.f32.xlu0 %v3534
        %v3536 = vpop.xlane.xlu0 %3535
        %v3537 = vmul.f32 %v3536, %v1813
        %v3538 = vadd.f32 %v3537, 1e-05
        %v3539 = vrsqrt.pop %v3538
        %v3540 = vmul.f32 %v3532, %v3539
        %v3541 = vlaneseq
        %v3542 = vshrl.u32 %v3541, 7
        %v3543 = vsub.s32 0, %v3542
        %v3544 = vrot.slane %v3527, %v3543
        %v3545 = vmul.f32 %v3540, %v3544
        %v3546 = vlaneseq
        %v3547 = vshrl.u32 %v3546, 7
        %v3548 = vsub.s32 1, %v3547
        %v3549 = vrot.slane %v3527, %v3548
        %v3550 = vadd.f32 %v3545, %v3549
        %v3551 = vld [vmem:[%s18] sm:$0xff]
        %v3552 = vld [vmem:[%s18 + $0x8] sm:$0xff]
        %v3553 = vld [vmem:[%s18 + $0x10] sm:$0xff]
        %v3554 = vld [vmem:[%s18 + $0x18] sm:$0xff]
        %v3555 = vld [vmem:[%s19] sm:$0x1]
        %v3557 = vlaneseq
        %v3558 = vshrl.u32 %v3557, 7
        %v3559 = vsub.s32 0, %v3558
        %v3560 = vrot.slane %v3555, %v3559
        %v3563 = vsel %vm760, %v3550, 0
        %3565 = vmatprep.subr.mxu0 0.0
        %3566 = vmatpush1.msra.mxu0 %v3551
        %3567 = vmatprep.subr.mxu0 0.0
        %3568 = vmatpush1.msra.mxu0 %v3552
        %3569 = vmatprep.subr.mxu0 0.0
        %3570 = vmatpush1.msra.mxu0 %v3553
        %3571 = vmatprep.subr.mxu0 0.0
        %3572 = vmatpush1.msra.mxu0 %v3554
        %3573 = vmatprep.subr.mxu0 0.0
        %3574 = vmatpush1.msra.mxu0 0.0
        %3575 = vmatprep.subr.mxu0 0.0
        %3576 = vmatpush1.msra.mxu0 0.0
        %3577 = vmatprep.subr.mxu0 0.0
        %3578 = vmatpush1.msra.mxu0 0.0
        %3579 = vmatprep.subr.mxu0 0.0
        %3580 = vmatpush1.msra.mxu0 0.0
        %3581 = vmatprep.subr.mxu0 0.0
        %3582 = vmatpush1.msra.mxu0 0.0
        %3583 = vmatprep.subr.mxu0 0.0
        %3584 = vmatpush1.msra.mxu0 0.0
        %3585 = vmatprep.subr.mxu0 0.0
        %3586 = vmatpush1.msra.mxu0 0.0
        %3587 = vmatprep.subr.mxu0 0.0
        %3588 = vmatpush1.msra.mxu0 0.0
        %3589 = vmatprep.subr.mxu0 0.0
        %3590 = vmatpush1.msra.mxu0 0.0
        %3591 = vmatprep.subr.mxu0 0.0
        %3592 = vmatpush1.msra.mxu0 0.0
        %3593 = vmatprep.subr.mxu0 0.0
        %3594 = vmatpush1.msra.mxu0 0.0
        %3595 = vmatprep.subr.mxu0 0.0
        %3596 = vmatpush1.msra.mxu0 0.0
        %3597 = vmatprep.subr.mxu0 0.0
        %3598 = vmatpush1.msra.mxu0 0.0
        %3599 = vmatprep.subr.mxu0 0.0
        %3600 = vmatpush1.msra.mxu0 0.0
        %3601 = vmatprep.subr.mxu0 0.0
        %3602 = vmatpush1.msra.mxu0 0.0
        %3603 = vmatprep.subr.mxu0 0.0
        %3604 = vmatpush1.msra.mxu0 0.0
        %3605 = vmatprep.subr.mxu0 0.0
        %3606 = vmatpush1.msra.mxu0 0.0
        %3607 = vmatprep.subr.mxu0 0.0
        %3608 = vmatpush1.msra.mxu0 0.0
        %3609 = vmatprep.subr.mxu0 0.0
        %3610 = vmatpush1.msra.mxu0 0.0
        %3611 = vmatprep.subr.mxu0 0.0
        %3612 = vmatpush1.msra.mxu0 0.0
        %3613 = vmatprep.subr.mxu0 0.0
        %3614 = vmatpush1.msra.mxu0 0.0
        %3615 = vmatprep.subr.mxu0 0.0
        %3616 = vmatpush1.msra.mxu0 0.0
        %3617 = vmatprep.subr.mxu0 0.0
        %3618 = vmatpush1.msra.mxu0 0.0
        %3619 = vmatprep.subr.mxu0 0.0
        %3620 = vmatpush1.msra.mxu0 0.0
        %3621 = vmatprep.subr.mxu0 0.0
        %3622 = vmatpush1.msra.mxu0 0.0
        %3623 = vmatprep.subr.mxu0 0.0
        %3624 = vmatpush1.msra.mxu0 0.0
        %3625 = vmatprep.subr.mxu0 0.0
        %3626 = vmatpush1.msra.mxu0 0.0
        %3627 = vmatprep.subr.mxu0 0.0
        %3628 = vmatpush1.msra.mxu0 0.0
        %3629 = vmatprep.mubr.f32.mxu0 0.0
        %3630 = vmatmul.mubr.f32.gmra.mrb[0].mxu0 %v3563
        %v3631 = vpop.f32.mrb[0].mxu0
        %v3632 = vadd.f32 %v3560, %v3631
        %v3633 = vpop.f32.mrb[0].mxu0
        %3634 = vdwg.mxu0
        %3635 = vst.msk [vmem:[%s644] sm:$0xff] %vm666, %v3632
        %s3636 = sand.u32 %s477, 1
        %s3637 = scalar_lea.sflag [#allocation3], %s3636
        %s3638 = sand.u32 %s477, 1
        %s3639 = smul.addr %s3638, 8
        %s3640 = scalar_lea.vmem [#allocation2], %s3639
        // Predicated region
        $region101: #{seq_transformer_forward.1} parent=99 // pred_check
          %p3641 = pneg %p487
        $region102: #{seq_transformer_forward.1} parent=99 // pred_check_branch
          %3643 = sbr.rel (%p3641) target = $region104
        $region103: #{seq_transformer_forward.1} parent=99 // pred_region
          %s3645 = ssub.s32 128, 128
          %3646 = vsyncadd %s3637, %s3645
          %s3647 = smul.addr %s34, 128
          %s3648 = scalar_lea.hbm %s20, %s3647
          %s3650 = sshll.u32 %s3640, 4
          %s3651 = int_to_ptr.vmem [resolvable:$true] %s3650
          %3653 = dma.vmem_to_hbm [thread:$0]  %s3651, 128, %s3648, %s3637
        $region104: #{seq_transformer_forward.1} parent=99 // pred_fallthru
          _
      $region100: #{seq_transformer_forward.1} parent=5 // pred_fallthru
        _
      %p3654 = scmp.le.s32.totalorder 2, %s29
      // Predicated region
      $region105: #{seq_transformer_forward.1} parent=5 // pred_check
        %p3655 = pneg %p3654
      $region106: #{seq_transformer_forward.1} parent=5 // pred_check_branch
        %3657 = sbr.rel (%p3655) target = $region108
      $region107: #{seq_transformer_forward.1} parent=5 // pred_region
        %s3658 = ssub.s32 %s29, 2
        // Predicated region
        $region109: #{seq_transformer_forward.1} parent=107 // pred_check
          %p3659 = pneg %p493
        $region110: #{seq_transformer_forward.1} parent=107 // pred_check_branch
          %3661 = sbr.rel (%p3659) target = $region112
        $region111: #{seq_transformer_forward.1} parent=107 // pred_region
          %s3662 = sand.u32 %s478, 1
          %s3663 = scalar_lea.sflag [#allocation3], %s3662
          %s3664 = sand.u32 %s478, 1
          %s3665 = smul.addr %s3664, 8
          %s3666 = scalar_lea.vmem [#allocation2], %s3665
          %3667 = dma.done %s3663, 128
        $region112: #{seq_transformer_forward.1} parent=107 // pred_fallthru
          _
      $region108: #{seq_transformer_forward.1} parent=5 // pred_fallthru
        _
    $region6: #{seq_transformer_forward.1} parent=1 // loop_footer
      %s33 = sadd.s32 1, %s29
    $region7: #{seq_transformer_forward.1} parent=1 // loop_footer_branch
      %28 = sbr.rel target = $region3
    $region8: #{seq_transformer_forward.1} parent=1 // loop_exit
      _
    %3668 = vsyncpa [#allocation3], 1
    %s3669 = scalar_lea.sflag [#allocation3], 1
    %3670 = vsyncpa %s3669, 1

</llo_original>
